<compile_context>
chip_gen: v7x
topology: tpu7x:2x2x1
jax: 0.10.0
libtpu: 0.0.40
codegen_flags: <defaults>
</compile_context>

<pallas_src>
import jax
import jax.numpy as jnp
from jax.experimental import pallas as pl
from jax.experimental.pallas import tpu as pltpu

LATENT = 32
ACTION_DIM = 4
GOAL_DIM = 4
AG_DIM = ACTION_DIM + GOAL_DIM
HIDDEN = 1024
BN_EPS = 1e-5


# ---------------------------------------------------------------------------
# Fused kernel: encoder + concat + one Q head per grid step (grid=(2,))
# ---------------------------------------------------------------------------
def _ae_critic_kernel(x_ref, we_ref, be_ref, ag_ref,
                      w1z_ref, w1ag_ref, b1_ref, gamma_ref, beta_ref,
                      w2_ref, s2_ref, b2_ref, w3_ref, b3_ref, q_ref):
    # Encoder: z = tanh(state_flat @ W_enc + b_enc); bf16 MXU, f32 accumulation.
    z = jnp.tanh(
        jnp.dot(x_ref[...], we_ref[...], preferred_element_type=jnp.float32)
        + be_ref[...])                                            # [B, LATENT] f32

    # Linear 1 on obs_action = [z | action | goal], split product:
    #   z term on the MXU, the 8 action/goal columns as VPU rank-1 FMAs
    #   (avoids an unaligned 40-lane concat and a K=8 sub-tile MXU pass).
    h1 = (jnp.dot(z.astype(jnp.bfloat16), w1z_ref[...],
                  preferred_element_type=jnp.float32)
          + b1_ref[...])                                          # [B, HIDDEN] f32
    ag = ag_ref[...]                                              # [B, 8]  f32
    w1ag = w1ag_ref[...]                                          # [8, HIDDEN] f32
    for k in range(AG_DIM):                                       # static unroll
        h1 = h1 + ag[:, k:k + 1] * w1ag[k:k + 1, :]
    h1 = jnp.maximum(h1, 0.0)

    # BatchNorm1d (training-mode forward: batch mean, biased variance).
    mean = jnp.mean(h1, axis=0, keepdims=True)
    var = jnp.mean((h1 - mean) ** 2, axis=0, keepdims=True)
    h1 = (h1 - mean) * jax.lax.rsqrt(var + BN_EPS)
    h1 = h1 * gamma_ref[...] + beta_ref[...]

    # Linear 2 + ReLU.  w2 is stored int8 (HBM byte reduction); dequantize to
    # bf16 on the fly (int8 -> f32 -> bf16, both native casts) and apply the
    # per-output-channel scale after the f32-accumulated matmul.
    w2 = w2_ref[...].astype(jnp.float32).astype(jnp.bfloat16)     # [HIDDEN, HIDDEN]
    h2 = (jnp.dot(h1.astype(jnp.bfloat16), w2,
                  preferred_element_type=jnp.float32)
          * s2_ref[...] + b2_ref[...])                            # [B, HIDDEN]
    h2 = jnp.maximum(h2, 0.0)

    # Linear 3 (out_features=1): broadcast multiply + lane reduction instead of
    # a degenerate N=1 MXU matmul.
    q_ref[...] = (jnp.sum(h2 * w3_ref[...], axis=-1, keepdims=True)
                  + b3_ref[...])                                  # [B, 1]


def ae_critic_forward(state, action, goal, enc_params, q_params):
    B = state.shape[0]
    state_flat = state.reshape(B, -1).astype(jnp.bfloat16)        # row-major (C,H,W)
    F = state_flat.shape[1]
    ag = jnp.concatenate(
        [action.astype(jnp.float32), goal.astype(jnp.float32)], axis=1)   # [B, 8]

    sq = pl.Squeezed()   # squeeze the per-head leading dim (no in-kernel [0] slice)

    q_both = pl.pallas_call(
        _ae_critic_kernel,
        out_shape=jax.ShapeDtypeStruct((2, B, 1), jnp.float32),
        grid_spec=pltpu.PrefetchScalarGridSpec(
            num_scalar_prefetch=0,
            grid=(2,),                                            # head index
            in_specs=[
                pl.BlockSpec((B, F), lambda h: (0, 0)),                   # state_flat
                pl.BlockSpec((F, LATENT), lambda h: (0, 0)),              # w_enc
                pl.BlockSpec((1, LATENT), lambda h: (0, 0)),              # b_enc
                pl.BlockSpec((B, AG_DIM), lambda h: (0, 0)),              # action|goal
                pl.BlockSpec((sq, LATENT, HIDDEN), lambda h: (h, 0, 0)),  # w1z  (bf16)
                pl.BlockSpec((sq, AG_DIM, HIDDEN), lambda h: (h, 0, 0)),  # w1ag (f32)
                pl.BlockSpec((sq, 1, HIDDEN), lambda h: (h, 0, 0)),       # b1
                pl.BlockSpec((sq, 1, HIDDEN), lambda h: (h, 0, 0)),       # gamma
                pl.BlockSpec((sq, 1, HIDDEN), lambda h: (h, 0, 0)),       # beta
                pl.BlockSpec((sq, HIDDEN, HIDDEN), lambda h: (h, 0, 0)),  # w2 (int8)
                pl.BlockSpec((sq, 1, HIDDEN), lambda h: (h, 0, 0)),       # s2 scale
                pl.BlockSpec((sq, 1, HIDDEN), lambda h: (h, 0, 0)),       # b2
                pl.BlockSpec((sq, 1, HIDDEN), lambda h: (h, 0, 0)),       # w3 (row)
                pl.BlockSpec((sq, 1, 1), lambda h: (h, 0, 0)),            # b3
            ],
            out_specs=pl.BlockSpec((sq, B, 1), lambda h: (h, 0, 0)),
        ),
        compiler_params=pltpu.CompilerParams(
            dimension_semantics=("parallel",),    # heads independent -> both TCs on v7x
            vmem_limit_bytes=24 << 20,            # footprint ~3 MiB double-buffered
        ),
    )(state_flat, enc_params["w"], enc_params["b"], ag,
      q_params["w1z"], q_params["w1ag"], q_params["b1"],
      q_params["gamma"], q_params["beta"],
      q_params["w2_q"], q_params["s2"], q_params["b2"],
      q_params["w3"], q_params["b3"])
    return q_both[0], q_both[1]


# ---------------------------------------------------------------------------
# Deterministic parameter init (w1z/w_enc bf16, w2 int8 + per-channel scale)
# ---------------------------------------------------------------------------
def init_params(key, feat_dim):
    ks = jax.random.split(key, 11)
    enc_params = {
        "w": (0.02 * jax.random.normal(ks[0], (feat_dim, LATENT), jnp.float32)
              ).astype(jnp.bfloat16),
        "b": 0.01 * jax.random.normal(ks[1], (1, LATENT), jnp.float32),
    }
    # int8 per-output-channel symmetric quantization of w2.
    w2_f32 = 0.02 * jax.random.normal(ks[7], (2, HIDDEN, HIDDEN), jnp.float32)
    s2 = jnp.max(jnp.abs(w2_f32), axis=1, keepdims=True) / 127.0          # (2,1,H)
    w2_q = jnp.round(w2_f32 / s2).astype(jnp.int8)                        # (2,H,H)
    q_params = {
        "w1z": (0.05 * jax.random.normal(ks[2], (2, LATENT, HIDDEN), jnp.float32)
                ).astype(jnp.bfloat16),
        "w1ag": 0.05 * jax.random.normal(ks[3], (2, AG_DIM, HIDDEN), jnp.float32),
        "b1": 0.05 * jax.random.normal(ks[4], (2, 1, HIDDEN), jnp.float32),
        "gamma": 1.0 + 0.1 * jax.random.normal(ks[5], (2, 1, HIDDEN), jnp.float32),
        "beta": 0.1 * jax.random.normal(ks[6], (2, 1, HIDDEN), jnp.float32),
        "w2_q": w2_q,
        "s2": s2,
        "b2": 0.05 * jax.random.normal(ks[8], (2, 1, HIDDEN), jnp.float32),
        "w3": 0.02 * jax.random.normal(ks[9], (2, 1, HIDDEN), jnp.float32),
        "b3": 0.1 * jax.random.normal(ks[10], (2, 1, 1), jnp.float32),
    }
    return enc_params, q_params


# ---------------------------------------------------------------------------
# Pure-JAX reference (same bf16/int8 quantization, f32 accumulation)
# ---------------------------------------------------------------------------
def reference_forward(state, action, goal, enc_params, q_params):
    B = state.shape[0]
    x = state.reshape(B, -1).astype(jnp.bfloat16)
    z = jnp.tanh(jnp.dot(x, enc_params["w"],
                         preferred_element_type=jnp.float32) + enc_params["b"])
    ag = jnp.concatenate(
        [action.astype(jnp.float32), goal.astype(jnp.float32)], axis=1)

    def head(h):
        h1 = (jnp.dot(z.astype(jnp.bfloat16), q_params["w1z"][h],
                      preferred_element_type=jnp.float32)
              + jnp.sum(ag[:, :, None] * q_params["w1ag"][h][None, :, :], axis=1)
              + q_params["b1"][h])
        h1 = jnp.maximum(h1, 0.0)
        mean = jnp.mean(h1, axis=0, keepdims=True)
        var = jnp.mean((h1 - mean) ** 2, axis=0, keepdims=True)
        h1 = (h1 - mean) * jax.lax.rsqrt(var + BN_EPS)
        h1 = h1 * q_params["gamma"][h] + q_params["beta"][h]
        w2 = q_params["w2_q"][h].astype(jnp.float32).astype(jnp.bfloat16)
        h2 = (jnp.dot(h1.astype(jnp.bfloat16), w2,
                      preferred_element_type=jnp.float32)
              * q_params["s2"][h] + q_params["b2"][h])
        h2 = jnp.maximum(h2, 0.0)
        return (jnp.sum(h2 * q_params["w3"][h], axis=-1, keepdims=True)
                + q_params["b3"][h])

    return head(0), head(1)


if __name__ == "__main__":
    key = jax.random.PRNGKey(0)
    k_state, k_action, k_goal, k_param = jax.random.split(key, 4)

    B, C, H, W = 2, 4, 16, 16
    state = jax.random.normal(k_state, (B, C, H, W), jnp.float32)
    action = jax.random.normal(k_action, (B, ACTION_DIM), jnp.float32)
    goal = jax.random.normal(k_goal, (B, GOAL_DIM), jnp.float32)

    enc_params, q_params = init_params(k_param, C * H * W)

    fwd = jax.jit(ae_critic_forward)
    q1, q2 = fwd(state, action, goal, enc_params, q_params)
    jax.block_until_ready((q1, q2))

    r1, r2 = reference_forward(state, action, goal, enc_params, q_params)
    assert q1.shape == (B, 1) and q2.shape == (B, 1)
    assert jnp.allclose(q1, r1, atol=1e-2, rtol=1e-2), (q1, r1)
    assert jnp.allclose(q2, r2, atol=1e-2, rtol=1e-2), (q2, r2)

    print("KERNEL_OK")
</pallas_src>

<mosaic_0001>
module attributes {stable_mosaic.version = 11 : i64} {
  func.func @_ae_critic_kernel(%arg0: i32, %arg1: memref<2x1024xbf16, #tpu.memory_space<vmem>>, %arg2: memref<1024x32xbf16, #tpu.memory_space<vmem>>, %arg3: memref<1x32xf32, #tpu.memory_space<vmem>>, %arg4: memref<2x8xf32, #tpu.memory_space<vmem>>, %arg5: memref<1x32x1024xbf16, #tpu.memory_space<vmem>>, %arg6: memref<1x8x1024xf32, #tpu.memory_space<vmem>>, %arg7: memref<1x1x1024xf32, #tpu.memory_space<vmem>>, %arg8: memref<1x1x1024xf32, #tpu.memory_space<vmem>>, %arg9: memref<1x1x1024xf32, #tpu.memory_space<vmem>>, %arg10: memref<1x1024x1024xi8, #tpu.memory_space<vmem>>, %arg11: memref<1x1x1024xf32, #tpu.memory_space<vmem>>, %arg12: memref<1x1x1024xf32, #tpu.memory_space<vmem>>, %arg13: memref<1x1x1024xf32, #tpu.memory_space<vmem>>, %arg14: memref<1x1x1xf32, #tpu.memory_space<vmem>>, %arg15: memref<1x2x1xf32, #tpu.memory_space<vmem>>) attributes {dimension_semantics = [#tpu.dimension_semantics<parallel>], iteration_bounds = array<i64: 2>, scalar_prefetch = 0 : i64, scratch_operands = 0 : i64, tpu.core_type = #tpu.core_type<tc>, window_params = [{pipeline_mode = #tpu.pipeline_mode<synchronous>, transform_indices = @transform_0, window_bounds = array<i64: 2, 1024>}, {pipeline_mode = #tpu.pipeline_mode<synchronous>, transform_indices = @transform_1, window_bounds = array<i64: 1024, 32>}, {pipeline_mode = #tpu.pipeline_mode<synchronous>, transform_indices = @transform_2, window_bounds = array<i64: 1, 32>}, {pipeline_mode = #tpu.pipeline_mode<synchronous>, transform_indices = @transform_3, window_bounds = array<i64: 2, 8>}, {transform_indices = @transform_4, window_bounds = array<i64: 1, 32, 1024>}, {transform_indices = @transform_5, window_bounds = array<i64: 1, 8, 1024>}, {transform_indices = @transform_6, window_bounds = array<i64: 1, 1, 1024>}, {transform_indices = @transform_7, window_bounds = array<i64: 1, 1, 1024>}, {transform_indices = @transform_8, window_bounds = array<i64: 1, 1, 1024>}, {transform_indices = @transform_9, window_bounds = array<i64: 1, 1024, 1024>}, {transform_indices = @transform_10, window_bounds = array<i64: 1, 1, 1024>}, {transform_indices = @transform_11, window_bounds = array<i64: 1, 1, 1024>}, {transform_indices = @transform_12, window_bounds = array<i64: 1, 1, 1024>}, {transform_indices = @transform_13, window_bounds = array<i64: 1, 1, 1>}, {transform_indices = @transform_14, window_bounds = array<i64: 1, 2, 1>}]} {
    %c0 = arith.constant 0 : index
    %c0_0 = arith.constant 0 : index
    %0 = vector.load %arg1[%c0, %c0_0] : memref<2x1024xbf16, #tpu.memory_space<vmem>>, vector<2x1024xbf16>
    %c0_1 = arith.constant 0 : index
    %c0_2 = arith.constant 0 : index
    %1 = vector.load %arg2[%c0_1, %c0_2] : memref<1024x32xbf16, #tpu.memory_space<vmem>>, vector<1024x32xbf16>
    %cst = arith.constant dense<0.000000e+00> : vector<2x32xf32>
    %2 = tpu.matmul %0, %1, %cst {dimension_numbers = #tpu.dot_dimension_numbers<[1], [0], [0], [1], [0, 0, 1, 1], [], []>} : vector<2x1024xbf16>, vector<1024x32xbf16>, vector<2x32xf32> -> vector<2x32xf32>
    %c0_3 = arith.constant 0 : index
    %c0_4 = arith.constant 0 : index
    %3 = vector.load %arg3[%c0_3, %c0_4] : memref<1x32xf32, #tpu.memory_space<vmem>>, vector<1x32xf32>
    %4 = vector.broadcast %3 : vector<1x32xf32> to vector<2x32xf32>
    %5 = arith.addf %2, %4 : vector<2x32xf32>
    %6 = math.tanh %5 : vector<2x32xf32>
    %7 = arith.truncf %6 : vector<2x32xf32> to vector<2x32xbf16>
    %c0_5 = arith.constant 0 : index
    %c0_6 = arith.constant 0 : index
    %c0_7 = arith.constant 0 : index
    %8 = vector.load %arg5[%c0_5, %c0_6, %c0_7] : memref<1x32x1024xbf16, #tpu.memory_space<vmem>>, vector<1x32x1024xbf16>
    %9 = vector.shape_cast %8 : vector<1x32x1024xbf16> to vector<32x1024xbf16>
    %cst_8 = arith.constant dense<0.000000e+00> : vector<2x1024xf32>
    %10 = tpu.matmul %7, %9, %cst_8 {dimension_numbers = #tpu.dot_dimension_numbers<[1], [0], [0], [1], [0, 0, 1, 1], [], []>} : vector<2x32xbf16>, vector<32x1024xbf16>, vector<2x1024xf32> -> vector<2x1024xf32>
    %c0_9 = arith.constant 0 : index
    %c0_10 = arith.constant 0 : index
    %c0_11 = arith.constant 0 : index
    %11 = vector.load %arg7[%c0_9, %c0_10, %c0_11] : memref<1x1x1024xf32, #tpu.memory_space<vmem>>, vector<1x1x1024xf32>
    %12 = vector.shape_cast %11 : vector<1x1x1024xf32> to vector<1x1024xf32>
    %13 = vector.broadcast %12 : vector<1x1024xf32> to vector<2x1024xf32>
    %14 = arith.addf %10, %13 : vector<2x1024xf32>
    %c0_12 = arith.constant 0 : index
    %c0_13 = arith.constant 0 : index
    %15 = vector.load %arg4[%c0_12, %c0_13] : memref<2x8xf32, #tpu.memory_space<vmem>>, vector<2x8xf32>
    %c0_14 = arith.constant 0 : index
    %c0_15 = arith.constant 0 : index
    %c0_16 = arith.constant 0 : index
    %16 = vector.load %arg6[%c0_14, %c0_15, %c0_16] : memref<1x8x1024xf32, #tpu.memory_space<vmem>>, vector<1x8x1024xf32>
    %17 = vector.shape_cast %16 : vector<1x8x1024xf32> to vector<8x1024xf32>
    %18 = vector.extract_strided_slice %15 {offsets = [0, 0], sizes = [2, 1], strides = [1, 1]} : vector<2x8xf32> to vector<2x1xf32>
    %19 = vector.extract_strided_slice %17 {offsets = [0, 0], sizes = [1, 1024], strides = [1, 1]} : vector<8x1024xf32> to vector<1x1024xf32>
    %20 = vector.broadcast %18 : vector<2x1xf32> to vector<2x1024xf32>
    %21 = vector.broadcast %19 : vector<1x1024xf32> to vector<2x1024xf32>
    %22 = arith.mulf %20, %21 : vector<2x1024xf32>
    %23 = arith.addf %14, %22 : vector<2x1024xf32>
    %24 = vector.extract_strided_slice %15 {offsets = [0, 1], sizes = [2, 1], strides = [1, 1]} : vector<2x8xf32> to vector<2x1xf32>
    %25 = vector.extract_strided_slice %17 {offsets = [1, 0], sizes = [1, 1024], strides = [1, 1]} : vector<8x1024xf32> to vector<1x1024xf32>
    %26 = vector.broadcast %24 : vector<2x1xf32> to vector<2x1024xf32>
    %27 = vector.broadcast %25 : vector<1x1024xf32> to vector<2x1024xf32>
    %28 = arith.mulf %26, %27 : vector<2x1024xf32>
    %29 = arith.addf %23, %28 : vector<2x1024xf32>
    %30 = vector.extract_strided_slice %15 {offsets = [0, 2], sizes = [2, 1], strides = [1, 1]} : vector<2x8xf32> to vector<2x1xf32>
    %31 = vector.extract_strided_slice %17 {offsets = [2, 0], sizes = [1, 1024], strides = [1, 1]} : vector<8x1024xf32> to vector<1x1024xf32>
    %32 = vector.broadcast %30 : vector<2x1xf32> to vector<2x1024xf32>
    %33 = vector.broadcast %31 : vector<1x1024xf32> to vector<2x1024xf32>
    %34 = arith.mulf %32, %33 : vector<2x1024xf32>
    %35 = arith.addf %29, %34 : vector<2x1024xf32>
    %36 = vector.extract_strided_slice %15 {offsets = [0, 3], sizes = [2, 1], strides = [1, 1]} : vector<2x8xf32> to vector<2x1xf32>
    %37 = vector.extract_strided_slice %17 {offsets = [3, 0], sizes = [1, 1024], strides = [1, 1]} : vector<8x1024xf32> to vector<1x1024xf32>
    %38 = vector.broadcast %36 : vector<2x1xf32> to vector<2x1024xf32>
    %39 = vector.broadcast %37 : vector<1x1024xf32> to vector<2x1024xf32>
    %40 = arith.mulf %38, %39 : vector<2x1024xf32>
    %41 = arith.addf %35, %40 : vector<2x1024xf32>
    %42 = vector.extract_strided_slice %15 {offsets = [0, 4], sizes = [2, 1], strides = [1, 1]} : vector<2x8xf32> to vector<2x1xf32>
    %43 = vector.extract_strided_slice %17 {offsets = [4, 0], sizes = [1, 1024], strides = [1, 1]} : vector<8x1024xf32> to vector<1x1024xf32>
    %44 = vector.broadcast %42 : vector<2x1xf32> to vector<2x1024xf32>
    %45 = vector.broadcast %43 : vector<1x1024xf32> to vector<2x1024xf32>
    %46 = arith.mulf %44, %45 : vector<2x1024xf32>
    %47 = arith.addf %41, %46 : vector<2x1024xf32>
    %48 = vector.extract_strided_slice %15 {offsets = [0, 5], sizes = [2, 1], strides = [1, 1]} : vector<2x8xf32> to vector<2x1xf32>
    %49 = vector.extract_strided_slice %17 {offsets = [5, 0], sizes = [1, 1024], strides = [1, 1]} : vector<8x1024xf32> to vector<1x1024xf32>
    %50 = vector.broadcast %48 : vector<2x1xf32> to vector<2x1024xf32>
    %51 = vector.broadcast %49 : vector<1x1024xf32> to vector<2x1024xf32>
    %52 = arith.mulf %50, %51 : vector<2x1024xf32>
    %53 = arith.addf %47, %52 : vector<2x1024xf32>
    %54 = vector.extract_strided_slice %15 {offsets = [0, 6], sizes = [2, 1], strides = [1, 1]} : vector<2x8xf32> to vector<2x1xf32>
    %55 = vector.extract_strided_slice %17 {offsets = [6, 0], sizes = [1, 1024], strides = [1, 1]} : vector<8x1024xf32> to vector<1x1024xf32>
    %56 = vector.broadcast %54 : vector<2x1xf32> to vector<2x1024xf32>
    %57 = vector.broadcast %55 : vector<1x1024xf32> to vector<2x1024xf32>
    %58 = arith.mulf %56, %57 : vector<2x1024xf32>
    %59 = arith.addf %53, %58 : vector<2x1024xf32>
    %60 = vector.extract_strided_slice %15 {offsets = [0, 7], sizes = [2, 1], strides = [1, 1]} : vector<2x8xf32> to vector<2x1xf32>
    %61 = vector.extract_strided_slice %17 {offsets = [7, 0], sizes = [1, 1024], strides = [1, 1]} : vector<8x1024xf32> to vector<1x1024xf32>
    %62 = vector.broadcast %60 : vector<2x1xf32> to vector<2x1024xf32>
    %63 = vector.broadcast %61 : vector<1x1024xf32> to vector<2x1024xf32>
    %64 = arith.mulf %62, %63 : vector<2x1024xf32>
    %65 = arith.addf %59, %64 : vector<2x1024xf32>
    %cst_17 = arith.constant 0.000000e+00 : f32
    %66 = vector.broadcast %cst_17 : f32 to vector<2x1024xf32>
    %67 = arith.maximumf %65, %66 : vector<2x1024xf32>
    %cst_18 = arith.constant dense<0.000000e+00> : vector<1024xf32>
    %68 = vector.multi_reduction <add>, %67, %cst_18 [0] : vector<2x1024xf32> to vector<1024xf32>
    %69 = vector.shape_cast %68 : vector<1024xf32> to vector<1x1024xf32>
    %cst_19 = arith.constant 2.000000e+00 : f32
    %70 = vector.broadcast %cst_19 : f32 to vector<1x1024xf32>
    %71 = arith.divf %69, %70 : vector<1x1024xf32>
    %72 = vector.broadcast %71 : vector<1x1024xf32> to vector<2x1024xf32>
    %73 = arith.subf %67, %72 : vector<2x1024xf32>
    %74 = arith.mulf %73, %73 : vector<2x1024xf32>
    %cst_20 = arith.constant dense<0.000000e+00> : vector<1024xf32>
    %75 = vector.multi_reduction <add>, %74, %cst_20 [0] : vector<2x1024xf32> to vector<1024xf32>
    %76 = vector.shape_cast %75 : vector<1024xf32> to vector<1x1024xf32>
    %cst_21 = arith.constant 2.000000e+00 : f32
    %77 = vector.broadcast %cst_21 : f32 to vector<1x1024xf32>
    %78 = arith.divf %76, %77 : vector<1x1024xf32>
    %79 = vector.broadcast %71 : vector<1x1024xf32> to vector<2x1024xf32>
    %80 = arith.subf %67, %79 : vector<2x1024xf32>
    %cst_22 = arith.constant 9.99999974E-6 : f32
    %81 = vector.broadcast %cst_22 : f32 to vector<1x1024xf32>
    %82 = arith.addf %78, %81 : vector<1x1024xf32>
    %83 = math.rsqrt %82 : vector<1x1024xf32>
    %84 = vector.broadcast %83 : vector<1x1024xf32> to vector<2x1024xf32>
    %85 = arith.mulf %80, %84 : vector<2x1024xf32>
    %c0_23 = arith.constant 0 : index
    %c0_24 = arith.constant 0 : index
    %c0_25 = arith.constant 0 : index
    %86 = vector.load %arg8[%c0_23, %c0_24, %c0_25] : memref<1x1x1024xf32, #tpu.memory_space<vmem>>, vector<1x1x1024xf32>
    %87 = vector.shape_cast %86 : vector<1x1x1024xf32> to vector<1x1024xf32>
    %88 = vector.broadcast %87 : vector<1x1024xf32> to vector<2x1024xf32>
    %89 = arith.mulf %85, %88 : vector<2x1024xf32>
    %c0_26 = arith.constant 0 : index
    %c0_27 = arith.constant 0 : index
    %c0_28 = arith.constant 0 : index
    %90 = vector.load %arg9[%c0_26, %c0_27, %c0_28] : memref<1x1x1024xf32, #tpu.memory_space<vmem>>, vector<1x1x1024xf32>
    %91 = vector.shape_cast %90 : vector<1x1x1024xf32> to vector<1x1024xf32>
    %92 = vector.broadcast %91 : vector<1x1024xf32> to vector<2x1024xf32>
    %93 = arith.addf %89, %92 : vector<2x1024xf32>
    %c0_29 = arith.constant 0 : index
    %c0_30 = arith.constant 0 : index
    %c0_31 = arith.constant 0 : index
    %94 = vector.load %arg10[%c0_29, %c0_30, %c0_31] : memref<1x1024x1024xi8, #tpu.memory_space<vmem>>, vector<1x1024x1024xi8>
    %95 = vector.shape_cast %94 : vector<1x1024x1024xi8> to vector<1024x1024xi8>
    %96 = arith.sitofp %95 : vector<1024x1024xi8> to vector<1024x1024xf32>
    %97 = arith.truncf %96 : vector<1024x1024xf32> to vector<1024x1024xbf16>
    %98 = arith.truncf %93 : vector<2x1024xf32> to vector<2x1024xbf16>
    %cst_32 = arith.constant dense<0.000000e+00> : vector<2x1024xf32>
    %99 = tpu.matmul %98, %97, %cst_32 {dimension_numbers = #tpu.dot_dimension_numbers<[1], [0], [0], [1], [0, 0, 1, 1], [], []>} : vector<2x1024xbf16>, vector<1024x1024xbf16>, vector<2x1024xf32> -> vector<2x1024xf32>
    %c0_33 = arith.constant 0 : index
    %c0_34 = arith.constant 0 : index
    %c0_35 = arith.constant 0 : index
    %100 = vector.load %arg11[%c0_33, %c0_34, %c0_35] : memref<1x1x1024xf32, #tpu.memory_space<vmem>>, vector<1x1x1024xf32>
    %101 = vector.shape_cast %100 : vector<1x1x1024xf32> to vector<1x1024xf32>
    %102 = vector.broadcast %101 : vector<1x1024xf32> to vector<2x1024xf32>
    %103 = arith.mulf %99, %102 : vector<2x1024xf32>
    %c0_36 = arith.constant 0 : index
    %c0_37 = arith.constant 0 : index
    %c0_38 = arith.constant 0 : index
    %104 = vector.load %arg12[%c0_36, %c0_37, %c0_38] : memref<1x1x1024xf32, #tpu.memory_space<vmem>>, vector<1x1x1024xf32>
    %105 = vector.shape_cast %104 : vector<1x1x1024xf32> to vector<1x1024xf32>
    %106 = vector.broadcast %105 : vector<1x1024xf32> to vector<2x1024xf32>
    %107 = arith.addf %103, %106 : vector<2x1024xf32>
    %cst_39 = arith.constant 0.000000e+00 : f32
    %108 = vector.broadcast %cst_39 : f32 to vector<2x1024xf32>
    %109 = arith.maximumf %107, %108 : vector<2x1024xf32>
    %c0_40 = arith.constant 0 : index
    %c0_41 = arith.constant 0 : index
    %c0_42 = arith.constant 0 : index
    %110 = vector.load %arg13[%c0_40, %c0_41, %c0_42] : memref<1x1x1024xf32, #tpu.memory_space<vmem>>, vector<1x1x1024xf32>
    %111 = vector.shape_cast %110 : vector<1x1x1024xf32> to vector<1x1024xf32>
    %112 = vector.broadcast %111 : vector<1x1024xf32> to vector<2x1024xf32>
    %113 = arith.mulf %109, %112 : vector<2x1024xf32>
    %cst_43 = arith.constant dense<0.000000e+00> : vector<2xf32>
    %114 = vector.multi_reduction <add>, %113, %cst_43 [1] : vector<2x1024xf32> to vector<2xf32>
    %115 = vector.shape_cast %114 : vector<2xf32> to vector<2x1xf32>
    %c0_44 = arith.constant 0 : index
    %c0_45 = arith.constant 0 : index
    %c0_46 = arith.constant 0 : index
    %116 = vector.load %arg14[%c0_44, %c0_45, %c0_46] : memref<1x1x1xf32, #tpu.memory_space<vmem>>, vector<1x1x1xf32>
    %117 = vector.shape_cast %116 : vector<1x1x1xf32> to vector<1x1xf32>
    %118 = vector.broadcast %117 : vector<1x1xf32> to vector<2x1xf32>
    %119 = arith.addf %115, %118 : vector<2x1xf32>
    %c0_47 = arith.constant 0 : index
    %c0_48 = arith.constant 0 : index
    %c0_49 = arith.constant 0 : index
    %120 = vector.load %arg15[%c0_47, %c0_48, %c0_49] : memref<1x2x1xf32, #tpu.memory_space<vmem>>, vector<1x2x1xf32>
    %121 = vector.shape_cast %120 : vector<1x2x1xf32> to vector<2x1xf32>
    %122 = vector.shape_cast %119 : vector<2x1xf32> to vector<1x2x1xf32>
    tpu.vector_store %arg15[%c0_47, %c0_48, %c0_49], %122 {strides = array<i32>} : memref<1x2x1xf32, #tpu.memory_space<vmem>>, vector<1x2x1xf32>,
    return
  }
  func.func @transform_0(%arg0: i32) -> (i32, i32) {
    %c0_i32 = arith.constant 0 : i32
    %c0_i32_0 = arith.constant 0 : i32
    %c0_i32_1 = arith.constant 0 : i32
    return %c0_i32, %c0_i32_0 : i32, i32
  }
  func.func @transform_1(%arg0: i32) -> (i32, i32) {
    %c0_i32 = arith.constant 0 : i32
    %c0_i32_0 = arith.constant 0 : i32
    %c0_i32_1 = arith.constant 0 : i32
    return %c0_i32, %c0_i32_0 : i32, i32
  }
  func.func @transform_2(%arg0: i32) -> (i32, i32) {
    %c0_i32 = arith.constant 0 : i32
    %c0_i32_0 = arith.constant 0 : i32
    %c0_i32_1 = arith.constant 0 : i32
    return %c0_i32, %c0_i32_0 : i32, i32
  }
  func.func @transform_3(%arg0: i32) -> (i32, i32) {
    %c0_i32 = arith.constant 0 : i32
    %c0_i32_0 = arith.constant 0 : i32
    %c0_i32_1 = arith.constant 0 : i32
    return %c0_i32, %c0_i32_0 : i32, i32
  }
  func.func @transform_4(%arg0: i32) -> (i32, i32, i32) {
    %c0_i32 = arith.constant 0 : i32
    %c0_i32_0 = arith.constant 0 : i32
    %c0_i32_1 = arith.constant 0 : i32
    return %arg0, %c0_i32, %c0_i32_0 : i32, i32, i32
  }
  func.func @transform_5(%arg0: i32) -> (i32, i32, i32) {
    %c0_i32 = arith.constant 0 : i32
    %c0_i32_0 = arith.constant 0 : i32
    %c0_i32_1 = arith.constant 0 : i32
    return %arg0, %c0_i32, %c0_i32_0 : i32, i32, i32
  }
  func.func @transform_6(%arg0: i32) -> (i32, i32, i32) {
    %c0_i32 = arith.constant 0 : i32
    %c0_i32_0 = arith.constant 0 : i32
    %c0_i32_1 = arith.constant 0 : i32
    return %arg0, %c0_i32, %c0_i32_0 : i32, i32, i32
  }
  func.func @transform_7(%arg0: i32) -> (i32, i32, i32) {
    %c0_i32 = arith.constant 0 : i32
    %c0_i32_0 = arith.constant 0 : i32
    %c0_i32_1 = arith.constant 0 : i32
    return %arg0, %c0_i32, %c0_i32_0 : i32, i32, i32
  }
  func.func @transform_8(%arg0: i32) -> (i32, i32, i32) {
    %c0_i32 = arith.constant 0 : i32
    %c0_i32_0 = arith.constant 0 : i32
    %c0_i32_1 = arith.constant 0 : i32
    return %arg0, %c0_i32, %c0_i32_0 : i32, i32, i32
  }
  func.func @transform_9(%arg0: i32) -> (i32, i32, i32) {
    %c0_i32 = arith.constant 0 : i32
    %c0_i32_0 = arith.constant 0 : i32
    %c0_i32_1 = arith.constant 0 : i32
    return %arg0, %c0_i32, %c0_i32_0 : i32, i32, i32
  }
  func.func @transform_10(%arg0: i32) -> (i32, i32, i32) {
    %c0_i32 = arith.constant 0 : i32
    %c0_i32_0 = arith.constant 0 : i32
    %c0_i32_1 = arith.constant 0 : i32
    return %arg0, %c0_i32, %c0_i32_0 : i32, i32, i32
  }
  func.func @transform_11(%arg0: i32) -> (i32, i32, i32) {
    %c0_i32 = arith.constant 0 : i32
    %c0_i32_0 = arith.constant 0 : i32
    %c0_i32_1 = arith.constant 0 : i32
    return %arg0, %c0_i32, %c0_i32_0 : i32, i32, i32
  }
  func.func @transform_12(%arg0: i32) -> (i32, i32, i32) {
    %c0_i32 = arith.constant 0 : i32
    %c0_i32_0 = arith.constant 0 : i32
    %c0_i32_1 = arith.constant 0 : i32
    return %arg0, %c0_i32, %c0_i32_0 : i32, i32, i32
  }
  func.func @transform_13(%arg0: i32) -> (i32, i32, i32) {
    %c0_i32 = arith.constant 0 : i32
    %c0_i32_0 = arith.constant 0 : i32
    %c0_i32_1 = arith.constant 0 : i32
    return %arg0, %c0_i32, %c0_i32_0 : i32, i32, i32
  }
  func.func @transform_14(%arg0: i32) -> (i32, i32, i32) {
    %c0_i32 = arith.constant 0 : i32
    %c0_i32_0 = arith.constant 0 : i32
    %c0_i32_1 = arith.constant 0 : i32
    return %arg0, %c0_i32, %c0_i32_0 : i32, i32, i32
  }
}

</mosaic_0001>

<llo_original>
// kernel: ae_critic_forward.1
$region0: #{ae_critic_forward.1}
  #allocation0 [shape = 'u32[]', space=smem, size = 0x4, offset = 0x4, fixed_abs, tag = 'smem constant byte address 0x4 - core index']
  #allocation1 [shape = 'u32[144,128]{1,0:T(1,128)}', space=vmem, size = 0x12000, scoped, tag = 'internal scratch']
  %s0 = inlined_call_operand.vmem [shape: bf16[2,1024], index: 0, kind: input, shape index: {}]
  %s1 = inlined_call_operand.vmem [shape: bf16[1024,32], index: 1, kind: input, shape index: {}]
  %s2 = inlined_call_operand.hbm [shape: f32[1,32], index: 2, kind: input, shape index: {}]
  %s3 = inlined_call_operand.vmem [shape: f32[2,8], index: 3, kind: input, shape index: {}]
  %s4 = inlined_call_operand.hbm [shape: bf16[2,32,1024], index: 4, kind: input, shape index: {}]
  %s5 = inlined_call_operand.hbm [shape: f32[2,8,1024], index: 5, kind: input, shape index: {}]
  %s6 = inlined_call_operand.hbm [shape: f32[2,1,1024], index: 6, kind: input, shape index: {}]
  %s7 = inlined_call_operand.hbm [shape: f32[2,1,1024], index: 7, kind: input, shape index: {}]
  %s8 = inlined_call_operand.hbm [shape: f32[2,1,1024], index: 8, kind: input, shape index: {}]
  %s9 = inlined_call_operand.hbm [shape: s8[2,1024,1024], index: 9, kind: input, shape index: {}]
  %s10 = inlined_call_operand.hbm [shape: f32[2,1,1024], index: 10, kind: input, shape index: {}]
  %s11 = inlined_call_operand.hbm [shape: f32[2,1,1024], index: 11, kind: input, shape index: {}]
  %s12 = inlined_call_operand.hbm [shape: f32[2,1,1024], index: 12, kind: input, shape index: {}]
  %s13 = inlined_call_operand.vmem [shape: f32[2,1,1], index: 13, kind: input, shape index: {}]
  %s14 = inlined_call_operand.vmem [shape: f32[2,2,1], index: 14, kind: output, shape index: {}]
  %s15 = sld [smem:[#allocation0]]
  $region129: #{ae_critic_forward.1} parent=0
    _
  %s17 = ssub.s32 1, %s15
  %s18 = scalar_select 0, %s17, %s15
  $region1: #{ae_critic_forward.1} parent=0
    #allocation2 [shape = 'u8[512]{0}', space=vmem, size = 0x400, scoped, tag = 'input window, operand 2, single buffered']
    #allocation3 [shape = 's32[2]{0}', space=sflag, size = 0x8, scoped, tag = 'scoped memory for ae_critic_forward.1']
    #allocation4 [shape = 'u8[131072]{0}', space=vmem, size = 0x20000, scoped, tag = 'input window, operand 4']
    #allocation5 [shape = 's32[2]{0}', space=sflag, size = 0x8, scoped, tag = 'scoped memory for ae_critic_forward.1']
    #allocation6 [shape = 'u8[65536]{0}', space=vmem, size = 0x10000, scoped, tag = 'input window, operand 5']
    #allocation7 [shape = 'u8[8192]{0}', space=vmem, size = 0x2000, scoped, tag = 'input window, operand 6']
    #allocation8 [shape = 's32[2]{0}', space=sflag, size = 0x8, scoped, tag = 'scoped memory for ae_critic_forward.1']
    #allocation9 [shape = 'u8[8192]{0}', space=vmem, size = 0x2000, scoped, tag = 'input window, operand 7']
    #allocation10 [shape = 'u8[8192]{0}', space=vmem, size = 0x2000, scoped, tag = 'input window, operand 8']
    #allocation11 [shape = 's32[2]{0}', space=sflag, size = 0x8, scoped, tag = 'scoped memory for ae_critic_forward.1']
    #allocation12 [shape = 'u8[2097152]{0}', space=vmem, size = 0x200000, scoped, tag = 'input window, operand 9']
    #allocation13 [shape = 'u8[8192]{0}', space=vmem, size = 0x2000, scoped, tag = 'input window, operand 10']
    #allocation14 [shape = 's32[2]{0}', space=sflag, size = 0x8, scoped, tag = 'scoped memory for ae_critic_forward.1']
    #allocation15 [shape = 'u8[8192]{0}', space=vmem, size = 0x2000, scoped, tag = 'input window, operand 11']
    #allocation16 [shape = 'u8[8192]{0}', space=vmem, size = 0x2000, scoped, tag = 'input window, operand 12']
    #allocation17 [shape = 's32[2]{0}', space=sflag, size = 0x8, scoped, tag = 'scoped memory for ae_critic_forward.1']
    %19 = vsyncpa [#allocation3], 0
    %20 = vsyncpa [#allocation5], 0
    %s21 = scalar_lea.sflag [#allocation5], 1
    %22 = vsyncpa %s21, 0
    %23 = vsyncpa [#allocation8], 0
    %s24 = scalar_lea.sflag [#allocation8], 1
    %25 = vsyncpa %s24, 0
    %26 = vsyncpa [#allocation11], 0
    %s27 = scalar_lea.sflag [#allocation11], 1
    %28 = vsyncpa %s27, 0
    %29 = vsyncpa [#allocation14], 0
    %s30 = scalar_lea.sflag [#allocation14], 1
    %31 = vsyncpa %s30, 0
    %32 = vsyncpa [#allocation17], 0
    %s33 = scalar_lea.sflag [#allocation17], 1
    %34 = vsyncpa %s33, 0
    loop: start=0, step=1, limit=4
    $region2: #{ae_critic_forward.1} parent=1 // loop_pre_header
      _
    $region3: #{ae_critic_forward.1} parent=1 // loop_header
      %s36 = sphi 0, %s40
      %p37 = scmp.ge.s32.totalorder %s36, 4
      %s44 = sphi 0, %s44
      %s46 = sphi 0, %s44
      %s47 = sphi 0, %s46
      %s61 = sphi 0, %s47
      %s65 = sphi 0, %s65
      %s67 = sphi 0, %s65
      %s68 = sphi 0, %s67
      %s82 = sphi 0, %s68
      %s86 = sphi 0, %s86
      %s88 = sphi 0, %s86
      %s89 = sphi 0, %s88
      %s103 = sphi 0, %s89
      %s107 = sphi 0, %s107
      %s109 = sphi 0, %s107
      %s110 = sphi 0, %s109
      %s124 = sphi 0, %s110
      %s130 = sphi 0, %s132
      %s133 = sphi 0, %s130
      %s134 = sphi 0, %s133
      %s150 = sphi 0, %s134
      %s156 = sphi 0, %s158
      %s159 = sphi 0, %s156
      %s160 = sphi 0, %s159
      %s176 = sphi 0, %s160
      %s182 = sphi 0, %s184
      %s185 = sphi 0, %s182
      %s186 = sphi 0, %s185
      %s202 = sphi 0, %s186
      %s208 = sphi 0, %s210
      %s211 = sphi 0, %s208
      %s212 = sphi 0, %s211
      %s228 = sphi 0, %s212
      %s234 = sphi 0, %s236
      %s237 = sphi 0, %s234
      %s238 = sphi 0, %s237
      %s254 = sphi 0, %s238
      %s260 = sphi 0, %s262
      %s263 = sphi 0, %s260
      %s264 = sphi 0, %s263
      %s280 = sphi 0, %s264
      %s286 = sphi 0, %s288
      %s289 = sphi 0, %s286
      %s290 = sphi 0, %s289
      %s306 = sphi 0, %s290
      %s312 = sphi 0, %s314
      %s315 = sphi 0, %s312
      %s316 = sphi 0, %s315
      %s332 = sphi 0, %s316
      %s338 = sphi 0, %s340
      %s341 = sphi 0, %s338
      %s342 = sphi 0, %s341
      %s358 = sphi 0, %s342
      %s364 = sphi 0, %s366
      %s367 = sphi 0, %s364
      %s368 = sphi 0, %s367
      %s384 = sphi 0, %s368
      %s390 = sphi 0, %s392
      %s393 = sphi 0, %s390
      %s394 = sphi 0, %s393
      %s410 = sphi 0, %s394
    $region4: #{ae_critic_forward.1} parent=1 // loop_header_branch
      %39 = sbr.rel (%p37) target = $region8
    $region5: #{ae_critic_forward.1} parent=1 // loop_body
      %s41 = ssub.s32 %s36, 1
      %s42 = ssub.s32 %s36, 2
      %s43 = sadd.s32 %s36, 1
      %s45 = sadd.s32 %s44, 1
      %p48 = scmp.eq.s32.totalorder %s36, 1
      %p49 = scmp.ne.s32.totalorder %s44, %s46
      %p50 = scmp.eq.s32.totalorder %s36, 0
      %p51 = por %p49, %p50
      %p52 = scmp.ne.s32.totalorder %s44, %s46
      %p53 = scmp.eq.s32.totalorder %s41, 1
      %p54 = por %p52, %p53
      %p55 = scmp.ne.s32.totalorder %s46, %s47
      %p56 = scmp.eq.s32.totalorder %s41, 0
      %p57 = por %p55, %p56
      %p58 = scmp.ne.s32.totalorder %s46, %s47
      %p59 = scmp.eq.s32.totalorder %s42, 1
      %p60 = por %p58, %p59
      %p62 = scmp.ne.s32.totalorder %s47, %s61
      %p63 = scmp.eq.s32.totalorder %s42, 0
      %p64 = por %p62, %p63
      %s66 = sadd.s32 %s65, 1
      %p69 = scmp.eq.s32.totalorder %s36, 1
      %p70 = scmp.ne.s32.totalorder %s65, %s67
      %p71 = scmp.eq.s32.totalorder %s36, 0
      %p72 = por %p70, %p71
      %p73 = scmp.ne.s32.totalorder %s65, %s67
      %p74 = scmp.eq.s32.totalorder %s41, 1
      %p75 = por %p73, %p74
      %p76 = scmp.ne.s32.totalorder %s67, %s68
      %p77 = scmp.eq.s32.totalorder %s41, 0
      %p78 = por %p76, %p77
      %p79 = scmp.ne.s32.totalorder %s67, %s68
      %p80 = scmp.eq.s32.totalorder %s42, 1
      %p81 = por %p79, %p80
      %p83 = scmp.ne.s32.totalorder %s68, %s82
      %p84 = scmp.eq.s32.totalorder %s42, 0
      %p85 = por %p83, %p84
      %s87 = sadd.s32 %s86, 1
      %p90 = scmp.eq.s32.totalorder %s36, 1
      %p91 = scmp.ne.s32.totalorder %s86, %s88
      %p92 = scmp.eq.s32.totalorder %s36, 0
      %p93 = por %p91, %p92
      %p94 = scmp.ne.s32.totalorder %s86, %s88
      %p95 = scmp.eq.s32.totalorder %s41, 1
      %p96 = por %p94, %p95
      %p97 = scmp.ne.s32.totalorder %s88, %s89
      %p98 = scmp.eq.s32.totalorder %s41, 0
      %p99 = por %p97, %p98
      %p100 = scmp.ne.s32.totalorder %s88, %s89
      %p101 = scmp.eq.s32.totalorder %s42, 1
      %p102 = por %p100, %p101
      %p104 = scmp.ne.s32.totalorder %s89, %s103
      %p105 = scmp.eq.s32.totalorder %s42, 0
      %p106 = por %p104, %p105
      %s108 = sadd.s32 %s107, 1
      %p111 = scmp.eq.s32.totalorder %s36, 1
      %p112 = scmp.ne.s32.totalorder %s107, %s109
      %p113 = scmp.eq.s32.totalorder %s36, 0
      %p114 = por %p112, %p113
      %p115 = scmp.ne.s32.totalorder %s107, %s109
      %p116 = scmp.eq.s32.totalorder %s41, 1
      %p117 = por %p115, %p116
      %p118 = scmp.ne.s32.totalorder %s109, %s110
      %p119 = scmp.eq.s32.totalorder %s41, 0
      %p120 = por %p118, %p119
      %p121 = scmp.ne.s32.totalorder %s109, %s110
      %p122 = scmp.eq.s32.totalorder %s42, 1
      %p123 = por %p121, %p122
      %p125 = scmp.ne.s32.totalorder %s110, %s124
      %p126 = scmp.eq.s32.totalorder %s42, 0
      %p127 = por %p125, %p126
      %s128 = ssub.s32 %s36, %s43
      %p129 = scmp.eq.s32.totalorder %s128, 0
      %s131 = sadd.s32 %s130, 1
      %s132 = scalar_select %p129, %s130, %s131
      %p135 = pneg %p129
      %p136 = scmp.eq.s32.totalorder %s36, 1
      %p137 = por %p135, %p136
      %p138 = scmp.ne.s32.totalorder %s130, %s133
      %p139 = scmp.eq.s32.totalorder %s36, 0
      %p140 = por %p138, %p139
      %p141 = scmp.ne.s32.totalorder %s130, %s133
      %p142 = scmp.eq.s32.totalorder %s41, 1
      %p143 = por %p141, %p142
      %p144 = scmp.ne.s32.totalorder %s133, %s134
      %p145 = scmp.eq.s32.totalorder %s41, 0
      %p146 = por %p144, %p145
      %p147 = scmp.ne.s32.totalorder %s133, %s134
      %p148 = scmp.eq.s32.totalorder %s42, 1
      %p149 = por %p147, %p148
      %p151 = scmp.ne.s32.totalorder %s134, %s150
      %p152 = scmp.eq.s32.totalorder %s42, 0
      %p153 = por %p151, %p152
      %s154 = ssub.s32 %s36, %s43
      %p155 = scmp.eq.s32.totalorder %s154, 0
      %s157 = sadd.s32 %s156, 1
      %s158 = scalar_select %p155, %s156, %s157
      %p161 = pneg %p155
      %p162 = scmp.eq.s32.totalorder %s36, 1
      %p163 = por %p161, %p162
      %p164 = scmp.ne.s32.totalorder %s156, %s159
      %p165 = scmp.eq.s32.totalorder %s36, 0
      %p166 = por %p164, %p165
      %p167 = scmp.ne.s32.totalorder %s156, %s159
      %p168 = scmp.eq.s32.totalorder %s41, 1
      %p169 = por %p167, %p168
      %p170 = scmp.ne.s32.totalorder %s159, %s160
      %p171 = scmp.eq.s32.totalorder %s41, 0
      %p172 = por %p170, %p171
      %p173 = scmp.ne.s32.totalorder %s159, %s160
      %p174 = scmp.eq.s32.totalorder %s42, 1
      %p175 = por %p173, %p174
      %p177 = scmp.ne.s32.totalorder %s160, %s176
      %p178 = scmp.eq.s32.totalorder %s42, 0
      %p179 = por %p177, %p178
      %s180 = ssub.s32 %s36, %s43
      %p181 = scmp.eq.s32.totalorder %s180, 0
      %s183 = sadd.s32 %s182, 1
      %s184 = scalar_select %p181, %s182, %s183
      %p187 = pneg %p181
      %p188 = scmp.eq.s32.totalorder %s36, 1
      %p189 = por %p187, %p188
      %p190 = scmp.ne.s32.totalorder %s182, %s185
      %p191 = scmp.eq.s32.totalorder %s36, 0
      %p192 = por %p190, %p191
      %p193 = scmp.ne.s32.totalorder %s182, %s185
      %p194 = scmp.eq.s32.totalorder %s41, 1
      %p195 = por %p193, %p194
      %p196 = scmp.ne.s32.totalorder %s185, %s186
      %p197 = scmp.eq.s32.totalorder %s41, 0
      %p198 = por %p196, %p197
      %p199 = scmp.ne.s32.totalorder %s185, %s186
      %p200 = scmp.eq.s32.totalorder %s42, 1
      %p201 = por %p199, %p200
      %p203 = scmp.ne.s32.totalorder %s186, %s202
      %p204 = scmp.eq.s32.totalorder %s42, 0
      %p205 = por %p203, %p204
      %s206 = ssub.s32 %s36, %s43
      %p207 = scmp.eq.s32.totalorder %s206, 0
      %s209 = sadd.s32 %s208, 1
      %s210 = scalar_select %p207, %s208, %s209
      %p213 = pneg %p207
      %p214 = scmp.eq.s32.totalorder %s36, 1
      %p215 = por %p213, %p214
      %p216 = scmp.ne.s32.totalorder %s208, %s211
      %p217 = scmp.eq.s32.totalorder %s36, 0
      %p218 = por %p216, %p217
      %p219 = scmp.ne.s32.totalorder %s208, %s211
      %p220 = scmp.eq.s32.totalorder %s41, 1
      %p221 = por %p219, %p220
      %p222 = scmp.ne.s32.totalorder %s211, %s212
      %p223 = scmp.eq.s32.totalorder %s41, 0
      %p224 = por %p222, %p223
      %p225 = scmp.ne.s32.totalorder %s211, %s212
      %p226 = scmp.eq.s32.totalorder %s42, 1
      %p227 = por %p225, %p226
      %p229 = scmp.ne.s32.totalorder %s212, %s228
      %p230 = scmp.eq.s32.totalorder %s42, 0
      %p231 = por %p229, %p230
      %s232 = ssub.s32 %s36, %s43
      %p233 = scmp.eq.s32.totalorder %s232, 0
      %s235 = sadd.s32 %s234, 1
      %s236 = scalar_select %p233, %s234, %s235
      %p239 = pneg %p233
      %p240 = scmp.eq.s32.totalorder %s36, 1
      %p241 = por %p239, %p240
      %p242 = scmp.ne.s32.totalorder %s234, %s237
      %p243 = scmp.eq.s32.totalorder %s36, 0
      %p244 = por %p242, %p243
      %p245 = scmp.ne.s32.totalorder %s234, %s237
      %p246 = scmp.eq.s32.totalorder %s41, 1
      %p247 = por %p245, %p246
      %p248 = scmp.ne.s32.totalorder %s237, %s238
      %p249 = scmp.eq.s32.totalorder %s41, 0
      %p250 = por %p248, %p249
      %p251 = scmp.ne.s32.totalorder %s237, %s238
      %p252 = scmp.eq.s32.totalorder %s42, 1
      %p253 = por %p251, %p252
      %p255 = scmp.ne.s32.totalorder %s238, %s254
      %p256 = scmp.eq.s32.totalorder %s42, 0
      %p257 = por %p255, %p256
      %s258 = ssub.s32 %s36, %s43
      %p259 = scmp.eq.s32.totalorder %s258, 0
      %s261 = sadd.s32 %s260, 1
      %s262 = scalar_select %p259, %s260, %s261
      %p265 = pneg %p259
      %p266 = scmp.eq.s32.totalorder %s36, 1
      %p267 = por %p265, %p266
      %p268 = scmp.ne.s32.totalorder %s260, %s263
      %p269 = scmp.eq.s32.totalorder %s36, 0
      %p270 = por %p268, %p269
      %p271 = scmp.ne.s32.totalorder %s260, %s263
      %p272 = scmp.eq.s32.totalorder %s41, 1
      %p273 = por %p271, %p272
      %p274 = scmp.ne.s32.totalorder %s263, %s264
      %p275 = scmp.eq.s32.totalorder %s41, 0
      %p276 = por %p274, %p275
      %p277 = scmp.ne.s32.totalorder %s263, %s264
      %p278 = scmp.eq.s32.totalorder %s42, 1
      %p279 = por %p277, %p278
      %p281 = scmp.ne.s32.totalorder %s264, %s280
      %p282 = scmp.eq.s32.totalorder %s42, 0
      %p283 = por %p281, %p282
      %s284 = ssub.s32 %s36, %s43
      %p285 = scmp.eq.s32.totalorder %s284, 0
      %s287 = sadd.s32 %s286, 1
      %s288 = scalar_select %p285, %s286, %s287
      %p291 = pneg %p285
      %p292 = scmp.eq.s32.totalorder %s36, 1
      %p293 = por %p291, %p292
      %p294 = scmp.ne.s32.totalorder %s286, %s289
      %p295 = scmp.eq.s32.totalorder %s36, 0
      %p296 = por %p294, %p295
      %p297 = scmp.ne.s32.totalorder %s286, %s289
      %p298 = scmp.eq.s32.totalorder %s41, 1
      %p299 = por %p297, %p298
      %p300 = scmp.ne.s32.totalorder %s289, %s290
      %p301 = scmp.eq.s32.totalorder %s41, 0
      %p302 = por %p300, %p301
      %p303 = scmp.ne.s32.totalorder %s289, %s290
      %p304 = scmp.eq.s32.totalorder %s42, 1
      %p305 = por %p303, %p304
      %p307 = scmp.ne.s32.totalorder %s290, %s306
      %p308 = scmp.eq.s32.totalorder %s42, 0
      %p309 = por %p307, %p308
      %s310 = ssub.s32 %s36, %s43
      %p311 = scmp.eq.s32.totalorder %s310, 0
      %s313 = sadd.s32 %s312, 1
      %s314 = scalar_select %p311, %s312, %s313
      %p317 = pneg %p311
      %p318 = scmp.eq.s32.totalorder %s36, 1
      %p319 = por %p317, %p318
      %p320 = scmp.ne.s32.totalorder %s312, %s315
      %p321 = scmp.eq.s32.totalorder %s36, 0
      %p322 = por %p320, %p321
      %p323 = scmp.ne.s32.totalorder %s312, %s315
      %p324 = scmp.eq.s32.totalorder %s41, 1
      %p325 = por %p323, %p324
      %p326 = scmp.ne.s32.totalorder %s315, %s316
      %p327 = scmp.eq.s32.totalorder %s41, 0
      %p328 = por %p326, %p327
      %p329 = scmp.ne.s32.totalorder %s315, %s316
      %p330 = scmp.eq.s32.totalorder %s42, 1
      %p331 = por %p329, %p330
      %p333 = scmp.ne.s32.totalorder %s316, %s332
      %p334 = scmp.eq.s32.totalorder %s42, 0
      %p335 = por %p333, %p334
      %s336 = ssub.s32 %s36, %s43
      %p337 = scmp.eq.s32.totalorder %s336, 0
      %s339 = sadd.s32 %s338, 1
      %s340 = scalar_select %p337, %s338, %s339
      %p343 = pneg %p337
      %p344 = scmp.eq.s32.totalorder %s36, 1
      %p345 = por %p343, %p344
      %p346 = scmp.ne.s32.totalorder %s338, %s341
      %p347 = scmp.eq.s32.totalorder %s36, 0
      %p348 = por %p346, %p347
      %p349 = scmp.ne.s32.totalorder %s338, %s341
      %p350 = scmp.eq.s32.totalorder %s41, 1
      %p351 = por %p349, %p350
      %p352 = scmp.ne.s32.totalorder %s341, %s342
      %p353 = scmp.eq.s32.totalorder %s41, 0
      %p354 = por %p352, %p353
      %p355 = scmp.ne.s32.totalorder %s341, %s342
      %p356 = scmp.eq.s32.totalorder %s42, 1
      %p357 = por %p355, %p356
      %p359 = scmp.ne.s32.totalorder %s342, %s358
      %p360 = scmp.eq.s32.totalorder %s42, 0
      %p361 = por %p359, %p360
      %s362 = ssub.s32 %s36, %s43
      %p363 = scmp.eq.s32.totalorder %s362, 0
      %s365 = sadd.s32 %s364, 1
      %s366 = scalar_select %p363, %s364, %s365
      %p369 = pneg %p363
      %p370 = scmp.eq.s32.totalorder %s36, 1
      %p371 = por %p369, %p370
      %p372 = scmp.ne.s32.totalorder %s364, %s367
      %p373 = scmp.eq.s32.totalorder %s36, 0
      %p374 = por %p372, %p373
      %p375 = scmp.ne.s32.totalorder %s364, %s367
      %p376 = scmp.eq.s32.totalorder %s41, 1
      %p377 = por %p375, %p376
      %p378 = scmp.ne.s32.totalorder %s367, %s368
      %p379 = scmp.eq.s32.totalorder %s41, 0
      %p380 = por %p378, %p379
      %p381 = scmp.ne.s32.totalorder %s367, %s368
      %p382 = scmp.eq.s32.totalorder %s42, 1
      %p383 = por %p381, %p382
      %p385 = scmp.ne.s32.totalorder %s368, %s384
      %p386 = scmp.eq.s32.totalorder %s42, 0
      %p387 = por %p385, %p386
      %s388 = ssub.s32 %s36, %s43
      %p389 = scmp.eq.s32.totalorder %s388, 0
      %s391 = sadd.s32 %s390, 1
      %s392 = scalar_select %p389, %s390, %s391
      %p395 = pneg %p389
      %p396 = scmp.eq.s32.totalorder %s36, 1
      %p397 = por %p395, %p396
      %p398 = scmp.ne.s32.totalorder %s390, %s393
      %p399 = scmp.eq.s32.totalorder %s36, 0
      %p400 = por %p398, %p399
      %p401 = scmp.ne.s32.totalorder %s390, %s393
      %p402 = scmp.eq.s32.totalorder %s41, 1
      %p403 = por %p401, %p402
      %p404 = scmp.ne.s32.totalorder %s393, %s394
      %p405 = scmp.eq.s32.totalorder %s41, 0
      %p406 = por %p404, %p405
      %p407 = scmp.ne.s32.totalorder %s393, %s394
      %p408 = scmp.eq.s32.totalorder %s42, 1
      %p409 = por %p407, %p408
      %p411 = scmp.ne.s32.totalorder %s394, %s410
      %p412 = scmp.eq.s32.totalorder %s42, 0
      %p413 = por %p411, %p412
      %p414 = scmp.le.s32.totalorder 1, %s36
      %p415 = scmp.lt.s32.totalorder %s36, 3
      %p416 = pnand %p414, %p415
      %p417 = pneg %p416
      // Predicated region
      $region9: #{ae_critic_forward.1} parent=5 // pred_check
        _
      $region10: #{ae_critic_forward.1} parent=5 // pred_check_branch
        %419 = sbr.rel (%p416) target = $region12
      $region11: #{ae_critic_forward.1} parent=5 // pred_region
        %s420 = ssub.s32 %s36, 1
        // Predicated region
        $region13: #{ae_critic_forward.1} parent=11 // pred_check
          %p421 = pneg %p57
        $region14: #{ae_critic_forward.1} parent=11 // pred_check_branch
          %423 = sbr.rel (%p421) target = $region16
        $region15: #{ae_critic_forward.1} parent=11 // pred_region
          _
        $region16: #{ae_critic_forward.1} parent=11 // pred_fallthru
          _
        // Predicated region
        $region17: #{ae_critic_forward.1} parent=11 // pred_check
          %p424 = pneg %p78
        $region18: #{ae_critic_forward.1} parent=11 // pred_check_branch
          %426 = sbr.rel (%p424) target = $region20
        $region19: #{ae_critic_forward.1} parent=11 // pred_region
          _
        $region20: #{ae_critic_forward.1} parent=11 // pred_fallthru
          _
        // Predicated region
        $region21: #{ae_critic_forward.1} parent=11 // pred_check
          %p427 = pneg %p99
        $region22: #{ae_critic_forward.1} parent=11 // pred_check_branch
          %429 = sbr.rel (%p427) target = $region24
        $region23: #{ae_critic_forward.1} parent=11 // pred_region
          %s431 = ssub.s32 16, 16
          %432 = vsyncadd [#allocation3], %s431
          %s434 = sshll.u32 [#allocation2], 4
          %s435 = int_to_ptr.vmem [resolvable:$true] %s434
          %437 = dma.hbm_to_vmem [thread:$0]  %s2, 16, %s435, [#allocation3]
        $region24: #{ae_critic_forward.1} parent=11 // pred_fallthru
          _
        // Predicated region
        $region25: #{ae_critic_forward.1} parent=11 // pred_check
          %p438 = pneg %p120
        $region26: #{ae_critic_forward.1} parent=11 // pred_check_branch
          %440 = sbr.rel (%p438) target = $region28
        $region27: #{ae_critic_forward.1} parent=11 // pred_region
          _
        $region28: #{ae_critic_forward.1} parent=11 // pred_fallthru
          _
      $region12: #{ae_critic_forward.1} parent=5 // pred_fallthru
        _
      %p441 = scmp.lt.s32.totalorder %s36, 2
      // Predicated region
      $region29: #{ae_critic_forward.1} parent=5 // pred_check
        %p442 = pneg %p441
      $region30: #{ae_critic_forward.1} parent=5 // pred_check_branch
        %444 = sbr.rel (%p442) target = $region32
      $region31: #{ae_critic_forward.1} parent=5 // pred_region
        // Predicated region
        $region33: #{ae_critic_forward.1} parent=31 // pred_check
          %p445 = pneg %p140
        $region34: #{ae_critic_forward.1} parent=31 // pred_check_branch
          %447 = sbr.rel (%p445) target = $region36
        $region35: #{ae_critic_forward.1} parent=31 // pred_region
          %s448 = sand.u32 %s36, 1
          %s449 = scalar_lea.sflag [#allocation5], %s448
          %s450 = sand.u32 %s130, 1
          %s451 = smul.addr %s450, 128
          %s452 = scalar_lea.vmem [#allocation4], %s451
          %s454 = ssub.s32 2048, 2048
          %455 = vsyncadd %s449, %s454
          %s456 = smul.addr %s36, 32
          %s457 = smul.addr %s456, 64
          %s458 = scalar_lea.hbm %s4, %s457
          %s459 = sshll.u32 %s452, 4
          %s460 = int_to_ptr.vmem [resolvable:$true] %s459
          %465 = dma.hbm_to_vmem [thread:$0]  %s458, 2048, %s460, %s449, 512, 512, 32
        $region36: #{ae_critic_forward.1} parent=31 // pred_fallthru
          _
        // Predicated region
        $region37: #{ae_critic_forward.1} parent=31 // pred_check
          %p466 = pneg %p166
        $region38: #{ae_critic_forward.1} parent=31 // pred_check_branch
          %468 = sbr.rel (%p466) target = $region40
        $region39: #{ae_critic_forward.1} parent=31 // pred_region
          %s469 = sand.u32 %s36, 1
          %s470 = scalar_lea.sflag [#allocation5], %s469
          %s471 = sand.u32 %s156, 1
          %s472 = smul.addr %s471, 64
          %s473 = scalar_lea.vmem [#allocation6], %s472
          %s475 = ssub.s32 1024, 1024
          %476 = vsyncadd %s470, %s475
          %s477 = smul.addr %s36, 8
          %s478 = smul.addr %s477, 128
          %s479 = scalar_lea.hbm %s5, %s478
          %s481 = sshll.u32 %s473, 4
          %s482 = int_to_ptr.vmem [resolvable:$true] %s481
          %484 = dma.hbm_to_vmem [thread:$0]  %s479, 1024, %s482, %s470
        $region40: #{ae_critic_forward.1} parent=31 // pred_fallthru
          _
        // Predicated region
        $region41: #{ae_critic_forward.1} parent=31 // pred_check
          %p485 = pneg %p192
        $region42: #{ae_critic_forward.1} parent=31 // pred_check_branch
          %487 = sbr.rel (%p485) target = $region44
        $region43: #{ae_critic_forward.1} parent=31 // pred_region
          %s488 = sand.u32 %s36, 1
          %s489 = scalar_lea.sflag [#allocation8], %s488
          %s490 = sand.u32 %s182, 1
          %s491 = smul.addr %s490, 8
          %s492 = scalar_lea.vmem [#allocation7], %s491
          %s494 = ssub.s32 128, 128
          %495 = vsyncadd %s489, %s494
          %s496 = smul.addr %s36, 8
          %s497 = smul.addr %s496, 16
          %s498 = scalar_lea.hbm %s6, %s497
          %s500 = sshll.u32 %s492, 4
          %s501 = int_to_ptr.vmem [resolvable:$true] %s500
          %503 = dma.hbm_to_vmem [thread:$0]  %s498, 128, %s501, %s489
        $region44: #{ae_critic_forward.1} parent=31 // pred_fallthru
          _
        // Predicated region
        $region45: #{ae_critic_forward.1} parent=31 // pred_check
          %p504 = pneg %p218
        $region46: #{ae_critic_forward.1} parent=31 // pred_check_branch
          %506 = sbr.rel (%p504) target = $region48
        $region47: #{ae_critic_forward.1} parent=31 // pred_region
          %s507 = sand.u32 %s36, 1
          %s508 = scalar_lea.sflag [#allocation8], %s507
          %s509 = sand.u32 %s208, 1
          %s510 = smul.addr %s509, 8
          %s511 = scalar_lea.vmem [#allocation9], %s510
          %s513 = ssub.s32 128, 128
          %514 = vsyncadd %s508, %s513
          %s515 = smul.addr %s36, 8
          %s516 = smul.addr %s515, 16
          %s517 = scalar_lea.hbm %s7, %s516
          %s519 = sshll.u32 %s511, 4
          %s520 = int_to_ptr.vmem [resolvable:$true] %s519
          %522 = dma.hbm_to_vmem [thread:$0]  %s517, 128, %s520, %s508
        $region48: #{ae_critic_forward.1} parent=31 // pred_fallthru
          _
        // Predicated region
        $region49: #{ae_critic_forward.1} parent=31 // pred_check
          %p523 = pneg %p244
        $region50: #{ae_critic_forward.1} parent=31 // pred_check_branch
          %525 = sbr.rel (%p523) target = $region52
        $region51: #{ae_critic_forward.1} parent=31 // pred_region
          %s526 = sand.u32 %s36, 1
          %s527 = scalar_lea.sflag [#allocation11], %s526
          %s528 = sand.u32 %s234, 1
          %s529 = smul.addr %s528, 8
          %s530 = scalar_lea.vmem [#allocation10], %s529
          %s532 = ssub.s32 128, 128
          %533 = vsyncadd %s527, %s532
          %s534 = smul.addr %s36, 8
          %s535 = smul.addr %s534, 16
          %s536 = scalar_lea.hbm %s8, %s535
          %s538 = sshll.u32 %s530, 4
          %s539 = int_to_ptr.vmem [resolvable:$true] %s538
          %541 = dma.hbm_to_vmem [thread:$0]  %s536, 128, %s539, %s527
        $region52: #{ae_critic_forward.1} parent=31 // pred_fallthru
          _
        // Predicated region
        $region53: #{ae_critic_forward.1} parent=31 // pred_check
          %p542 = pneg %p270
        $region54: #{ae_critic_forward.1} parent=31 // pred_check_branch
          %544 = sbr.rel (%p542) target = $region56
        $region55: #{ae_critic_forward.1} parent=31 // pred_region
          %s545 = sand.u32 %s36, 1
          %s546 = scalar_lea.sflag [#allocation11], %s545
          %s547 = sand.u32 %s260, 1
          %s548 = smul.addr %s547, 2048
          %s549 = scalar_lea.vmem [#allocation12], %s548
          %s551 = ssub.s32 32768, 32768
          %552 = vsyncadd %s546, %s551
          %s553 = smul.addr %s36, 256
          %s554 = smul.addr %s553, 128
          %s555 = scalar_lea.hbm %s9, %s554
          %s556 = sshll.u32 %s549, 4
          %s557 = int_to_ptr.vmem [resolvable:$true] %s556
          %562 = dma.hbm_to_vmem [thread:$0]  %s555, 32768, %s557, %s546, 1024, 1024, 64
        $region56: #{ae_critic_forward.1} parent=31 // pred_fallthru
          _
        // Predicated region
        $region57: #{ae_critic_forward.1} parent=31 // pred_check
          %p563 = pneg %p296
        $region58: #{ae_critic_forward.1} parent=31 // pred_check_branch
          %565 = sbr.rel (%p563) target = $region60
        $region59: #{ae_critic_forward.1} parent=31 // pred_region
          %s566 = sand.u32 %s36, 1
          %s567 = scalar_lea.sflag [#allocation14], %s566
          %s568 = sand.u32 %s286, 1
          %s569 = smul.addr %s568, 8
          %s570 = scalar_lea.vmem [#allocation13], %s569
          %s572 = ssub.s32 128, 128
          %573 = vsyncadd %s567, %s572
          %s574 = smul.addr %s36, 8
          %s575 = smul.addr %s574, 16
          %s576 = scalar_lea.hbm %s10, %s575
          %s578 = sshll.u32 %s570, 4
          %s579 = int_to_ptr.vmem [resolvable:$true] %s578
          %581 = dma.hbm_to_vmem [thread:$0]  %s576, 128, %s579, %s567
        $region60: #{ae_critic_forward.1} parent=31 // pred_fallthru
          _
        // Predicated region
        $region61: #{ae_critic_forward.1} parent=31 // pred_check
          %p582 = pneg %p322
        $region62: #{ae_critic_forward.1} parent=31 // pred_check_branch
          %584 = sbr.rel (%p582) target = $region64
        $region63: #{ae_critic_forward.1} parent=31 // pred_region
          %s585 = sand.u32 %s36, 1
          %s586 = scalar_lea.sflag [#allocation14], %s585
          %s587 = sand.u32 %s312, 1
          %s588 = smul.addr %s587, 8
          %s589 = scalar_lea.vmem [#allocation15], %s588
          %s591 = ssub.s32 128, 128
          %592 = vsyncadd %s586, %s591
          %s593 = smul.addr %s36, 8
          %s594 = smul.addr %s593, 16
          %s595 = scalar_lea.hbm %s11, %s594
          %s597 = sshll.u32 %s589, 4
          %s598 = int_to_ptr.vmem [resolvable:$true] %s597
          %600 = dma.hbm_to_vmem [thread:$0]  %s595, 128, %s598, %s586
        $region64: #{ae_critic_forward.1} parent=31 // pred_fallthru
          _
        // Predicated region
        $region65: #{ae_critic_forward.1} parent=31 // pred_check
          %p601 = pneg %p348
        $region66: #{ae_critic_forward.1} parent=31 // pred_check_branch
          %603 = sbr.rel (%p601) target = $region68
        $region67: #{ae_critic_forward.1} parent=31 // pred_region
          %s604 = sand.u32 %s338, 1
          %s605 = scalar_lea.sflag [#allocation17], %s604
          %s606 = sand.u32 %s338, 1
          %s607 = smul.addr %s606, 8
          %s608 = scalar_lea.vmem [#allocation16], %s607
          %s610 = ssub.s32 128, 128
          %611 = vsyncadd %s605, %s610
          %s612 = smul.addr %s36, 8
          %s613 = smul.addr %s612, 16
          %s614 = scalar_lea.hbm %s12, %s613
          %s616 = sshll.u32 %s608, 4
          %s617 = int_to_ptr.vmem [resolvable:$true] %s616
          %619 = dma.hbm_to_vmem [thread:$0]  %s614, 128, %s617, %s605
        $region68: #{ae_critic_forward.1} parent=31 // pred_fallthru
          _
        // Predicated region
        $region69: #{ae_critic_forward.1} parent=31 // pred_check
          %p620 = pneg %p374
        $region70: #{ae_critic_forward.1} parent=31 // pred_check_branch
          %622 = sbr.rel (%p620) target = $region72
        $region71: #{ae_critic_forward.1} parent=31 // pred_region
          %p623 = scmp.lt.s32.totalorder %s36, 1
          %s624 = scalar_select %p623, %s36, 1
          %s625 = scalar_lea.vmem %s13, %s624
        $region72: #{ae_critic_forward.1} parent=31 // pred_fallthru
          _
      $region32: #{ae_critic_forward.1} parent=5 // pred_fallthru
        _
      %p626 = scmp.le.s32.totalorder 1, %s36
      %p627 = scmp.lt.s32.totalorder %s36, 3
      %p628 = pnand %p626, %p627
      %p629 = pneg %p628
      // Predicated region
      $region73: #{ae_critic_forward.1} parent=5 // pred_check
        _
      $region74: #{ae_critic_forward.1} parent=5 // pred_check_branch
        %631 = sbr.rel (%p628) target = $region76
      $region75: #{ae_critic_forward.1} parent=5 // pred_region
        %s632 = ssub.s32 %s36, 1
        // Predicated region
        $region77: #{ae_critic_forward.1} parent=75 // pred_check
          %p633 = pneg %p99
        $region78: #{ae_critic_forward.1} parent=75 // pred_check_branch
          %635 = sbr.rel (%p633) target = $region80
        $region79: #{ae_critic_forward.1} parent=75 // pred_region
          %636 = dma.done [#allocation3], 16
        $region80: #{ae_critic_forward.1} parent=75 // pred_fallthru
          _
        %s637 = sand.u32 %s41, 1
        %s638 = scalar_lea.sflag [#allocation5], %s637
        %s639 = sand.u32 %s133, 1
        %s640 = smul.addr %s639, 128
        %s641 = scalar_lea.vmem [#allocation4], %s640
        // Predicated region
        $region81: #{ae_critic_forward.1} parent=75 // pred_check
          %p642 = pneg %p146
        $region82: #{ae_critic_forward.1} parent=75 // pred_check_branch
          %644 = sbr.rel (%p642) target = $region84
        $region83: #{ae_critic_forward.1} parent=75 // pred_region
          %645 = dma.done %s638, 2048
        $region84: #{ae_critic_forward.1} parent=75 // pred_fallthru
          _
        %s646 = sand.u32 %s41, 1
        %s647 = scalar_lea.sflag [#allocation5], %s646
        %s648 = sand.u32 %s159, 1
        %s649 = smul.addr %s648, 64
        %s650 = scalar_lea.vmem [#allocation6], %s649
        // Predicated region
        $region85: #{ae_critic_forward.1} parent=75 // pred_check
          %p651 = pneg %p172
        $region86: #{ae_critic_forward.1} parent=75 // pred_check_branch
          %653 = sbr.rel (%p651) target = $region88
        $region87: #{ae_critic_forward.1} parent=75 // pred_region
          %654 = dma.done %s647, 1024
        $region88: #{ae_critic_forward.1} parent=75 // pred_fallthru
          _
        %s655 = sand.u32 %s41, 1
        %s656 = scalar_lea.sflag [#allocation8], %s655
        %s657 = sand.u32 %s185, 1
        %s658 = smul.addr %s657, 8
        %s659 = scalar_lea.vmem [#allocation7], %s658
        // Predicated region
        $region89: #{ae_critic_forward.1} parent=75 // pred_check
          %p660 = pneg %p198
        $region90: #{ae_critic_forward.1} parent=75 // pred_check_branch
          %662 = sbr.rel (%p660) target = $region92
        $region91: #{ae_critic_forward.1} parent=75 // pred_region
          %663 = dma.done %s656, 128
        $region92: #{ae_critic_forward.1} parent=75 // pred_fallthru
          _
        %s664 = sand.u32 %s41, 1
        %s665 = scalar_lea.sflag [#allocation8], %s664
        %s666 = sand.u32 %s211, 1
        %s667 = smul.addr %s666, 8
        %s668 = scalar_lea.vmem [#allocation9], %s667
        // Predicated region
        $region93: #{ae_critic_forward.1} parent=75 // pred_check
          %p669 = pneg %p224
        $region94: #{ae_critic_forward.1} parent=75 // pred_check_branch
          %671 = sbr.rel (%p669) target = $region96
        $region95: #{ae_critic_forward.1} parent=75 // pred_region
          %672 = dma.done %s665, 128
        $region96: #{ae_critic_forward.1} parent=75 // pred_fallthru
          _
        %s673 = sand.u32 %s41, 1
        %s674 = scalar_lea.sflag [#allocation11], %s673
        %s675 = sand.u32 %s237, 1
        %s676 = smul.addr %s675, 8
        %s677 = scalar_lea.vmem [#allocation10], %s676
        // Predicated region
        $region97: #{ae_critic_forward.1} parent=75 // pred_check
          %p678 = pneg %p250
        $region98: #{ae_critic_forward.1} parent=75 // pred_check_branch
          %680 = sbr.rel (%p678) target = $region100
        $region99: #{ae_critic_forward.1} parent=75 // pred_region
          %681 = dma.done %s674, 128
        $region100: #{ae_critic_forward.1} parent=75 // pred_fallthru
          _
        %s682 = sand.u32 %s41, 1
        %s683 = scalar_lea.sflag [#allocation11], %s682
        %s684 = sand.u32 %s263, 1
        %s685 = smul.addr %s684, 2048
        %s686 = scalar_lea.vmem [#allocation12], %s685
        // Predicated region
        $region101: #{ae_critic_forward.1} parent=75 // pred_check
          %p687 = pneg %p276
        $region102: #{ae_critic_forward.1} parent=75 // pred_check_branch
          %689 = sbr.rel (%p687) target = $region104
        $region103: #{ae_critic_forward.1} parent=75 // pred_region
          %690 = dma.done %s683, 32768
        $region104: #{ae_critic_forward.1} parent=75 // pred_fallthru
          _
        %s691 = sand.u32 %s41, 1
        %s692 = scalar_lea.sflag [#allocation14], %s691
        %s693 = sand.u32 %s289, 1
        %s694 = smul.addr %s693, 8
        %s695 = scalar_lea.vmem [#allocation13], %s694
        // Predicated region
        $region105: #{ae_critic_forward.1} parent=75 // pred_check
          %p696 = pneg %p302
        $region106: #{ae_critic_forward.1} parent=75 // pred_check_branch
          %698 = sbr.rel (%p696) target = $region108
        $region107: #{ae_critic_forward.1} parent=75 // pred_region
          %699 = dma.done %s692, 128
        $region108: #{ae_critic_forward.1} parent=75 // pred_fallthru
          _
        %s700 = sand.u32 %s41, 1
        %s701 = scalar_lea.sflag [#allocation14], %s700
        %s702 = sand.u32 %s315, 1
        %s703 = smul.addr %s702, 8
        %s704 = scalar_lea.vmem [#allocation15], %s703
        // Predicated region
        $region109: #{ae_critic_forward.1} parent=75 // pred_check
          %p705 = pneg %p328
        $region110: #{ae_critic_forward.1} parent=75 // pred_check_branch
          %707 = sbr.rel (%p705) target = $region112
        $region111: #{ae_critic_forward.1} parent=75 // pred_region
          %708 = dma.done %s701, 128
        $region112: #{ae_critic_forward.1} parent=75 // pred_fallthru
          _
        %s709 = sand.u32 %s341, 1
        %s710 = scalar_lea.sflag [#allocation17], %s709
        %s711 = sand.u32 %s341, 1
        %s712 = smul.addr %s711, 8
        %s713 = scalar_lea.vmem [#allocation16], %s712
        // Predicated region
        $region113: #{ae_critic_forward.1} parent=75 // pred_check
          %p714 = pneg %p354
        $region114: #{ae_critic_forward.1} parent=75 // pred_check_branch
          %716 = sbr.rel (%p714) target = $region116
        $region115: #{ae_critic_forward.1} parent=75 // pred_region
          %717 = dma.done %s710, 128
        $region116: #{ae_critic_forward.1} parent=75 // pred_fallthru
          _
        %p718 = pneg %p57
        %p719 = pneg %p54
        %p720 = pneg %p78
        %p721 = pneg %p75
        %p722 = pneg %p99
        %p723 = pneg %p96
        %p724 = pneg %p120
        %p725 = pneg %p117
        %s726 = sand.u32 %s41, 1
        %s727 = scalar_lea.sflag [#allocation5], %s726
        %s728 = sand.u32 %s133, 1
        %s729 = smul.addr %s728, 128
        %s730 = scalar_lea.vmem [#allocation4], %s729
        %p731 = pneg %p146
        %p732 = pneg %p143
        %s733 = sand.u32 %s41, 1
        %s734 = scalar_lea.sflag [#allocation5], %s733
        %s735 = sand.u32 %s159, 1
        %s736 = smul.addr %s735, 64
        %s737 = scalar_lea.vmem [#allocation6], %s736
        %p738 = pneg %p172
        %p739 = pneg %p169
        %s740 = sand.u32 %s41, 1
        %s741 = scalar_lea.sflag [#allocation8], %s740
        %s742 = sand.u32 %s185, 1
        %s743 = smul.addr %s742, 8
        %s744 = scalar_lea.vmem [#allocation7], %s743
        %p745 = pneg %p198
        %p746 = pneg %p195
        %s747 = sand.u32 %s41, 1
        %s748 = scalar_lea.sflag [#allocation8], %s747
        %s749 = sand.u32 %s211, 1
        %s750 = smul.addr %s749, 8
        %s751 = scalar_lea.vmem [#allocation9], %s750
        %p752 = pneg %p224
        %p753 = pneg %p221
        %s754 = sand.u32 %s41, 1
        %s755 = scalar_lea.sflag [#allocation11], %s754
        %s756 = sand.u32 %s237, 1
        %s757 = smul.addr %s756, 8
        %s758 = scalar_lea.vmem [#allocation10], %s757
        %p759 = pneg %p250
        %p760 = pneg %p247
        %s761 = sand.u32 %s41, 1
        %s762 = scalar_lea.sflag [#allocation11], %s761
        %s763 = sand.u32 %s263, 1
        %s764 = smul.addr %s763, 2048
        %s765 = scalar_lea.vmem [#allocation12], %s764
        %p766 = pneg %p276
        %p767 = pneg %p273
        %s768 = sand.u32 %s41, 1
        %s769 = scalar_lea.sflag [#allocation14], %s768
        %s770 = sand.u32 %s289, 1
        %s771 = smul.addr %s770, 8
        %s772 = scalar_lea.vmem [#allocation13], %s771
        %p773 = pneg %p302
        %p774 = pneg %p299
        %s775 = sand.u32 %s41, 1
        %s776 = scalar_lea.sflag [#allocation14], %s775
        %s777 = sand.u32 %s315, 1
        %s778 = smul.addr %s777, 8
        %s779 = scalar_lea.vmem [#allocation15], %s778
        %p780 = pneg %p328
        %p781 = pneg %p325
        %s782 = sand.u32 %s341, 1
        %s783 = scalar_lea.sflag [#allocation17], %s782
        %s784 = sand.u32 %s341, 1
        %s785 = smul.addr %s784, 8
        %s786 = scalar_lea.vmem [#allocation16], %s785
        %p787 = pneg %p354
        %p788 = pneg %p351
        %p789 = scmp.lt.s32.totalorder %s41, 1
        %s790 = scalar_select %p789, %s41, 1
        %s791 = scalar_lea.vmem %s13, %s790
        %p792 = pneg %p380
        %p793 = pneg %p377
        %p794 = pneg %p406
        %p795 = pneg %p403
        %p796 = scmp.lt.s32.totalorder %s41, 1
        %s797 = scalar_select %p796, %s41, 1
        %s798 = smul.addr %s797, 2
        %s799 = scalar_lea.vmem %s14, %s798
        %p800 = scmp.lt.s32.totalorder %s41, 1
        %s801 = scalar_select %p800, %s41, 1
        %s802 = scalar_lea.vmem %s13, %s801
        %p803 = scmp.lt.s32.totalorder %s41, 1
        %s804 = scalar_select %p803, %s41, 1
        %s805 = smul.addr %s804, 2
        %s806 = scalar_lea.vmem %s14, %s805
        %v808 = vld [vmem:[%s0] sm:$0xff]
        %v809 = vld [vmem:[%s1] sm:$0xf]
        %v810 = vld [vmem:[%s1 + $0x4] sm:$0xf]
        %v811 = vld [vmem:[%s1 + $0x8] sm:$0xf]
        %v812 = vld [vmem:[%s1 + $0xc] sm:$0xf]
        %v813 = vld [vmem:[%s1 + $0x10] sm:$0xf]
        %v814 = vld [vmem:[%s1 + $0x14] sm:$0xf]
        %v815 = vld [vmem:[%s1 + $0x18] sm:$0xf]
        %v816 = vld [vmem:[%s1 + $0x1c] sm:$0xf]
        %v817 = vld [vmem:[%s1 + $0x20] sm:$0xf]
        %v818 = vld [vmem:[%s1 + $0x24] sm:$0xf]
        %v819 = vld [vmem:[%s1 + $0x28] sm:$0xf]
        %v820 = vld [vmem:[%s1 + $0x2c] sm:$0xf]
        %v821 = vld [vmem:[%s1 + $0x30] sm:$0xf]
        %v822 = vld [vmem:[%s1 + $0x34] sm:$0xf]
        %v823 = vld [vmem:[%s1 + $0x38] sm:$0xf]
        %v824 = vld [vmem:[%s1 + $0x3c] sm:$0xf]
        %v825 = vld [vmem:[%s1 + $0x40] sm:$0xf]
        %v826 = vld [vmem:[%s1 + $0x44] sm:$0xf]
        %v827 = vld [vmem:[%s1 + $0x48] sm:$0xf]
        %v828 = vld [vmem:[%s1 + $0x4c] sm:$0xf]
        %v829 = vld [vmem:[%s1 + $0x50] sm:$0xf]
        %v830 = vld [vmem:[%s1 + $0x54] sm:$0xf]
        %v831 = vld [vmem:[%s1 + $0x58] sm:$0xf]
        %v832 = vld [vmem:[%s1 + $0x5c] sm:$0xf]
        %v833 = vld [vmem:[%s1 + $0x60] sm:$0xf]
        %v834 = vld [vmem:[%s1 + $0x64] sm:$0xf]
        %v835 = vld [vmem:[%s1 + $0x68] sm:$0xf]
        %v836 = vld [vmem:[%s1 + $0x6c] sm:$0xf]
        %v837 = vld [vmem:[%s1 + $0x70] sm:$0xf]
        %v838 = vld [vmem:[%s1 + $0x74] sm:$0xf]
        %v839 = vld [vmem:[%s1 + $0x78] sm:$0xf]
        %v840 = vld [vmem:[%s1 + $0x7c] sm:$0xf]
        %v841 = vld [vmem:[%s1 + $0x80] sm:$0xf]
        %v842 = vld [vmem:[%s1 + $0x84] sm:$0xf]
        %v843 = vld [vmem:[%s1 + $0x88] sm:$0xf]
        %v844 = vld [vmem:[%s1 + $0x8c] sm:$0xf]
        %v845 = vld [vmem:[%s1 + $0x90] sm:$0xf]
        %v846 = vld [vmem:[%s1 + $0x94] sm:$0xf]
        %v847 = vld [vmem:[%s1 + $0x98] sm:$0xf]
        %v848 = vld [vmem:[%s1 + $0x9c] sm:$0xf]
        %v849 = vld [vmem:[%s1 + $0xa0] sm:$0xf]
        %v850 = vld [vmem:[%s1 + $0xa4] sm:$0xf]
        %v851 = vld [vmem:[%s1 + $0xa8] sm:$0xf]
        %v852 = vld [vmem:[%s1 + $0xac] sm:$0xf]
        %v853 = vld [vmem:[%s1 + $0xb0] sm:$0xf]
        %v854 = vld [vmem:[%s1 + $0xb4] sm:$0xf]
        %v855 = vld [vmem:[%s1 + $0xb8] sm:$0xf]
        %v856 = vld [vmem:[%s1 + $0xbc] sm:$0xf]
        %v857 = vld [vmem:[%s1 + $0xc0] sm:$0xf]
        %v858 = vld [vmem:[%s1 + $0xc4] sm:$0xf]
        %v859 = vld [vmem:[%s1 + $0xc8] sm:$0xf]
        %v860 = vld [vmem:[%s1 + $0xcc] sm:$0xf]
        %v861 = vld [vmem:[%s1 + $0xd0] sm:$0xf]
        %v862 = vld [vmem:[%s1 + $0xd4] sm:$0xf]
        %v863 = vld [vmem:[%s1 + $0xd8] sm:$0xf]
        %v864 = vld [vmem:[%s1 + $0xdc] sm:$0xf]
        %v865 = vld [vmem:[%s1 + $0xe0] sm:$0xf]
        %v866 = vld [vmem:[%s1 + $0xe4] sm:$0xf]
        %v867 = vld [vmem:[%s1 + $0xe8] sm:$0xf]
        %v868 = vld [vmem:[%s1 + $0xec] sm:$0xf]
        %v869 = vld [vmem:[%s1 + $0xf0] sm:$0xf]
        %v870 = vld [vmem:[%s1 + $0xf4] sm:$0xf]
        %v871 = vld [vmem:[%s1 + $0xf8] sm:$0xf]
        %v872 = vld [vmem:[%s1 + $0xfc] sm:$0xf]
        %v873 = vld [vmem:[%s1 + $0x100] sm:$0xf]
        %v874 = vld [vmem:[%s1 + $0x104] sm:$0xf]
        %v875 = vld [vmem:[%s1 + $0x108] sm:$0xf]
        %v876 = vld [vmem:[%s1 + $0x10c] sm:$0xf]
        %v877 = vld [vmem:[%s1 + $0x110] sm:$0xf]
        %v878 = vld [vmem:[%s1 + $0x114] sm:$0xf]
        %v879 = vld [vmem:[%s1 + $0x118] sm:$0xf]
        %v880 = vld [vmem:[%s1 + $0x11c] sm:$0xf]
        %v881 = vld [vmem:[%s1 + $0x120] sm:$0xf]
        %v882 = vld [vmem:[%s1 + $0x124] sm:$0xf]
        %v883 = vld [vmem:[%s1 + $0x128] sm:$0xf]
        %v884 = vld [vmem:[%s1 + $0x12c] sm:$0xf]
        %v885 = vld [vmem:[%s1 + $0x130] sm:$0xf]
        %v886 = vld [vmem:[%s1 + $0x134] sm:$0xf]
        %v887 = vld [vmem:[%s1 + $0x138] sm:$0xf]
        %v888 = vld [vmem:[%s1 + $0x13c] sm:$0xf]
        %v889 = vld [vmem:[%s1 + $0x140] sm:$0xf]
        %v890 = vld [vmem:[%s1 + $0x144] sm:$0xf]
        %v891 = vld [vmem:[%s1 + $0x148] sm:$0xf]
        %v892 = vld [vmem:[%s1 + $0x14c] sm:$0xf]
        %v893 = vld [vmem:[%s1 + $0x150] sm:$0xf]
        %v894 = vld [vmem:[%s1 + $0x154] sm:$0xf]
        %v895 = vld [vmem:[%s1 + $0x158] sm:$0xf]
        %v896 = vld [vmem:[%s1 + $0x15c] sm:$0xf]
        %v897 = vld [vmem:[%s1 + $0x160] sm:$0xf]
        %v898 = vld [vmem:[%s1 + $0x164] sm:$0xf]
        %v899 = vld [vmem:[%s1 + $0x168] sm:$0xf]
        %v900 = vld [vmem:[%s1 + $0x16c] sm:$0xf]
        %v901 = vld [vmem:[%s1 + $0x170] sm:$0xf]
        %v902 = vld [vmem:[%s1 + $0x174] sm:$0xf]
        %v903 = vld [vmem:[%s1 + $0x178] sm:$0xf]
        %v904 = vld [vmem:[%s1 + $0x17c] sm:$0xf]
        %v905 = vld [vmem:[%s1 + $0x180] sm:$0xf]
        %v906 = vld [vmem:[%s1 + $0x184] sm:$0xf]
        %v907 = vld [vmem:[%s1 + $0x188] sm:$0xf]
        %v908 = vld [vmem:[%s1 + $0x18c] sm:$0xf]
        %v909 = vld [vmem:[%s1 + $0x190] sm:$0xf]
        %v910 = vld [vmem:[%s1 + $0x194] sm:$0xf]
        %v911 = vld [vmem:[%s1 + $0x198] sm:$0xf]
        %v912 = vld [vmem:[%s1 + $0x19c] sm:$0xf]
        %v913 = vld [vmem:[%s1 + $0x1a0] sm:$0xf]
        %v914 = vld [vmem:[%s1 + $0x1a4] sm:$0xf]
        %v915 = vld [vmem:[%s1 + $0x1a8] sm:$0xf]
        %v916 = vld [vmem:[%s1 + $0x1ac] sm:$0xf]
        %v917 = vld [vmem:[%s1 + $0x1b0] sm:$0xf]
        %v918 = vld [vmem:[%s1 + $0x1b4] sm:$0xf]
        %v919 = vld [vmem:[%s1 + $0x1b8] sm:$0xf]
        %v920 = vld [vmem:[%s1 + $0x1bc] sm:$0xf]
        %v921 = vld [vmem:[%s1 + $0x1c0] sm:$0xf]
        %v922 = vld [vmem:[%s1 + $0x1c4] sm:$0xf]
        %v923 = vld [vmem:[%s1 + $0x1c8] sm:$0xf]
        %v924 = vld [vmem:[%s1 + $0x1cc] sm:$0xf]
        %v925 = vld [vmem:[%s1 + $0x1d0] sm:$0xf]
        %v926 = vld [vmem:[%s1 + $0x1d4] sm:$0xf]
        %v927 = vld [vmem:[%s1 + $0x1d8] sm:$0xf]
        %v928 = vld [vmem:[%s1 + $0x1dc] sm:$0xf]
        %v929 = vld [vmem:[%s1 + $0x1e0] sm:$0xf]
        %v930 = vld [vmem:[%s1 + $0x1e4] sm:$0xf]
        %v931 = vld [vmem:[%s1 + $0x1e8] sm:$0xf]
        %v932 = vld [vmem:[%s1 + $0x1ec] sm:$0xf]
        %v933 = vld [vmem:[%s1 + $0x1f0] sm:$0xf]
        %v934 = vld [vmem:[%s1 + $0x1f4] sm:$0xf]
        %v935 = vld [vmem:[%s1 + $0x1f8] sm:$0xf]
        %v936 = vld [vmem:[%s1 + $0x1fc] sm:$0xf]
        %v937 = vld [vmem:[#allocation2] sm:$0x1]
        %v939 = vlaneseq
        %v940 = vshrl.u32 %v939, 7
        %v941 = vsub.s32 0, %v940
        %v942 = vrot.slane %v937, %v941
        %v945 = vcombine.high %v808, %v808
        %v947 = vunpack.c.l.s4 1966171168
        %v948 = vunpack.c.0.s8 %v947
        %v949 = vlaneseq
        %v950 = vshrl.u32 %v949, 7
        %v951 = vsub.s32 %v948, %v950
        %v952 = vrot.slane %v808, %v951
        %v954 = vunpack.c.l.s4 1966171168
        %v955 = vunpack.c.0.s8 %v954
        %v956 = vlaneseq
        %v957 = vshrl.u32 %v956, 7
        %v958 = vsub.s32 %v955, %v957
        %v959 = vrot.slane %v945, %v958
        %v960 = vcombine.high %v952, %v952
        %v961 = vcombine.high %v959, %v959
        %v963 = vunpack.c.l.s4 1966171168
        %v964 = vunpack.c.0.s8 %v963
        %v965 = vlaneseq
        %v966 = vshrl.u32 %v965, 7
        %v967 = vsub.s32 %v964, %v966
        %v968 = vrot.slane %v952, %v967
        %v970 = vunpack.c.l.s4 1966171168
        %v971 = vunpack.c.0.s8 %v970
        %v972 = vlaneseq
        %v973 = vshrl.u32 %v972, 7
        %v974 = vsub.s32 %v971, %v973
        %v975 = vrot.slane %v959, %v974
        %v977 = vunpack.c.l.s4 1966171168
        %v978 = vunpack.c.0.s8 %v977
        %v979 = vlaneseq
        %v980 = vshrl.u32 %v979, 7
        %v981 = vsub.s32 %v978, %v980
        %v982 = vrot.slane %v960, %v981
        %v984 = vunpack.c.l.s4 1966171168
        %v985 = vunpack.c.0.s8 %v984
        %v986 = vlaneseq
        %v987 = vshrl.u32 %v986, 7
        %v988 = vsub.s32 %v985, %v987
        %v989 = vrot.slane %v961, %v988
        %v990 = vcombine.high %v968, %v968
        %v991 = vcombine.high %v975, %v975
        %v992 = vcombine.high %v982, %v982
        %v993 = vcombine.high %v989, %v989
        %v1130 = vunpack.c.l.b16 %v809
        %v1131 = vunpack.c.l.b16 %v810
        %v1132 = vunpack.c.l.b16 %v811
        %v1133 = vunpack.c.l.b16 %v812
        %v1134 = vunpack.c.l.b16 %v813
        %v1135 = vunpack.c.l.b16 %v814
        %v1136 = vunpack.c.l.b16 %v815
        %v1137 = vunpack.c.l.b16 %v816
        %v1138 = vunpack.c.l.b16 %v817
        %v1139 = vunpack.c.l.b16 %v818
        %v1140 = vunpack.c.l.b16 %v819
        %v1141 = vunpack.c.l.b16 %v820
        %v1142 = vunpack.c.l.b16 %v821
        %v1143 = vunpack.c.l.b16 %v822
        %v1144 = vunpack.c.l.b16 %v823
        %v1145 = vunpack.c.l.b16 %v824
        %v1146 = vunpack.c.l.b16 %v825
        %v1147 = vunpack.c.l.b16 %v826
        %v1148 = vunpack.c.l.b16 %v827
        %v1149 = vunpack.c.l.b16 %v828
        %v1150 = vunpack.c.l.b16 %v829
        %v1151 = vunpack.c.l.b16 %v830
        %v1152 = vunpack.c.l.b16 %v831
        %v1153 = vunpack.c.l.b16 %v832
        %v1154 = vunpack.c.l.b16 %v833
        %v1155 = vunpack.c.l.b16 %v834
        %v1156 = vunpack.c.l.b16 %v835
        %v1157 = vunpack.c.l.b16 %v836
        %v1158 = vunpack.c.l.b16 %v837
        %v1159 = vunpack.c.l.b16 %v838
        %v1160 = vunpack.c.l.b16 %v839
        %v1161 = vunpack.c.l.b16 %v840
        %v1162 = vunpack.c.l.b16 %v841
        %v1163 = vunpack.c.l.b16 %v842
        %v1164 = vunpack.c.l.b16 %v843
        %v1165 = vunpack.c.l.b16 %v844
        %v1166 = vunpack.c.l.b16 %v845
        %v1167 = vunpack.c.l.b16 %v846
        %v1168 = vunpack.c.l.b16 %v847
        %v1169 = vunpack.c.l.b16 %v848
        %v1170 = vunpack.c.l.b16 %v849
        %v1171 = vunpack.c.l.b16 %v850
        %v1172 = vunpack.c.l.b16 %v851
        %v1173 = vunpack.c.l.b16 %v852
        %v1174 = vunpack.c.l.b16 %v853
        %v1175 = vunpack.c.l.b16 %v854
        %v1176 = vunpack.c.l.b16 %v855
        %v1177 = vunpack.c.l.b16 %v856
        %v1178 = vunpack.c.l.b16 %v857
        %v1179 = vunpack.c.l.b16 %v858
        %v1180 = vunpack.c.l.b16 %v859
        %v1181 = vunpack.c.l.b16 %v860
        %v1182 = vunpack.c.l.b16 %v861
        %v1183 = vunpack.c.l.b16 %v862
        %v1184 = vunpack.c.l.b16 %v863
        %v1185 = vunpack.c.l.b16 %v864
        %v1186 = vunpack.c.l.b16 %v865
        %v1187 = vunpack.c.l.b16 %v866
        %v1188 = vunpack.c.l.b16 %v867
        %v1189 = vunpack.c.l.b16 %v868
        %v1190 = vunpack.c.l.b16 %v869
        %v1191 = vunpack.c.l.b16 %v870
        %v1192 = vunpack.c.l.b16 %v871
        %v1193 = vunpack.c.l.b16 %v872
        %v1194 = vunpack.c.l.b16 %v873
        %v1195 = vunpack.c.l.b16 %v874
        %v1196 = vunpack.c.l.b16 %v875
        %v1197 = vunpack.c.l.b16 %v876
        %v1198 = vunpack.c.l.b16 %v877
        %v1199 = vunpack.c.l.b16 %v878
        %v1200 = vunpack.c.l.b16 %v879
        %v1201 = vunpack.c.l.b16 %v880
        %v1202 = vunpack.c.l.b16 %v881
        %v1203 = vunpack.c.l.b16 %v882
        %v1204 = vunpack.c.l.b16 %v883
        %v1205 = vunpack.c.l.b16 %v884
        %v1206 = vunpack.c.l.b16 %v885
        %v1207 = vunpack.c.l.b16 %v886
        %v1208 = vunpack.c.l.b16 %v887
        %v1209 = vunpack.c.l.b16 %v888
        %v1210 = vunpack.c.l.b16 %v889
        %v1211 = vunpack.c.l.b16 %v890
        %v1212 = vunpack.c.l.b16 %v891
        %v1213 = vunpack.c.l.b16 %v892
        %v1214 = vunpack.c.l.b16 %v893
        %v1215 = vunpack.c.l.b16 %v894
        %v1216 = vunpack.c.l.b16 %v895
        %v1217 = vunpack.c.l.b16 %v896
        %v1218 = vunpack.c.l.b16 %v897
        %v1219 = vunpack.c.l.b16 %v898
        %v1220 = vunpack.c.l.b16 %v899
        %v1221 = vunpack.c.l.b16 %v900
        %v1222 = vunpack.c.l.b16 %v901
        %v1223 = vunpack.c.l.b16 %v902
        %v1224 = vunpack.c.l.b16 %v903
        %v1225 = vunpack.c.l.b16 %v904
        %v1226 = vunpack.c.l.b16 %v905
        %v1227 = vunpack.c.l.b16 %v906
        %v1228 = vunpack.c.l.b16 %v907
        %v1229 = vunpack.c.l.b16 %v908
        %v1230 = vunpack.c.l.b16 %v909
        %v1231 = vunpack.c.l.b16 %v910
        %v1232 = vunpack.c.l.b16 %v911
        %v1233 = vunpack.c.l.b16 %v912
        %v1234 = vunpack.c.l.b16 %v913
        %v1235 = vunpack.c.l.b16 %v914
        %v1236 = vunpack.c.l.b16 %v915
        %v1237 = vunpack.c.l.b16 %v916
        %v1238 = vunpack.c.l.b16 %v917
        %v1239 = vunpack.c.l.b16 %v918
        %v1240 = vunpack.c.l.b16 %v919
        %v1241 = vunpack.c.l.b16 %v920
        %v1242 = vunpack.c.l.b16 %v921
        %v1243 = vunpack.c.l.b16 %v922
        %v1244 = vunpack.c.l.b16 %v923
        %v1245 = vunpack.c.l.b16 %v924
        %v1246 = vunpack.c.l.b16 %v925
        %v1247 = vunpack.c.l.b16 %v926
        %v1248 = vunpack.c.l.b16 %v927
        %v1249 = vunpack.c.l.b16 %v928
        %v1250 = vunpack.c.l.b16 %v929
        %v1251 = vunpack.c.l.b16 %v930
        %v1252 = vunpack.c.l.b16 %v931
        %v1253 = vunpack.c.l.b16 %v932
        %v1254 = vunpack.c.l.b16 %v933
        %v1255 = vunpack.c.l.b16 %v934
        %v1256 = vunpack.c.l.b16 %v935
        %v1257 = vunpack.c.l.b16 %v936
        %v1258 = vpack.c.b16 %v1131, %v1130
        %v1259 = vpack.c.b16 %v1133, %v1132
        %v1260 = vpack.c.b16 %v1135, %v1134
        %v1261 = vpack.c.b16 %v1137, %v1136
        %v1262 = vpack.c.b16 %v1139, %v1138
        %v1263 = vpack.c.b16 %v1141, %v1140
        %v1264 = vpack.c.b16 %v1143, %v1142
        %v1265 = vpack.c.b16 %v1145, %v1144
        %v1266 = vpack.c.b16 %v1147, %v1146
        %v1267 = vpack.c.b16 %v1149, %v1148
        %v1268 = vpack.c.b16 %v1151, %v1150
        %v1269 = vpack.c.b16 %v1153, %v1152
        %v1270 = vpack.c.b16 %v1155, %v1154
        %v1271 = vpack.c.b16 %v1157, %v1156
        %v1272 = vpack.c.b16 %v1159, %v1158
        %v1273 = vpack.c.b16 %v1161, %v1160
        %v1274 = vpack.c.b16 %v1163, %v1162
        %v1275 = vpack.c.b16 %v1165, %v1164
        %v1276 = vpack.c.b16 %v1167, %v1166
        %v1277 = vpack.c.b16 %v1169, %v1168
        %v1278 = vpack.c.b16 %v1171, %v1170
        %v1279 = vpack.c.b16 %v1173, %v1172
        %v1280 = vpack.c.b16 %v1175, %v1174
        %v1281 = vpack.c.b16 %v1177, %v1176
        %v1282 = vpack.c.b16 %v1179, %v1178
        %v1283 = vpack.c.b16 %v1181, %v1180
        %v1284 = vpack.c.b16 %v1183, %v1182
        %v1285 = vpack.c.b16 %v1185, %v1184
        %v1286 = vpack.c.b16 %v1187, %v1186
        %v1287 = vpack.c.b16 %v1189, %v1188
        %v1288 = vpack.c.b16 %v1191, %v1190
        %v1289 = vpack.c.b16 %v1193, %v1192
        %v1290 = vpack.c.b16 %v1195, %v1194
        %v1291 = vpack.c.b16 %v1197, %v1196
        %v1292 = vpack.c.b16 %v1199, %v1198
        %v1293 = vpack.c.b16 %v1201, %v1200
        %v1294 = vpack.c.b16 %v1203, %v1202
        %v1295 = vpack.c.b16 %v1205, %v1204
        %v1296 = vpack.c.b16 %v1207, %v1206
        %v1297 = vpack.c.b16 %v1209, %v1208
        %v1298 = vpack.c.b16 %v1211, %v1210
        %v1299 = vpack.c.b16 %v1213, %v1212
        %v1300 = vpack.c.b16 %v1215, %v1214
        %v1301 = vpack.c.b16 %v1217, %v1216
        %v1302 = vpack.c.b16 %v1219, %v1218
        %v1303 = vpack.c.b16 %v1221, %v1220
        %v1304 = vpack.c.b16 %v1223, %v1222
        %v1305 = vpack.c.b16 %v1225, %v1224
        %v1306 = vpack.c.b16 %v1227, %v1226
        %v1307 = vpack.c.b16 %v1229, %v1228
        %v1308 = vpack.c.b16 %v1231, %v1230
        %v1309 = vpack.c.b16 %v1233, %v1232
        %v1310 = vpack.c.b16 %v1235, %v1234
        %v1311 = vpack.c.b16 %v1237, %v1236
        %v1312 = vpack.c.b16 %v1239, %v1238
        %v1313 = vpack.c.b16 %v1241, %v1240
        %v1314 = vpack.c.b16 %v1243, %v1242
        %v1315 = vpack.c.b16 %v1245, %v1244
        %v1316 = vpack.c.b16 %v1247, %v1246
        %v1317 = vpack.c.b16 %v1249, %v1248
        %v1318 = vpack.c.b16 %v1251, %v1250
        %v1319 = vpack.c.b16 %v1253, %v1252
        %v1320 = vpack.c.b16 %v1255, %v1254
        %v1321 = vpack.c.b16 %v1257, %v1256
        %1386 = vmatprep.subr.bf16.mxu0 0
        %1387 = vmatpush1.bf16.msra.mxu0 %v1258
        %1388 = vmatprep.subr.bf16.mxu0 0
        %1389 = vmatpush1.bf16.msra.mxu0 %v1259
        %1390 = vmatprep.subr.bf16.mxu0 0
        %1391 = vmatpush1.bf16.msra.mxu0 %v1260
        %1392 = vmatprep.subr.bf16.mxu0 0
        %1393 = vmatpush1.bf16.msra.mxu0 %v1261
        %1394 = vmatprep.subr.bf16.mxu0 0
        %1395 = vmatpush1.bf16.msra.mxu0 %v1262
        %1396 = vmatprep.subr.bf16.mxu0 0
        %1397 = vmatpush1.bf16.msra.mxu0 %v1263
        %1398 = vmatprep.subr.bf16.mxu0 0
        %1399 = vmatpush1.bf16.msra.mxu0 %v1264
        %1400 = vmatprep.subr.bf16.mxu0 0
        %1401 = vmatpush1.bf16.msra.mxu0 %v1265
        %1402 = vmatprep.subr.bf16.mxu0 0
        %1403 = vmatpush1.bf16.msra.mxu0 %v1266
        %1404 = vmatprep.subr.bf16.mxu0 0
        %1405 = vmatpush1.bf16.msra.mxu0 %v1267
        %1406 = vmatprep.subr.bf16.mxu0 0
        %1407 = vmatpush1.bf16.msra.mxu0 %v1268
        %1408 = vmatprep.subr.bf16.mxu0 0
        %1409 = vmatpush1.bf16.msra.mxu0 %v1269
        %1410 = vmatprep.subr.bf16.mxu0 0
        %1411 = vmatpush1.bf16.msra.mxu0 %v1270
        %1412 = vmatprep.subr.bf16.mxu0 0
        %1413 = vmatpush1.bf16.msra.mxu0 %v1271
        %1414 = vmatprep.subr.bf16.mxu0 0
        %1415 = vmatpush1.bf16.msra.mxu0 %v1272
        %1416 = vmatprep.subr.bf16.mxu0 0
        %1417 = vmatpush1.bf16.msra.mxu0 %v1273
        %1418 = vmatprep.mubr.bf16.mxu0 %v982
        %1419 = vmatmul.mubr.bf16.gmra.mrb[0].mxu0 %v968
        %v1420 = vpop.f32.mrb[0].mxu0
        %v1421 = vadd.f32 %v942, %v1420
        %v1422 = vpop.f32.mrb[0].mxu0
        %v1423 = vpop.f32.mrb[0].mxu0
        %v1424 = vpop.f32.mrb[0].mxu0
        %1425 = vdwg.mxu0
        %1426 = vmatprep.subr.bf16.mxu0 0
        %1427 = vmatpush1.bf16.msra.mxu0 %v1274
        %1428 = vmatprep.subr.bf16.mxu0 0
        %1429 = vmatpush1.bf16.msra.mxu0 %v1275
        %1430 = vmatprep.subr.bf16.mxu0 0
        %1431 = vmatpush1.bf16.msra.mxu0 %v1276
        %1432 = vmatprep.subr.bf16.mxu0 0
        %1433 = vmatpush1.bf16.msra.mxu0 %v1277
        %1434 = vmatprep.subr.bf16.mxu0 0
        %1435 = vmatpush1.bf16.msra.mxu0 %v1278
        %1436 = vmatprep.subr.bf16.mxu0 0
        %1437 = vmatpush1.bf16.msra.mxu0 %v1279
        %1438 = vmatprep.subr.bf16.mxu0 0
        %1439 = vmatpush1.bf16.msra.mxu0 %v1280
        %1440 = vmatprep.subr.bf16.mxu0 0
        %1441 = vmatpush1.bf16.msra.mxu0 %v1281
        %1442 = vmatprep.subr.bf16.mxu0 0
        %1443 = vmatpush1.bf16.msra.mxu0 %v1282
        %1444 = vmatprep.subr.bf16.mxu0 0
        %1445 = vmatpush1.bf16.msra.mxu0 %v1283
        %1446 = vmatprep.subr.bf16.mxu0 0
        %1447 = vmatpush1.bf16.msra.mxu0 %v1284
        %1448 = vmatprep.subr.bf16.mxu0 0
        %1449 = vmatpush1.bf16.msra.mxu0 %v1285
        %1450 = vmatprep.subr.bf16.mxu0 0
        %1451 = vmatpush1.bf16.msra.mxu0 %v1286
        %1452 = vmatprep.subr.bf16.mxu0 0
        %1453 = vmatpush1.bf16.msra.mxu0 %v1287
        %1454 = vmatprep.subr.bf16.mxu0 0
        %1455 = vmatpush1.bf16.msra.mxu0 %v1288
        %1456 = vmatprep.subr.bf16.mxu0 0
        %1457 = vmatpush1.bf16.msra.mxu0 %v1289
        %1458 = vmatprep.mubr.bf16.mxu0 %v992
        %1459 = vmatmul.mubr.bf16.gmra.mrb[0].mxu0 %v990
        %v1460 = vpop.f32.mrb[0].mxu0
        %v1461 = vadd.f32 %v1421, %v1460
        %v1462 = vpop.f32.mrb[0].mxu0
        %v1463 = vpop.f32.mrb[0].mxu0
        %v1464 = vpop.f32.mrb[0].mxu0
        %1465 = vdwg.mxu0
        %1466 = vmatprep.subr.bf16.mxu0 0
        %1467 = vmatpush1.bf16.msra.mxu0 %v1290
        %1468 = vmatprep.subr.bf16.mxu0 0
        %1469 = vmatpush1.bf16.msra.mxu0 %v1291
        %1470 = vmatprep.subr.bf16.mxu0 0
        %1471 = vmatpush1.bf16.msra.mxu0 %v1292
        %1472 = vmatprep.subr.bf16.mxu0 0
        %1473 = vmatpush1.bf16.msra.mxu0 %v1293
        %1474 = vmatprep.subr.bf16.mxu0 0
        %1475 = vmatpush1.bf16.msra.mxu0 %v1294
        %1476 = vmatprep.subr.bf16.mxu0 0
        %1477 = vmatpush1.bf16.msra.mxu0 %v1295
        %1478 = vmatprep.subr.bf16.mxu0 0
        %1479 = vmatpush1.bf16.msra.mxu0 %v1296
        %1480 = vmatprep.subr.bf16.mxu0 0
        %1481 = vmatpush1.bf16.msra.mxu0 %v1297
        %1482 = vmatprep.subr.bf16.mxu0 0
        %1483 = vmatpush1.bf16.msra.mxu0 %v1298
        %1484 = vmatprep.subr.bf16.mxu0 0
        %1485 = vmatpush1.bf16.msra.mxu0 %v1299
        %1486 = vmatprep.subr.bf16.mxu0 0
        %1487 = vmatpush1.bf16.msra.mxu0 %v1300
        %1488 = vmatprep.subr.bf16.mxu0 0
        %1489 = vmatpush1.bf16.msra.mxu0 %v1301
        %1490 = vmatprep.subr.bf16.mxu0 0
        %1491 = vmatpush1.bf16.msra.mxu0 %v1302
        %1492 = vmatprep.subr.bf16.mxu0 0
        %1493 = vmatpush1.bf16.msra.mxu0 %v1303
        %1494 = vmatprep.subr.bf16.mxu0 0
        %1495 = vmatpush1.bf16.msra.mxu0 %v1304
        %1496 = vmatprep.subr.bf16.mxu0 0
        %1497 = vmatpush1.bf16.msra.mxu0 %v1305
        %1498 = vmatprep.mubr.bf16.mxu0 %v989
        %1499 = vmatmul.mubr.bf16.gmra.mrb[0].mxu0 %v975
        %v1500 = vpop.f32.mrb[0].mxu0
        %v1501 = vadd.f32 %v1461, %v1500
        %v1502 = vpop.f32.mrb[0].mxu0
        %v1503 = vpop.f32.mrb[0].mxu0
        %v1504 = vpop.f32.mrb[0].mxu0
        %1505 = vdwg.mxu0
        %1506 = vmatprep.subr.bf16.mxu0 0
        %1507 = vmatpush1.bf16.msra.mxu0 %v1306
        %1508 = vmatprep.subr.bf16.mxu0 0
        %1509 = vmatpush1.bf16.msra.mxu0 %v1307
        %1510 = vmatprep.subr.bf16.mxu0 0
        %1511 = vmatpush1.bf16.msra.mxu0 %v1308
        %1512 = vmatprep.subr.bf16.mxu0 0
        %1513 = vmatpush1.bf16.msra.mxu0 %v1309
        %1514 = vmatprep.subr.bf16.mxu0 0
        %1515 = vmatpush1.bf16.msra.mxu0 %v1310
        %1516 = vmatprep.subr.bf16.mxu0 0
        %1517 = vmatpush1.bf16.msra.mxu0 %v1311
        %1518 = vmatprep.subr.bf16.mxu0 0
        %1519 = vmatpush1.bf16.msra.mxu0 %v1312
        %1520 = vmatprep.subr.bf16.mxu0 0
        %1521 = vmatpush1.bf16.msra.mxu0 %v1313
        %1522 = vmatprep.subr.bf16.mxu0 0
        %1523 = vmatpush1.bf16.msra.mxu0 %v1314
        %1524 = vmatprep.subr.bf16.mxu0 0
        %1525 = vmatpush1.bf16.msra.mxu0 %v1315
        %1526 = vmatprep.subr.bf16.mxu0 0
        %1527 = vmatpush1.bf16.msra.mxu0 %v1316
        %1528 = vmatprep.subr.bf16.mxu0 0
        %1529 = vmatpush1.bf16.msra.mxu0 %v1317
        %1530 = vmatprep.subr.bf16.mxu0 0
        %1531 = vmatpush1.bf16.msra.mxu0 %v1318
        %1532 = vmatprep.subr.bf16.mxu0 0
        %1533 = vmatpush1.bf16.msra.mxu0 %v1319
        %1534 = vmatprep.subr.bf16.mxu0 0
        %1535 = vmatpush1.bf16.msra.mxu0 %v1320
        %1536 = vmatprep.subr.bf16.mxu0 0
        %1537 = vmatpush1.bf16.msra.mxu0 %v1321
        %1538 = vmatprep.mubr.bf16.mxu0 %v993
        %1539 = vmatmul.mubr.bf16.gmra.mrb[0].mxu0 %v991
        %v1540 = vpop.f32.mrb[0].mxu0
        %v1541 = vadd.f32 %v1501, %v1540
        %v1542 = vpop.f32.mrb[0].mxu0
        %v1543 = vpop.f32.mrb[0].mxu0
        %v1544 = vpop.f32.mrb[0].mxu0
        %1545 = vdwg.mxu0
        %v1546 = vtanh.pop %v1541
        %v1547 = vpack.c.bf16 %v1546, %v1546
        %v1548 = vld [vmem:[%s641] sm:$0xff]
        %v1549 = vld [vmem:[%s641 + $0x8] sm:$0xff]
        %v1550 = vld [vmem:[%s641 + $0x10] sm:$0xff]
        %v1551 = vld [vmem:[%s641 + $0x18] sm:$0xff]
        %v1552 = vld [vmem:[%s641 + $0x20] sm:$0xff]
        %v1553 = vld [vmem:[%s641 + $0x28] sm:$0xff]
        %v1554 = vld [vmem:[%s641 + $0x30] sm:$0xff]
        %v1555 = vld [vmem:[%s641 + $0x38] sm:$0xff]
        %v1556 = vld [vmem:[%s641 + $0x40] sm:$0xff]
        %v1557 = vld [vmem:[%s641 + $0x48] sm:$0xff]
        %v1558 = vld [vmem:[%s641 + $0x50] sm:$0xff]
        %v1559 = vld [vmem:[%s641 + $0x58] sm:$0xff]
        %v1560 = vld [vmem:[%s641 + $0x60] sm:$0xff]
        %v1561 = vld [vmem:[%s641 + $0x68] sm:$0xff]
        %v1562 = vld [vmem:[%s641 + $0x70] sm:$0xff]
        %v1563 = vld [vmem:[%s641 + $0x78] sm:$0xff]
        %v1564 = vld [vmem:[%s659] sm:$0xff]
        %v1566 = vlaneseq
        %v1567 = vshrl.u32 %v1566, 7
        %v1568 = vsub.s32 0, %v1567
        %v1569 = vrot.slane %v1564, %v1568
        %v1570 = vlaneseq
        %v1571 = vshrl.u32 %v1570, 7
        %v1572 = vsub.s32 1, %v1571
        %v1573 = vrot.slane %v1564, %v1572
        %v1574 = vlaneseq
        %v1575 = vshrl.u32 %v1574, 7
        %v1576 = vsub.s32 2, %v1575
        %v1577 = vrot.slane %v1564, %v1576
        %v1578 = vlaneseq
        %v1579 = vshrl.u32 %v1578, 7
        %v1580 = vsub.s32 3, %v1579
        %v1581 = vrot.slane %v1564, %v1580
        %v1582 = vlaneseq
        %v1583 = vshrl.u32 %v1582, 7
        %v1584 = vsub.s32 4, %v1583
        %v1585 = vrot.slane %v1564, %v1584
        %v1586 = vlaneseq
        %v1587 = vshrl.u32 %v1586, 7
        %v1588 = vsub.s32 5, %v1587
        %v1589 = vrot.slane %v1564, %v1588
        %v1590 = vlaneseq
        %v1591 = vshrl.u32 %v1590, 7
        %v1592 = vsub.s32 6, %v1591
        %v1593 = vrot.slane %v1564, %v1592
        %v1594 = vlaneseq
        %v1595 = vshrl.u32 %v1594, 7
        %v1596 = vsub.s32 7, %v1595
        %v1597 = vrot.slane %v1564, %v1596
        %v1622 = vunpack.c.l.b16 %v1548
        %v1623 = vunpack.c.h.b16 %v1548
        %v1624 = vunpack.c.l.b16 %v1549
        %v1625 = vunpack.c.h.b16 %v1549
        %v1626 = vunpack.c.l.b16 %v1550
        %v1627 = vunpack.c.h.b16 %v1550
        %v1628 = vunpack.c.l.b16 %v1551
        %v1629 = vunpack.c.h.b16 %v1551
        %v1630 = vunpack.c.l.b16 %v1552
        %v1631 = vunpack.c.h.b16 %v1552
        %v1632 = vunpack.c.l.b16 %v1553
        %v1633 = vunpack.c.h.b16 %v1553
        %v1634 = vunpack.c.l.b16 %v1554
        %v1635 = vunpack.c.h.b16 %v1554
        %v1636 = vunpack.c.l.b16 %v1555
        %v1637 = vunpack.c.h.b16 %v1555
        %v1638 = vunpack.c.l.b16 %v1556
        %v1639 = vunpack.c.h.b16 %v1556
        %v1640 = vunpack.c.l.b16 %v1557
        %v1641 = vunpack.c.h.b16 %v1557
        %v1642 = vunpack.c.l.b16 %v1558
        %v1643 = vunpack.c.h.b16 %v1558
        %v1644 = vunpack.c.l.b16 %v1559
        %v1645 = vunpack.c.h.b16 %v1559
        %v1646 = vunpack.c.l.b16 %v1560
        %v1647 = vunpack.c.h.b16 %v1560
        %v1648 = vunpack.c.l.b16 %v1561
        %v1649 = vunpack.c.h.b16 %v1561
        %v1650 = vunpack.c.l.b16 %v1562
        %v1651 = vunpack.c.h.b16 %v1562
        %v1652 = vunpack.c.l.b16 %v1563
        %v1653 = vunpack.c.h.b16 %v1563
        %v1654 = vpack.c.b16 %v1630, %v1622
        %v1655 = vpack.c.b16 %v1631, %v1623
        %v1656 = vpack.c.b16 %v1632, %v1624
        %v1657 = vpack.c.b16 %v1633, %v1625
        %v1658 = vpack.c.b16 %v1634, %v1626
        %v1659 = vpack.c.b16 %v1635, %v1627
        %v1660 = vpack.c.b16 %v1636, %v1628
        %v1661 = vpack.c.b16 %v1637, %v1629
        %v1662 = vpack.c.b16 %v1646, %v1638
        %v1663 = vpack.c.b16 %v1647, %v1639
        %v1664 = vpack.c.b16 %v1648, %v1640
        %v1665 = vpack.c.b16 %v1649, %v1641
        %v1666 = vpack.c.b16 %v1650, %v1642
        %v1667 = vpack.c.b16 %v1651, %v1643
        %v1668 = vpack.c.b16 %v1652, %v1644
        %v1669 = vpack.c.b16 %v1653, %v1645
        %vm1686 = vcmask 261120
        %v1688 = vsel %vm1686, %v1547, 0
        %1690 = vmatprep.subr.bf16.mxu0 %v1655
        %1691 = vmatpush1.bf16.msra.mxu0 %v1654
        %1692 = vmatprep.subr.bf16.mxu0 %v1663
        %1693 = vmatpush1.bf16.msra.mxu0 %v1662
        %1694 = vmatprep.subr.bf16.mxu0 0
        %1695 = vmatpush1.bf16.msra.mxu0 0
        %1696 = vmatprep.subr.bf16.mxu0 0
        %1697 = vmatpush1.bf16.msra.mxu0 0
        %1698 = vmatprep.subr.bf16.mxu0 0
        %1699 = vmatpush1.bf16.msra.mxu0 0
        %1700 = vmatprep.subr.bf16.mxu0 0
        %1701 = vmatpush1.bf16.msra.mxu0 0
        %1702 = vmatprep.subr.bf16.mxu0 0
        %1703 = vmatpush1.bf16.msra.mxu0 0
        %1704 = vmatprep.subr.bf16.mxu0 0
        %1705 = vmatpush1.bf16.msra.mxu0 0
        %1706 = vmatprep.subr.bf16.mxu0 0
        %1707 = vmatpush1.bf16.msra.mxu0 0
        %1708 = vmatprep.subr.bf16.mxu0 0
        %1709 = vmatpush1.bf16.msra.mxu0 0
        %1710 = vmatprep.subr.bf16.mxu0 0
        %1711 = vmatpush1.bf16.msra.mxu0 0
        %1712 = vmatprep.subr.bf16.mxu0 0
        %1713 = vmatpush1.bf16.msra.mxu0 0
        %1714 = vmatprep.subr.bf16.mxu0 0
        %1715 = vmatpush1.bf16.msra.mxu0 0
        %1716 = vmatprep.subr.bf16.mxu0 0
        %1717 = vmatpush1.bf16.msra.mxu0 0
        %1718 = vmatprep.subr.bf16.mxu0 0
        %1719 = vmatpush1.bf16.msra.mxu0 0
        %1720 = vmatprep.subr.bf16.mxu0 0
        %1721 = vmatpush1.bf16.msra.mxu0 0
        %1722 = vmatprep.mubr.bf16.mxu0 0
        %1723 = vmatmul.mubr.bf16.gmra.mrb[0].mxu0 %v1688
        %v1724 = vpop.f32.mrb[0].mxu0
        %v1725 = vadd.f32 %v1569, %v1724
        %v1726 = vpop.f32.mrb[0].mxu0
        %v1727 = vadd.f32 %v1573, %v1726
        %v1728 = vpop.f32.mrb[0].mxu0
        %v1729 = vpop.f32.mrb[0].mxu0
        %1730 = vdwg.mxu0
        %1731 = vmatprep.subr.bf16.mxu0 %v1657
        %1732 = vmatpush1.bf16.msra.mxu0 %v1656
        %1733 = vmatprep.subr.bf16.mxu0 %v1665
        %1734 = vmatpush1.bf16.msra.mxu0 %v1664
        %1735 = vmatprep.subr.bf16.mxu0 0
        %1736 = vmatpush1.bf16.msra.mxu0 0
        %1737 = vmatprep.subr.bf16.mxu0 0
        %1738 = vmatpush1.bf16.msra.mxu0 0
        %1739 = vmatprep.subr.bf16.mxu0 0
        %1740 = vmatpush1.bf16.msra.mxu0 0
        %1741 = vmatprep.subr.bf16.mxu0 0
        %1742 = vmatpush1.bf16.msra.mxu0 0
        %1743 = vmatprep.subr.bf16.mxu0 0
        %1744 = vmatpush1.bf16.msra.mxu0 0
        %1745 = vmatprep.subr.bf16.mxu0 0
        %1746 = vmatpush1.bf16.msra.mxu0 0
        %1747 = vmatprep.subr.bf16.mxu0 0
        %1748 = vmatpush1.bf16.msra.mxu0 0
        %1749 = vmatprep.subr.bf16.mxu0 0
        %1750 = vmatpush1.bf16.msra.mxu0 0
        %1751 = vmatprep.subr.bf16.mxu0 0
        %1752 = vmatpush1.bf16.msra.mxu0 0
        %1753 = vmatprep.subr.bf16.mxu0 0
        %1754 = vmatpush1.bf16.msra.mxu0 0
        %1755 = vmatprep.subr.bf16.mxu0 0
        %1756 = vmatpush1.bf16.msra.mxu0 0
        %1757 = vmatprep.subr.bf16.mxu0 0
        %1758 = vmatpush1.bf16.msra.mxu0 0
        %1759 = vmatprep.subr.bf16.mxu0 0
        %1760 = vmatpush1.bf16.msra.mxu0 0
        %1761 = vmatprep.subr.bf16.mxu0 0
        %1762 = vmatpush1.bf16.msra.mxu0 0
        %1763 = vmatprep.mubr.bf16.mxu0 0
        %1764 = vmatmul.mubr.bf16.gmra.mrb[0].mxu0 %v1688
        %v1765 = vpop.f32.mrb[0].mxu0
        %v1766 = vadd.f32 %v1577, %v1765
        %v1767 = vpop.f32.mrb[0].mxu0
        %v1768 = vadd.f32 %v1581, %v1767
        %v1769 = vpop.f32.mrb[0].mxu0
        %v1770 = vpop.f32.mrb[0].mxu0
        %1771 = vdwg.mxu0
        %1772 = vmatprep.subr.bf16.mxu0 %v1659
        %1773 = vmatpush1.bf16.msra.mxu0 %v1658
        %1774 = vmatprep.subr.bf16.mxu0 %v1667
        %1775 = vmatpush1.bf16.msra.mxu0 %v1666
        %1776 = vmatprep.subr.bf16.mxu0 0
        %1777 = vmatpush1.bf16.msra.mxu0 0
        %1778 = vmatprep.subr.bf16.mxu0 0
        %1779 = vmatpush1.bf16.msra.mxu0 0
        %1780 = vmatprep.subr.bf16.mxu0 0
        %1781 = vmatpush1.bf16.msra.mxu0 0
        %1782 = vmatprep.subr.bf16.mxu0 0
        %1783 = vmatpush1.bf16.msra.mxu0 0
        %1784 = vmatprep.subr.bf16.mxu0 0
        %1785 = vmatpush1.bf16.msra.mxu0 0
        %1786 = vmatprep.subr.bf16.mxu0 0
        %1787 = vmatpush1.bf16.msra.mxu0 0
        %1788 = vmatprep.subr.bf16.mxu0 0
        %1789 = vmatpush1.bf16.msra.mxu0 0
        %1790 = vmatprep.subr.bf16.mxu0 0
        %1791 = vmatpush1.bf16.msra.mxu0 0
        %1792 = vmatprep.subr.bf16.mxu0 0
        %1793 = vmatpush1.bf16.msra.mxu0 0
        %1794 = vmatprep.subr.bf16.mxu0 0
        %1795 = vmatpush1.bf16.msra.mxu0 0
        %1796 = vmatprep.subr.bf16.mxu0 0
        %1797 = vmatpush1.bf16.msra.mxu0 0
        %1798 = vmatprep.subr.bf16.mxu0 0
        %1799 = vmatpush1.bf16.msra.mxu0 0
        %1800 = vmatprep.subr.bf16.mxu0 0
        %1801 = vmatpush1.bf16.msra.mxu0 0
        %1802 = vmatprep.subr.bf16.mxu0 0
        %1803 = vmatpush1.bf16.msra.mxu0 0
        %1804 = vmatprep.mubr.bf16.mxu0 0
        %1805 = vmatmul.mubr.bf16.gmra.mrb[0].mxu0 %v1688
        %v1806 = vpop.f32.mrb[0].mxu0
        %v1807 = vadd.f32 %v1585, %v1806
        %v1808 = vpop.f32.mrb[0].mxu0
        %v1809 = vadd.f32 %v1589, %v1808
        %v1810 = vpop.f32.mrb[0].mxu0
        %v1811 = vpop.f32.mrb[0].mxu0
        %1812 = vdwg.mxu0
        %1813 = vmatprep.subr.bf16.mxu0 %v1661
        %1814 = vmatpush1.bf16.msra.mxu0 %v1660
        %1815 = vmatprep.subr.bf16.mxu0 %v1669
        %1816 = vmatpush1.bf16.msra.mxu0 %v1668
        %1817 = vmatprep.subr.bf16.mxu0 0
        %1818 = vmatpush1.bf16.msra.mxu0 0
        %1819 = vmatprep.subr.bf16.mxu0 0
        %1820 = vmatpush1.bf16.msra.mxu0 0
        %1821 = vmatprep.subr.bf16.mxu0 0
        %1822 = vmatpush1.bf16.msra.mxu0 0
        %1823 = vmatprep.subr.bf16.mxu0 0
        %1824 = vmatpush1.bf16.msra.mxu0 0
        %1825 = vmatprep.subr.bf16.mxu0 0
        %1826 = vmatpush1.bf16.msra.mxu0 0
        %1827 = vmatprep.subr.bf16.mxu0 0
        %1828 = vmatpush1.bf16.msra.mxu0 0
        %1829 = vmatprep.subr.bf16.mxu0 0
        %1830 = vmatpush1.bf16.msra.mxu0 0
        %1831 = vmatprep.subr.bf16.mxu0 0
        %1832 = vmatpush1.bf16.msra.mxu0 0
        %1833 = vmatprep.subr.bf16.mxu0 0
        %1834 = vmatpush1.bf16.msra.mxu0 0
        %1835 = vmatprep.subr.bf16.mxu0 0
        %1836 = vmatpush1.bf16.msra.mxu0 0
        %1837 = vmatprep.subr.bf16.mxu0 0
        %1838 = vmatpush1.bf16.msra.mxu0 0
        %1839 = vmatprep.subr.bf16.mxu0 0
        %1840 = vmatpush1.bf16.msra.mxu0 0
        %1841 = vmatprep.subr.bf16.mxu0 0
        %1842 = vmatpush1.bf16.msra.mxu0 0
        %1843 = vmatprep.subr.bf16.mxu0 0
        %1844 = vmatpush1.bf16.msra.mxu0 0
        %1845 = vmatprep.mubr.bf16.mxu0 0
        %1846 = vmatmul.mubr.bf16.gmra.mrb[0].mxu0 %v1688
        %v1847 = vpop.f32.mrb[0].mxu0
        %v1848 = vadd.f32 %v1593, %v1847
        %v1849 = vpop.f32.mrb[0].mxu0
        %v1850 = vadd.f32 %v1597, %v1849
        %v1851 = vpop.f32.mrb[0].mxu0
        %v1852 = vpop.f32.mrb[0].mxu0
        %1853 = vdwg.mxu0
        %v1854 = vld [vmem:[%s3] sm:$0x3]
        %v1855 = vld [vmem:[%s650] sm:$0xff]
        %v1856 = vld [vmem:[%s650 + $0x8] sm:$0xff]
        %v1857 = vld [vmem:[%s650 + $0x10] sm:$0xff]
        %v1858 = vld [vmem:[%s650 + $0x18] sm:$0xff]
        %v1859 = vld [vmem:[%s650 + $0x20] sm:$0xff]
        %v1860 = vld [vmem:[%s650 + $0x28] sm:$0xff]
        %v1861 = vld [vmem:[%s650 + $0x30] sm:$0xff]
        %v1862 = vld [vmem:[%s650 + $0x38] sm:$0xff]
        %1864 = vset.pattern.permute.xlu0 0
        %1865 = vperm.xlu0 %1864, %v1854
        %v1866 = vpop.permute.xlu0 %1865
        %v1868 = vlaneseq
        %v1869 = vshrl.u32 %v1868, 7
        %v1870 = vsub.s32 0, %v1869
        %v1871 = vrot.slane %v1855, %v1870
        %v1872 = vlaneseq
        %v1873 = vshrl.u32 %v1872, 7
        %v1874 = vsub.s32 0, %v1873
        %v1875 = vrot.slane %v1856, %v1874
        %v1876 = vlaneseq
        %v1877 = vshrl.u32 %v1876, 7
        %v1878 = vsub.s32 0, %v1877
        %v1879 = vrot.slane %v1857, %v1878
        %v1880 = vlaneseq
        %v1881 = vshrl.u32 %v1880, 7
        %v1882 = vsub.s32 0, %v1881
        %v1883 = vrot.slane %v1858, %v1882
        %v1884 = vlaneseq
        %v1885 = vshrl.u32 %v1884, 7
        %v1886 = vsub.s32 0, %v1885
        %v1887 = vrot.slane %v1859, %v1886
        %v1888 = vlaneseq
        %v1889 = vshrl.u32 %v1888, 7
        %v1890 = vsub.s32 0, %v1889
        %v1891 = vrot.slane %v1860, %v1890
        %v1892 = vlaneseq
        %v1893 = vshrl.u32 %v1892, 7
        %v1894 = vsub.s32 0, %v1893
        %v1895 = vrot.slane %v1861, %v1894
        %v1896 = vlaneseq
        %v1897 = vshrl.u32 %v1896, 7
        %v1898 = vsub.s32 0, %v1897
        %v1899 = vrot.slane %v1862, %v1898
        %v1900 = vmul.f32 %v1866, %v1871
        %v1901 = vmul.f32 %v1866, %v1875
        %v1902 = vmul.f32 %v1866, %v1879
        %v1903 = vmul.f32 %v1866, %v1883
        %v1904 = vmul.f32 %v1866, %v1887
        %v1905 = vmul.f32 %v1866, %v1891
        %v1906 = vmul.f32 %v1866, %v1895
        %v1907 = vmul.f32 %v1866, %v1899
        %v1908 = vadd.f32 %v1725, %v1900
        %v1909 = vadd.f32 %v1727, %v1901
        %v1910 = vadd.f32 %v1766, %v1902
        %v1911 = vadd.f32 %v1768, %v1903
        %v1912 = vadd.f32 %v1807, %v1904
        %v1913 = vadd.f32 %v1809, %v1905
        %v1914 = vadd.f32 %v1848, %v1906
        %v1915 = vadd.f32 %v1850, %v1907
        %1916 = vset.pattern.permute.xlu0 1
        %1917 = vperm.xlu0 %1916, %v1854
        %v1918 = vpop.permute.xlu0 %1917
        %v1920 = vlaneseq
        %v1921 = vshrl.u32 %v1920, 7
        %v1922 = vsub.s32 1, %v1921
        %v1923 = vrot.slane %v1855, %v1922
        %v1924 = vlaneseq
        %v1925 = vshrl.u32 %v1924, 7
        %v1926 = vsub.s32 1, %v1925
        %v1927 = vrot.slane %v1856, %v1926
        %v1928 = vlaneseq
        %v1929 = vshrl.u32 %v1928, 7
        %v1930 = vsub.s32 1, %v1929
        %v1931 = vrot.slane %v1857, %v1930
        %v1932 = vlaneseq
        %v1933 = vshrl.u32 %v1932, 7
        %v1934 = vsub.s32 1, %v1933
        %v1935 = vrot.slane %v1858, %v1934
        %v1936 = vlaneseq
        %v1937 = vshrl.u32 %v1936, 7
        %v1938 = vsub.s32 1, %v1937
        %v1939 = vrot.slane %v1859, %v1938
        %v1940 = vlaneseq
        %v1941 = vshrl.u32 %v1940, 7
        %v1942 = vsub.s32 1, %v1941
        %v1943 = vrot.slane %v1860, %v1942
        %v1944 = vlaneseq
        %v1945 = vshrl.u32 %v1944, 7
        %v1946 = vsub.s32 1, %v1945
        %v1947 = vrot.slane %v1861, %v1946
        %v1948 = vlaneseq
        %v1949 = vshrl.u32 %v1948, 7
        %v1950 = vsub.s32 1, %v1949
        %v1951 = vrot.slane %v1862, %v1950
        %v1952 = vmul.f32 %v1918, %v1923
        %v1953 = vmul.f32 %v1918, %v1927
        %v1954 = vmul.f32 %v1918, %v1931
        %v1955 = vmul.f32 %v1918, %v1935
        %v1956 = vmul.f32 %v1918, %v1939
        %v1957 = vmul.f32 %v1918, %v1943
        %v1958 = vmul.f32 %v1918, %v1947
        %v1959 = vmul.f32 %v1918, %v1951
        %v1960 = vadd.f32 %v1908, %v1952
        %v1961 = vadd.f32 %v1909, %v1953
        %v1962 = vadd.f32 %v1910, %v1954
        %v1963 = vadd.f32 %v1911, %v1955
        %v1964 = vadd.f32 %v1912, %v1956
        %v1965 = vadd.f32 %v1913, %v1957
        %v1966 = vadd.f32 %v1914, %v1958
        %v1967 = vadd.f32 %v1915, %v1959
        %1968 = vset.pattern.permute.xlu0 2
        %1969 = vperm.xlu0 %1968, %v1854
        %v1970 = vpop.permute.xlu0 %1969
        %v1972 = vlaneseq
        %v1973 = vshrl.u32 %v1972, 7
        %v1974 = vsub.s32 2, %v1973
        %v1975 = vrot.slane %v1855, %v1974
        %v1976 = vlaneseq
        %v1977 = vshrl.u32 %v1976, 7
        %v1978 = vsub.s32 2, %v1977
        %v1979 = vrot.slane %v1856, %v1978
        %v1980 = vlaneseq
        %v1981 = vshrl.u32 %v1980, 7
        %v1982 = vsub.s32 2, %v1981
        %v1983 = vrot.slane %v1857, %v1982
        %v1984 = vlaneseq
        %v1985 = vshrl.u32 %v1984, 7
        %v1986 = vsub.s32 2, %v1985
        %v1987 = vrot.slane %v1858, %v1986
        %v1988 = vlaneseq
        %v1989 = vshrl.u32 %v1988, 7
        %v1990 = vsub.s32 2, %v1989
        %v1991 = vrot.slane %v1859, %v1990
        %v1992 = vlaneseq
        %v1993 = vshrl.u32 %v1992, 7
        %v1994 = vsub.s32 2, %v1993
        %v1995 = vrot.slane %v1860, %v1994
        %v1996 = vlaneseq
        %v1997 = vshrl.u32 %v1996, 7
        %v1998 = vsub.s32 2, %v1997
        %v1999 = vrot.slane %v1861, %v1998
        %v2000 = vlaneseq
        %v2001 = vshrl.u32 %v2000, 7
        %v2002 = vsub.s32 2, %v2001
        %v2003 = vrot.slane %v1862, %v2002
        %v2004 = vmul.f32 %v1970, %v1975
        %v2005 = vmul.f32 %v1970, %v1979
        %v2006 = vmul.f32 %v1970, %v1983
        %v2007 = vmul.f32 %v1970, %v1987
        %v2008 = vmul.f32 %v1970, %v1991
        %v2009 = vmul.f32 %v1970, %v1995
        %v2010 = vmul.f32 %v1970, %v1999
        %v2011 = vmul.f32 %v1970, %v2003
        %v2012 = vadd.f32 %v1960, %v2004
        %v2013 = vadd.f32 %v1961, %v2005
        %v2014 = vadd.f32 %v1962, %v2006
        %v2015 = vadd.f32 %v1963, %v2007
        %v2016 = vadd.f32 %v1964, %v2008
        %v2017 = vadd.f32 %v1965, %v2009
        %v2018 = vadd.f32 %v1966, %v2010
        %v2019 = vadd.f32 %v1967, %v2011
        %2020 = vset.pattern.permute.xlu0 3
        %2021 = vperm.xlu0 %2020, %v1854
        %v2022 = vpop.permute.xlu0 %2021
        %v2024 = vlaneseq
        %v2025 = vshrl.u32 %v2024, 7
        %v2026 = vsub.s32 3, %v2025
        %v2027 = vrot.slane %v1855, %v2026
        %v2028 = vlaneseq
        %v2029 = vshrl.u32 %v2028, 7
        %v2030 = vsub.s32 3, %v2029
        %v2031 = vrot.slane %v1856, %v2030
        %v2032 = vlaneseq
        %v2033 = vshrl.u32 %v2032, 7
        %v2034 = vsub.s32 3, %v2033
        %v2035 = vrot.slane %v1857, %v2034
        %v2036 = vlaneseq
        %v2037 = vshrl.u32 %v2036, 7
        %v2038 = vsub.s32 3, %v2037
        %v2039 = vrot.slane %v1858, %v2038
        %v2040 = vlaneseq
        %v2041 = vshrl.u32 %v2040, 7
        %v2042 = vsub.s32 3, %v2041
        %v2043 = vrot.slane %v1859, %v2042
        %v2044 = vlaneseq
        %v2045 = vshrl.u32 %v2044, 7
        %v2046 = vsub.s32 3, %v2045
        %v2047 = vrot.slane %v1860, %v2046
        %v2048 = vlaneseq
        %v2049 = vshrl.u32 %v2048, 7
        %v2050 = vsub.s32 3, %v2049
        %v2051 = vrot.slane %v1861, %v2050
        %v2052 = vlaneseq
        %v2053 = vshrl.u32 %v2052, 7
        %v2054 = vsub.s32 3, %v2053
        %v2055 = vrot.slane %v1862, %v2054
        %v2056 = vmul.f32 %v2022, %v2027
        %v2057 = vmul.f32 %v2022, %v2031
        %v2058 = vmul.f32 %v2022, %v2035
        %v2059 = vmul.f32 %v2022, %v2039
        %v2060 = vmul.f32 %v2022, %v2043
        %v2061 = vmul.f32 %v2022, %v2047
        %v2062 = vmul.f32 %v2022, %v2051
        %v2063 = vmul.f32 %v2022, %v2055
        %v2064 = vadd.f32 %v2012, %v2056
        %v2065 = vadd.f32 %v2013, %v2057
        %v2066 = vadd.f32 %v2014, %v2058
        %v2067 = vadd.f32 %v2015, %v2059
        %v2068 = vadd.f32 %v2016, %v2060
        %v2069 = vadd.f32 %v2017, %v2061
        %v2070 = vadd.f32 %v2018, %v2062
        %v2071 = vadd.f32 %v2019, %v2063
        %2072 = vset.pattern.permute.xlu0 4
        %2073 = vperm.xlu0 %2072, %v1854
        %v2074 = vpop.permute.xlu0 %2073
        %v2076 = vlaneseq
        %v2077 = vshrl.u32 %v2076, 7
        %v2078 = vsub.s32 4, %v2077
        %v2079 = vrot.slane %v1855, %v2078
        %v2080 = vlaneseq
        %v2081 = vshrl.u32 %v2080, 7
        %v2082 = vsub.s32 4, %v2081
        %v2083 = vrot.slane %v1856, %v2082
        %v2084 = vlaneseq
        %v2085 = vshrl.u32 %v2084, 7
        %v2086 = vsub.s32 4, %v2085
        %v2087 = vrot.slane %v1857, %v2086
        %v2088 = vlaneseq
        %v2089 = vshrl.u32 %v2088, 7
        %v2090 = vsub.s32 4, %v2089
        %v2091 = vrot.slane %v1858, %v2090
        %v2092 = vlaneseq
        %v2093 = vshrl.u32 %v2092, 7
        %v2094 = vsub.s32 4, %v2093
        %v2095 = vrot.slane %v1859, %v2094
        %v2096 = vlaneseq
        %v2097 = vshrl.u32 %v2096, 7
        %v2098 = vsub.s32 4, %v2097
        %v2099 = vrot.slane %v1860, %v2098
        %v2100 = vlaneseq
        %v2101 = vshrl.u32 %v2100, 7
        %v2102 = vsub.s32 4, %v2101
        %v2103 = vrot.slane %v1861, %v2102
        %v2104 = vlaneseq
        %v2105 = vshrl.u32 %v2104, 7
        %v2106 = vsub.s32 4, %v2105
        %v2107 = vrot.slane %v1862, %v2106
        %v2108 = vmul.f32 %v2074, %v2079
        %v2109 = vmul.f32 %v2074, %v2083
        %v2110 = vmul.f32 %v2074, %v2087
        %v2111 = vmul.f32 %v2074, %v2091
        %v2112 = vmul.f32 %v2074, %v2095
        %v2113 = vmul.f32 %v2074, %v2099
        %v2114 = vmul.f32 %v2074, %v2103
        %v2115 = vmul.f32 %v2074, %v2107
        %v2116 = vadd.f32 %v2064, %v2108
        %v2117 = vadd.f32 %v2065, %v2109
        %v2118 = vadd.f32 %v2066, %v2110
        %v2119 = vadd.f32 %v2067, %v2111
        %v2120 = vadd.f32 %v2068, %v2112
        %v2121 = vadd.f32 %v2069, %v2113
        %v2122 = vadd.f32 %v2070, %v2114
        %v2123 = vadd.f32 %v2071, %v2115
        %2124 = vset.pattern.permute.xlu0 5
        %2125 = vperm.xlu0 %2124, %v1854
        %v2126 = vpop.permute.xlu0 %2125
        %v2128 = vlaneseq
        %v2129 = vshrl.u32 %v2128, 7
        %v2130 = vsub.s32 5, %v2129
        %v2131 = vrot.slane %v1855, %v2130
        %v2132 = vlaneseq
        %v2133 = vshrl.u32 %v2132, 7
        %v2134 = vsub.s32 5, %v2133
        %v2135 = vrot.slane %v1856, %v2134
        %v2136 = vlaneseq
        %v2137 = vshrl.u32 %v2136, 7
        %v2138 = vsub.s32 5, %v2137
        %v2139 = vrot.slane %v1857, %v2138
        %v2140 = vlaneseq
        %v2141 = vshrl.u32 %v2140, 7
        %v2142 = vsub.s32 5, %v2141
        %v2143 = vrot.slane %v1858, %v2142
        %v2144 = vlaneseq
        %v2145 = vshrl.u32 %v2144, 7
        %v2146 = vsub.s32 5, %v2145
        %v2147 = vrot.slane %v1859, %v2146
        %v2148 = vlaneseq
        %v2149 = vshrl.u32 %v2148, 7
        %v2150 = vsub.s32 5, %v2149
        %v2151 = vrot.slane %v1860, %v2150
        %v2152 = vlaneseq
        %v2153 = vshrl.u32 %v2152, 7
        %v2154 = vsub.s32 5, %v2153
        %v2155 = vrot.slane %v1861, %v2154
        %v2156 = vlaneseq
        %v2157 = vshrl.u32 %v2156, 7
        %v2158 = vsub.s32 5, %v2157
        %v2159 = vrot.slane %v1862, %v2158
        %v2160 = vmul.f32 %v2126, %v2131
        %v2161 = vmul.f32 %v2126, %v2135
        %v2162 = vmul.f32 %v2126, %v2139
        %v2163 = vmul.f32 %v2126, %v2143
        %v2164 = vmul.f32 %v2126, %v2147
        %v2165 = vmul.f32 %v2126, %v2151
        %v2166 = vmul.f32 %v2126, %v2155
        %v2167 = vmul.f32 %v2126, %v2159
        %v2168 = vadd.f32 %v2116, %v2160
        %v2169 = vadd.f32 %v2117, %v2161
        %v2170 = vadd.f32 %v2118, %v2162
        %v2171 = vadd.f32 %v2119, %v2163
        %v2172 = vadd.f32 %v2120, %v2164
        %v2173 = vadd.f32 %v2121, %v2165
        %v2174 = vadd.f32 %v2122, %v2166
        %v2175 = vadd.f32 %v2123, %v2167
        %2176 = vset.pattern.permute.xlu0 6
        %2177 = vperm.xlu0 %2176, %v1854
        %v2178 = vpop.permute.xlu0 %2177
        %v2180 = vlaneseq
        %v2181 = vshrl.u32 %v2180, 7
        %v2182 = vsub.s32 6, %v2181
        %v2183 = vrot.slane %v1855, %v2182
        %v2184 = vlaneseq
        %v2185 = vshrl.u32 %v2184, 7
        %v2186 = vsub.s32 6, %v2185
        %v2187 = vrot.slane %v1856, %v2186
        %v2188 = vlaneseq
        %v2189 = vshrl.u32 %v2188, 7
        %v2190 = vsub.s32 6, %v2189
        %v2191 = vrot.slane %v1857, %v2190
        %v2192 = vlaneseq
        %v2193 = vshrl.u32 %v2192, 7
        %v2194 = vsub.s32 6, %v2193
        %v2195 = vrot.slane %v1858, %v2194
        %v2196 = vlaneseq
        %v2197 = vshrl.u32 %v2196, 7
        %v2198 = vsub.s32 6, %v2197
        %v2199 = vrot.slane %v1859, %v2198
        %v2200 = vlaneseq
        %v2201 = vshrl.u32 %v2200, 7
        %v2202 = vsub.s32 6, %v2201
        %v2203 = vrot.slane %v1860, %v2202
        %v2204 = vlaneseq
        %v2205 = vshrl.u32 %v2204, 7
        %v2206 = vsub.s32 6, %v2205
        %v2207 = vrot.slane %v1861, %v2206
        %v2208 = vlaneseq
        %v2209 = vshrl.u32 %v2208, 7
        %v2210 = vsub.s32 6, %v2209
        %v2211 = vrot.slane %v1862, %v2210
        %v2212 = vmul.f32 %v2178, %v2183
        %v2213 = vmul.f32 %v2178, %v2187
        %v2214 = vmul.f32 %v2178, %v2191
        %v2215 = vmul.f32 %v2178, %v2195
        %v2216 = vmul.f32 %v2178, %v2199
        %v2217 = vmul.f32 %v2178, %v2203
        %v2218 = vmul.f32 %v2178, %v2207
        %v2219 = vmul.f32 %v2178, %v2211
        %v2220 = vadd.f32 %v2168, %v2212
        %v2221 = vadd.f32 %v2169, %v2213
        %v2222 = vadd.f32 %v2170, %v2214
        %v2223 = vadd.f32 %v2171, %v2215
        %v2224 = vadd.f32 %v2172, %v2216
        %v2225 = vadd.f32 %v2173, %v2217
        %v2226 = vadd.f32 %v2174, %v2218
        %v2227 = vadd.f32 %v2175, %v2219
        %2228 = vset.pattern.permute.xlu0 7
        %2229 = vperm.xlu0 %2228, %v1854
        %v2230 = vpop.permute.xlu0 %2229
        %v2232 = vlaneseq
        %v2233 = vshrl.u32 %v2232, 7
        %v2234 = vsub.s32 7, %v2233
        %v2235 = vrot.slane %v1855, %v2234
        %v2236 = vlaneseq
        %v2237 = vshrl.u32 %v2236, 7
        %v2238 = vsub.s32 7, %v2237
        %v2239 = vrot.slane %v1856, %v2238
        %v2240 = vlaneseq
        %v2241 = vshrl.u32 %v2240, 7
        %v2242 = vsub.s32 7, %v2241
        %v2243 = vrot.slane %v1857, %v2242
        %v2244 = vlaneseq
        %v2245 = vshrl.u32 %v2244, 7
        %v2246 = vsub.s32 7, %v2245
        %v2247 = vrot.slane %v1858, %v2246
        %v2248 = vlaneseq
        %v2249 = vshrl.u32 %v2248, 7
        %v2250 = vsub.s32 7, %v2249
        %v2251 = vrot.slane %v1859, %v2250
        %v2252 = vlaneseq
        %v2253 = vshrl.u32 %v2252, 7
        %v2254 = vsub.s32 7, %v2253
        %v2255 = vrot.slane %v1860, %v2254
        %v2256 = vlaneseq
        %v2257 = vshrl.u32 %v2256, 7
        %v2258 = vsub.s32 7, %v2257
        %v2259 = vrot.slane %v1861, %v2258
        %v2260 = vlaneseq
        %v2261 = vshrl.u32 %v2260, 7
        %v2262 = vsub.s32 7, %v2261
        %v2263 = vrot.slane %v1862, %v2262
        %v2264 = vmul.f32 %v2230, %v2235
        %v2265 = vmul.f32 %v2230, %v2239
        %v2266 = vmul.f32 %v2230, %v2243
        %v2267 = vmul.f32 %v2230, %v2247
        %v2268 = vmul.f32 %v2230, %v2251
        %v2269 = vmul.f32 %v2230, %v2255
        %v2270 = vmul.f32 %v2230, %v2259
        %v2271 = vmul.f32 %v2230, %v2263
        %v2272 = vadd.f32 %v2220, %v2264
        %v2273 = vadd.f32 %v2221, %v2265
        %v2274 = vadd.f32 %v2222, %v2266
        %v2275 = vadd.f32 %v2223, %v2267
        %v2276 = vadd.f32 %v2224, %v2268
        %v2277 = vadd.f32 %v2225, %v2269
        %v2278 = vadd.f32 %v2226, %v2270
        %v2279 = vadd.f32 %v2227, %v2271
        %v2280 = vmax.f32 %v2272, 0.0
        %v2281 = vmax.f32 %v2273, 0.0
        %v2282 = vmax.f32 %v2274, 0.0
        %v2283 = vmax.f32 %v2275, 0.0
        %v2284 = vmax.f32 %v2276, 0.0
        %v2285 = vmax.f32 %v2277, 0.0
        %v2286 = vmax.f32 %v2278, 0.0
        %v2287 = vmax.f32 %v2279, 0.0
        %vm2288 = vcmask 1041408
        %v2289 = vsel %vm2288, %v2280, 0.0
        %v2290 = vrot.slane %v2289, 4
        %v2291 = vadd.f32 %v2289, %v2290
        %v2292 = vrot.slane %v2291, 2
        %v2293 = vadd.f32 %v2291, %v2292
        %v2294 = vrot.slane %v2293, 1
        %v2295 = vadd.f32 %v2293, %v2294
        %v2296 = vsel %vm2288, %v2281, 0.0
        %v2297 = vrot.slane %v2296, 4
        %v2298 = vadd.f32 %v2296, %v2297
        %v2299 = vrot.slane %v2298, 2
        %v2300 = vadd.f32 %v2298, %v2299
        %v2301 = vrot.slane %v2300, 1
        %v2302 = vadd.f32 %v2300, %v2301
        %v2303 = vsel %vm2288, %v2282, 0.0
        %v2304 = vrot.slane %v2303, 4
        %v2305 = vadd.f32 %v2303, %v2304
        %v2306 = vrot.slane %v2305, 2
        %v2307 = vadd.f32 %v2305, %v2306
        %v2308 = vrot.slane %v2307, 1
        %v2309 = vadd.f32 %v2307, %v2308
        %v2310 = vsel %vm2288, %v2283, 0.0
        %v2311 = vrot.slane %v2310, 4
        %v2312 = vadd.f32 %v2310, %v2311
        %v2313 = vrot.slane %v2312, 2
        %v2314 = vadd.f32 %v2312, %v2313
        %v2315 = vrot.slane %v2314, 1
        %v2316 = vadd.f32 %v2314, %v2315
        %v2317 = vsel %vm2288, %v2284, 0.0
        %v2318 = vrot.slane %v2317, 4
        %v2319 = vadd.f32 %v2317, %v2318
        %v2320 = vrot.slane %v2319, 2
        %v2321 = vadd.f32 %v2319, %v2320
        %v2322 = vrot.slane %v2321, 1
        %v2323 = vadd.f32 %v2321, %v2322
        %v2324 = vsel %vm2288, %v2285, 0.0
        %v2325 = vrot.slane %v2324, 4
        %v2326 = vadd.f32 %v2324, %v2325
        %v2327 = vrot.slane %v2326, 2
        %v2328 = vadd.f32 %v2326, %v2327
        %v2329 = vrot.slane %v2328, 1
        %v2330 = vadd.f32 %v2328, %v2329
        %v2331 = vsel %vm2288, %v2286, 0.0
        %v2332 = vrot.slane %v2331, 4
        %v2333 = vadd.f32 %v2331, %v2332
        %v2334 = vrot.slane %v2333, 2
        %v2335 = vadd.f32 %v2333, %v2334
        %v2336 = vrot.slane %v2335, 1
        %v2337 = vadd.f32 %v2335, %v2336
        %v2338 = vsel %vm2288, %v2287, 0.0
        %v2339 = vrot.slane %v2338, 4
        %v2340 = vadd.f32 %v2338, %v2339
        %v2341 = vrot.slane %v2340, 2
        %v2342 = vadd.f32 %v2340, %v2341
        %v2343 = vrot.slane %v2342, 1
        %v2344 = vadd.f32 %v2342, %v2343
        %v2345 = vrcp.pop 2.0
        %v2346 = vmul.f32 %v2295, %v2345
        %v2347 = vmul.f32 %v2302, %v2345
        %v2348 = vmul.f32 %v2309, %v2345
        %v2349 = vmul.f32 %v2316, %v2345
        %v2350 = vmul.f32 %v2323, %v2345
        %v2351 = vmul.f32 %v2330, %v2345
        %v2352 = vmul.f32 %v2337, %v2345
        %v2353 = vmul.f32 %v2344, %v2345
        %v2354 = vsub.f32 %v2280, %v2346
        %v2355 = vsub.f32 %v2281, %v2347
        %v2356 = vsub.f32 %v2282, %v2348
        %v2357 = vsub.f32 %v2283, %v2349
        %v2358 = vsub.f32 %v2284, %v2350
        %v2359 = vsub.f32 %v2285, %v2351
        %v2360 = vsub.f32 %v2286, %v2352
        %v2361 = vsub.f32 %v2287, %v2353
        %v2362 = vmul.f32 %v2354, %v2354
        %v2363 = vmul.f32 %v2355, %v2355
        %v2364 = vmul.f32 %v2356, %v2356
        %v2365 = vmul.f32 %v2357, %v2357
        %v2366 = vmul.f32 %v2358, %v2358
        %v2367 = vmul.f32 %v2359, %v2359
        %v2368 = vmul.f32 %v2360, %v2360
        %v2369 = vmul.f32 %v2361, %v2361
        %v2370 = vsel %vm2288, %v2362, 0.0
        %v2371 = vrot.slane %v2370, 4
        %v2372 = vadd.f32 %v2370, %v2371
        %v2373 = vrot.slane %v2372, 2
        %v2374 = vadd.f32 %v2372, %v2373
        %v2375 = vrot.slane %v2374, 1
        %v2376 = vadd.f32 %v2374, %v2375
        %v2377 = vsel %vm2288, %v2363, 0.0
        %v2378 = vrot.slane %v2377, 4
        %v2379 = vadd.f32 %v2377, %v2378
        %v2380 = vrot.slane %v2379, 2
        %v2381 = vadd.f32 %v2379, %v2380
        %v2382 = vrot.slane %v2381, 1
        %v2383 = vadd.f32 %v2381, %v2382
        %v2384 = vsel %vm2288, %v2364, 0.0
        %v2385 = vrot.slane %v2384, 4
        %v2386 = vadd.f32 %v2384, %v2385
        %v2387 = vrot.slane %v2386, 2
        %v2388 = vadd.f32 %v2386, %v2387
        %v2389 = vrot.slane %v2388, 1
        %v2390 = vadd.f32 %v2388, %v2389
        %v2391 = vsel %vm2288, %v2365, 0.0
        %v2392 = vrot.slane %v2391, 4
        %v2393 = vadd.f32 %v2391, %v2392
        %v2394 = vrot.slane %v2393, 2
        %v2395 = vadd.f32 %v2393, %v2394
        %v2396 = vrot.slane %v2395, 1
        %v2397 = vadd.f32 %v2395, %v2396
        %v2398 = vsel %vm2288, %v2366, 0.0
        %v2399 = vrot.slane %v2398, 4
        %v2400 = vadd.f32 %v2398, %v2399
        %v2401 = vrot.slane %v2400, 2
        %v2402 = vadd.f32 %v2400, %v2401
        %v2403 = vrot.slane %v2402, 1
        %v2404 = vadd.f32 %v2402, %v2403
        %v2405 = vsel %vm2288, %v2367, 0.0
        %v2406 = vrot.slane %v2405, 4
        %v2407 = vadd.f32 %v2405, %v2406
        %v2408 = vrot.slane %v2407, 2
        %v2409 = vadd.f32 %v2407, %v2408
        %v2410 = vrot.slane %v2409, 1
        %v2411 = vadd.f32 %v2409, %v2410
        %v2412 = vsel %vm2288, %v2368, 0.0
        %v2413 = vrot.slane %v2412, 4
        %v2414 = vadd.f32 %v2412, %v2413
        %v2415 = vrot.slane %v2414, 2
        %v2416 = vadd.f32 %v2414, %v2415
        %v2417 = vrot.slane %v2416, 1
        %v2418 = vadd.f32 %v2416, %v2417
        %v2419 = vsel %vm2288, %v2369, 0.0
        %v2420 = vrot.slane %v2419, 4
        %v2421 = vadd.f32 %v2419, %v2420
        %v2422 = vrot.slane %v2421, 2
        %v2423 = vadd.f32 %v2421, %v2422
        %v2424 = vrot.slane %v2423, 1
        %v2425 = vadd.f32 %v2423, %v2424
        %v2426 = vmul.f32 %v2376, %v2345
        %v2427 = vmul.f32 %v2383, %v2345
        %v2428 = vmul.f32 %v2390, %v2345
        %v2429 = vmul.f32 %v2397, %v2345
        %v2430 = vmul.f32 %v2404, %v2345
        %v2431 = vmul.f32 %v2411, %v2345
        %v2432 = vmul.f32 %v2418, %v2345
        %v2433 = vmul.f32 %v2425, %v2345
        %v2434 = vadd.f32 %v2426, 1e-05
        %v2435 = vadd.f32 %v2427, 1e-05
        %v2436 = vadd.f32 %v2428, 1e-05
        %v2437 = vadd.f32 %v2429, 1e-05
        %v2438 = vadd.f32 %v2430, 1e-05
        %v2439 = vadd.f32 %v2431, 1e-05
        %v2440 = vadd.f32 %v2432, 1e-05
        %v2441 = vadd.f32 %v2433, 1e-05
        %v2442 = vrsqrt.pop %v2434
        %v2443 = vrsqrt.pop %v2435
        %v2444 = vrsqrt.pop %v2436
        %v2445 = vrsqrt.pop %v2437
        %v2446 = vrsqrt.pop %v2438
        %v2447 = vrsqrt.pop %v2439
        %v2448 = vrsqrt.pop %v2440
        %v2449 = vrsqrt.pop %v2441
        %v2450 = vmul.f32 %v2354, %v2442
        %v2451 = vmul.f32 %v2355, %v2443
        %v2452 = vmul.f32 %v2356, %v2444
        %v2453 = vmul.f32 %v2357, %v2445
        %v2454 = vmul.f32 %v2358, %v2446
        %v2455 = vmul.f32 %v2359, %v2447
        %v2456 = vmul.f32 %v2360, %v2448
        %v2457 = vmul.f32 %v2361, %v2449
        %v2458 = vld [vmem:[%s668] sm:$0xff]
        %v2460 = vlaneseq
        %v2461 = vshrl.u32 %v2460, 7
        %v2462 = vsub.s32 0, %v2461
        %v2463 = vrot.slane %v2458, %v2462
        %v2464 = vlaneseq
        %v2465 = vshrl.u32 %v2464, 7
        %v2466 = vsub.s32 1, %v2465
        %v2467 = vrot.slane %v2458, %v2466
        %v2468 = vlaneseq
        %v2469 = vshrl.u32 %v2468, 7
        %v2470 = vsub.s32 2, %v2469
        %v2471 = vrot.slane %v2458, %v2470
        %v2472 = vlaneseq
        %v2473 = vshrl.u32 %v2472, 7
        %v2474 = vsub.s32 3, %v2473
        %v2475 = vrot.slane %v2458, %v2474
        %v2476 = vlaneseq
        %v2477 = vshrl.u32 %v2476, 7
        %v2478 = vsub.s32 4, %v2477
        %v2479 = vrot.slane %v2458, %v2478
        %v2480 = vlaneseq
        %v2481 = vshrl.u32 %v2480, 7
        %v2482 = vsub.s32 5, %v2481
        %v2483 = vrot.slane %v2458, %v2482
        %v2484 = vlaneseq
        %v2485 = vshrl.u32 %v2484, 7
        %v2486 = vsub.s32 6, %v2485
        %v2487 = vrot.slane %v2458, %v2486
        %v2488 = vlaneseq
        %v2489 = vshrl.u32 %v2488, 7
        %v2490 = vsub.s32 7, %v2489
        %v2491 = vrot.slane %v2458, %v2490
        %v2500 = vmul.f32 %v2450, %v2463
        %v2501 = vmul.f32 %v2451, %v2467
        %v2502 = vmul.f32 %v2452, %v2471
        %v2503 = vmul.f32 %v2453, %v2475
        %v2504 = vmul.f32 %v2454, %v2479
        %v2505 = vmul.f32 %v2455, %v2483
        %v2506 = vmul.f32 %v2456, %v2487
        %v2507 = vmul.f32 %v2457, %v2491
        %v2508 = vld [vmem:[%s677] sm:$0xff]
        %v2510 = vlaneseq
        %v2511 = vshrl.u32 %v2510, 7
        %v2512 = vsub.s32 0, %v2511
        %v2513 = vrot.slane %v2508, %v2512
        %v2514 = vlaneseq
        %v2515 = vshrl.u32 %v2514, 7
        %v2516 = vsub.s32 1, %v2515
        %v2517 = vrot.slane %v2508, %v2516
        %v2518 = vlaneseq
        %v2519 = vshrl.u32 %v2518, 7
        %v2520 = vsub.s32 2, %v2519
        %v2521 = vrot.slane %v2508, %v2520
        %v2522 = vlaneseq
        %v2523 = vshrl.u32 %v2522, 7
        %v2524 = vsub.s32 3, %v2523
        %v2525 = vrot.slane %v2508, %v2524
        %v2526 = vlaneseq
        %v2527 = vshrl.u32 %v2526, 7
        %v2528 = vsub.s32 4, %v2527
        %v2529 = vrot.slane %v2508, %v2528
        %v2530 = vlaneseq
        %v2531 = vshrl.u32 %v2530, 7
        %v2532 = vsub.s32 5, %v2531
        %v2533 = vrot.slane %v2508, %v2532
        %v2534 = vlaneseq
        %v2535 = vshrl.u32 %v2534, 7
        %v2536 = vsub.s32 6, %v2535
        %v2537 = vrot.slane %v2508, %v2536
        %v2538 = vlaneseq
        %v2539 = vshrl.u32 %v2538, 7
        %v2540 = vsub.s32 7, %v2539
        %v2541 = vrot.slane %v2508, %v2540
        %v2550 = vadd.f32 %v2500, %v2513
        %v2551 = vadd.f32 %v2501, %v2517
        %v2552 = vadd.f32 %v2502, %v2521
        %v2553 = vadd.f32 %v2503, %v2525
        %v2554 = vadd.f32 %v2504, %v2529
        %v2555 = vadd.f32 %v2505, %v2533
        %v2556 = vadd.f32 %v2506, %v2537
        %v2557 = vadd.f32 %v2507, %v2541
        %v2558 = vld [vmem:[%s686] sm:$0xff]
        %v2559 = vld [vmem:[%s686 + $0x8] sm:$0xff]
        %v2560 = vld [vmem:[%s686 + $0x10] sm:$0xff]
        %v2561 = vld [vmem:[%s686 + $0x18] sm:$0xff]
        %v2562 = vld [vmem:[%s686 + $0x20] sm:$0xff]
        %v2563 = vld [vmem:[%s686 + $0x28] sm:$0xff]
        %v2564 = vld [vmem:[%s686 + $0x30] sm:$0xff]
        %v2565 = vld [vmem:[%s686 + $0x38] sm:$0xff]
        %v2566 = vld [vmem:[%s686 + $0x40] sm:$0xff]
        %v2567 = vld [vmem:[%s686 + $0x48] sm:$0xff]
        %v2568 = vld [vmem:[%s686 + $0x50] sm:$0xff]
        %v2569 = vld [vmem:[%s686 + $0x58] sm:$0xff]
        %v2570 = vld [vmem:[%s686 + $0x60] sm:$0xff]
        %v2571 = vld [vmem:[%s686 + $0x68] sm:$0xff]
        %v2572 = vld [vmem:[%s686 + $0x70] sm:$0xff]
        %v2573 = vld [vmem:[%s686 + $0x78] sm:$0xff]
        %v2574 = vld [vmem:[%s686 + $0x80] sm:$0xff]
        %v2575 = vld [vmem:[%s686 + $0x88] sm:$0xff]
        %v2576 = vld [vmem:[%s686 + $0x90] sm:$0xff]
        %v2577 = vld [vmem:[%s686 + $0x98] sm:$0xff]
        %v2578 = vld [vmem:[%s686 + $0xa0] sm:$0xff]
        %v2579 = vld [vmem:[%s686 + $0xa8] sm:$0xff]
        %v2580 = vld [vmem:[%s686 + $0xb0] sm:$0xff]
        %v2581 = vld [vmem:[%s686 + $0xb8] sm:$0xff]
        %v2582 = vld [vmem:[%s686 + $0xc0] sm:$0xff]
        %v2583 = vld [vmem:[%s686 + $0xc8] sm:$0xff]
        %v2584 = vld [vmem:[%s686 + $0xd0] sm:$0xff]
        %v2585 = vld [vmem:[%s686 + $0xd8] sm:$0xff]
        %v2586 = vld [vmem:[%s686 + $0xe0] sm:$0xff]
        %v2587 = vld [vmem:[%s686 + $0xe8] sm:$0xff]
        %v2588 = vld [vmem:[%s686 + $0xf0] sm:$0xff]
        %v2589 = vld [vmem:[%s686 + $0xf8] sm:$0xff]
        %v2590 = vld [vmem:[%s686 + $0x100] sm:$0xff]
        %v2591 = vld [vmem:[%s686 + $0x108] sm:$0xff]
        %v2592 = vld [vmem:[%s686 + $0x110] sm:$0xff]
        %v2593 = vld [vmem:[%s686 + $0x118] sm:$0xff]
        %v2594 = vld [vmem:[%s686 + $0x120] sm:$0xff]
        %v2595 = vld [vmem:[%s686 + $0x128] sm:$0xff]
        %v2596 = vld [vmem:[%s686 + $0x130] sm:$0xff]
        %v2597 = vld [vmem:[%s686 + $0x138] sm:$0xff]
        %v2598 = vld [vmem:[%s686 + $0x140] sm:$0xff]
        %v2599 = vld [vmem:[%s686 + $0x148] sm:$0xff]
        %v2600 = vld [vmem:[%s686 + $0x150] sm:$0xff]
        %v2601 = vld [vmem:[%s686 + $0x158] sm:$0xff]
        %v2602 = vld [vmem:[%s686 + $0x160] sm:$0xff]
        %v2603 = vld [vmem:[%s686 + $0x168] sm:$0xff]
        %v2604 = vld [vmem:[%s686 + $0x170] sm:$0xff]
        %v2605 = vld [vmem:[%s686 + $0x178] sm:$0xff]
        %v2606 = vld [vmem:[%s686 + $0x180] sm:$0xff]
        %v2607 = vld [vmem:[%s686 + $0x188] sm:$0xff]
        %v2608 = vld [vmem:[%s686 + $0x190] sm:$0xff]
        %v2609 = vld [vmem:[%s686 + $0x198] sm:$0xff]
        %v2610 = vld [vmem:[%s686 + $0x1a0] sm:$0xff]
        %v2611 = vld [vmem:[%s686 + $0x1a8] sm:$0xff]
        %v2612 = vld [vmem:[%s686 + $0x1b0] sm:$0xff]
        %v2613 = vld [vmem:[%s686 + $0x1b8] sm:$0xff]
        %v2614 = vld [vmem:[%s686 + $0x1c0] sm:$0xff]
        %v2615 = vld [vmem:[%s686 + $0x1c8] sm:$0xff]
        %v2616 = vld [vmem:[%s686 + $0x1d0] sm:$0xff]
        %v2617 = vld [vmem:[%s686 + $0x1d8] sm:$0xff]
        %v2618 = vld [vmem:[%s686 + $0x1e0] sm:$0xff]
        %v2619 = vld [vmem:[%s686 + $0x1e8] sm:$0xff]
        %v2620 = vld [vmem:[%s686 + $0x1f0] sm:$0xff]
        %v2621 = vld [vmem:[%s686 + $0x1f8] sm:$0xff]
        %v2622 = vld [vmem:[%s686 + $0x200] sm:$0xff]
        %v2623 = vld [vmem:[%s686 + $0x208] sm:$0xff]
        %v2624 = vld [vmem:[%s686 + $0x210] sm:$0xff]
        %v2625 = vld [vmem:[%s686 + $0x218] sm:$0xff]
        %v2626 = vld [vmem:[%s686 + $0x220] sm:$0xff]
        %v2627 = vld [vmem:[%s686 + $0x228] sm:$0xff]
        %v2628 = vld [vmem:[%s686 + $0x230] sm:$0xff]
        %v2629 = vld [vmem:[%s686 + $0x238] sm:$0xff]
        %v2630 = vld [vmem:[%s686 + $0x240] sm:$0xff]
        %v2631 = vld [vmem:[%s686 + $0x248] sm:$0xff]
        %v2632 = vld [vmem:[%s686 + $0x250] sm:$0xff]
        %v2633 = vld [vmem:[%s686 + $0x258] sm:$0xff]
        %v2634 = vld [vmem:[%s686 + $0x260] sm:$0xff]
        %v2635 = vld [vmem:[%s686 + $0x268] sm:$0xff]
        %v2636 = vld [vmem:[%s686 + $0x270] sm:$0xff]
        %v2637 = vld [vmem:[%s686 + $0x278] sm:$0xff]
        %v2638 = vld [vmem:[%s686 + $0x280] sm:$0xff]
        %v2639 = vld [vmem:[%s686 + $0x288] sm:$0xff]
        %v2640 = vld [vmem:[%s686 + $0x290] sm:$0xff]
        %v2641 = vld [vmem:[%s686 + $0x298] sm:$0xff]
        %v2642 = vld [vmem:[%s686 + $0x2a0] sm:$0xff]
        %v2643 = vld [vmem:[%s686 + $0x2a8] sm:$0xff]
        %v2644 = vld [vmem:[%s686 + $0x2b0] sm:$0xff]
        %v2645 = vld [vmem:[%s686 + $0x2b8] sm:$0xff]
        %v2646 = vld [vmem:[%s686 + $0x2c0] sm:$0xff]
        %v2647 = vld [vmem:[%s686 + $0x2c8] sm:$0xff]
        %v2648 = vld [vmem:[%s686 + $0x2d0] sm:$0xff]
        %v2649 = vld [vmem:[%s686 + $0x2d8] sm:$0xff]
        %v2650 = vld [vmem:[%s686 + $0x2e0] sm:$0xff]
        %v2651 = vld [vmem:[%s686 + $0x2e8] sm:$0xff]
        %v2652 = vld [vmem:[%s686 + $0x2f0] sm:$0xff]
        %v2653 = vld [vmem:[%s686 + $0x2f8] sm:$0xff]
        %v2654 = vld [vmem:[%s686 + $0x300] sm:$0xff]
        %v2655 = vld [vmem:[%s686 + $0x308] sm:$0xff]
        %v2656 = vld [vmem:[%s686 + $0x310] sm:$0xff]
        %v2657 = vld [vmem:[%s686 + $0x318] sm:$0xff]
        %v2658 = vld [vmem:[%s686 + $0x320] sm:$0xff]
        %v2659 = vld [vmem:[%s686 + $0x328] sm:$0xff]
        %v2660 = vld [vmem:[%s686 + $0x330] sm:$0xff]
        %v2661 = vld [vmem:[%s686 + $0x338] sm:$0xff]
        %v2662 = vld [vmem:[%s686 + $0x340] sm:$0xff]
        %v2663 = vld [vmem:[%s686 + $0x348] sm:$0xff]
        %v2664 = vld [vmem:[%s686 + $0x350] sm:$0xff]
        %v2665 = vld [vmem:[%s686 + $0x358] sm:$0xff]
        %v2666 = vld [vmem:[%s686 + $0x360] sm:$0xff]
        %v2667 = vld [vmem:[%s686 + $0x368] sm:$0xff]
        %v2668 = vld [vmem:[%s686 + $0x370] sm:$0xff]
        %v2669 = vld [vmem:[%s686 + $0x378] sm:$0xff]
        %v2670 = vld [vmem:[%s686 + $0x380] sm:$0xff]
        %v2671 = vld [vmem:[%s686 + $0x388] sm:$0xff]
        %v2672 = vld [vmem:[%s686 + $0x390] sm:$0xff]
        %v2673 = vld [vmem:[%s686 + $0x398] sm:$0xff]
        %v2674 = vld [vmem:[%s686 + $0x3a0] sm:$0xff]
        %v2675 = vld [vmem:[%s686 + $0x3a8] sm:$0xff]
        %v2676 = vld [vmem:[%s686 + $0x3b0] sm:$0xff]
        %v2677 = vld [vmem:[%s686 + $0x3b8] sm:$0xff]
        %v2678 = vld [vmem:[%s686 + $0x3c0] sm:$0xff]
        %v2679 = vld [vmem:[%s686 + $0x3c8] sm:$0xff]
        %v2680 = vld [vmem:[%s686 + $0x3d0] sm:$0xff]
        %v2681 = vld [vmem:[%s686 + $0x3d8] sm:$0xff]
        %v2682 = vld [vmem:[%s686 + $0x3e0] sm:$0xff]
        %v2683 = vld [vmem:[%s686 + $0x3e8] sm:$0xff]
        %v2684 = vld [vmem:[%s686 + $0x3f0] sm:$0xff]
        %v2685 = vld [vmem:[%s686 + $0x3f8] sm:$0xff]
        %v2686 = vld [vmem:[%s686 + $0x400] sm:$0xff]
        %v2687 = vld [vmem:[%s686 + $0x408] sm:$0xff]
        %v2688 = vld [vmem:[%s686 + $0x410] sm:$0xff]
        %v2689 = vld [vmem:[%s686 + $0x418] sm:$0xff]
        %v2690 = vld [vmem:[%s686 + $0x420] sm:$0xff]
        %v2691 = vld [vmem:[%s686 + $0x428] sm:$0xff]
        %v2692 = vld [vmem:[%s686 + $0x430] sm:$0xff]
        %v2693 = vld [vmem:[%s686 + $0x438] sm:$0xff]
        %v2694 = vld [vmem:[%s686 + $0x440] sm:$0xff]
        %v2695 = vld [vmem:[%s686 + $0x448] sm:$0xff]
        %v2696 = vld [vmem:[%s686 + $0x450] sm:$0xff]
        %v2697 = vld [vmem:[%s686 + $0x458] sm:$0xff]
        %v2698 = vld [vmem:[%s686 + $0x460] sm:$0xff]
        %v2699 = vld [vmem:[%s686 + $0x468] sm:$0xff]
        %v2700 = vld [vmem:[%s686 + $0x470] sm:$0xff]
        %v2701 = vld [vmem:[%s686 + $0x478] sm:$0xff]
        %v2702 = vld [vmem:[%s686 + $0x480] sm:$0xff]
        %v2703 = vld [vmem:[%s686 + $0x488] sm:$0xff]
        %v2704 = vld [vmem:[%s686 + $0x490] sm:$0xff]
        %v2705 = vld [vmem:[%s686 + $0x498] sm:$0xff]
        %v2706 = vld [vmem:[%s686 + $0x4a0] sm:$0xff]
        %v2707 = vld [vmem:[%s686 + $0x4a8] sm:$0xff]
        %v2708 = vld [vmem:[%s686 + $0x4b0] sm:$0xff]
        %v2709 = vld [vmem:[%s686 + $0x4b8] sm:$0xff]
        %v2710 = vld [vmem:[%s686 + $0x4c0] sm:$0xff]
        %v2711 = vld [vmem:[%s686 + $0x4c8] sm:$0xff]
        %v2712 = vld [vmem:[%s686 + $0x4d0] sm:$0xff]
        %v2713 = vld [vmem:[%s686 + $0x4d8] sm:$0xff]
        %v2714 = vld [vmem:[%s686 + $0x4e0] sm:$0xff]
        %v2715 = vld [vmem:[%s686 + $0x4e8] sm:$0xff]
        %v2716 = vld [vmem:[%s686 + $0x4f0] sm:$0xff]
        %v2717 = vld [vmem:[%s686 + $0x4f8] sm:$0xff]
        %v2718 = vld [vmem:[%s686 + $0x500] sm:$0xff]
        %v2719 = vld [vmem:[%s686 + $0x508] sm:$0xff]
        %v2720 = vld [vmem:[%s686 + $0x510] sm:$0xff]
        %v2721 = vld [vmem:[%s686 + $0x518] sm:$0xff]
        %v2722 = vld [vmem:[%s686 + $0x520] sm:$0xff]
        %v2723 = vld [vmem:[%s686 + $0x528] sm:$0xff]
        %v2724 = vld [vmem:[%s686 + $0x530] sm:$0xff]
        %v2725 = vld [vmem:[%s686 + $0x538] sm:$0xff]
        %v2726 = vld [vmem:[%s686 + $0x540] sm:$0xff]
        %v2727 = vld [vmem:[%s686 + $0x548] sm:$0xff]
        %v2728 = vld [vmem:[%s686 + $0x550] sm:$0xff]
        %v2729 = vld [vmem:[%s686 + $0x558] sm:$0xff]
        %v2730 = vld [vmem:[%s686 + $0x560] sm:$0xff]
        %v2731 = vld [vmem:[%s686 + $0x568] sm:$0xff]
        %v2732 = vld [vmem:[%s686 + $0x570] sm:$0xff]
        %v2733 = vld [vmem:[%s686 + $0x578] sm:$0xff]
        %v2734 = vld [vmem:[%s686 + $0x580] sm:$0xff]
        %v2735 = vld [vmem:[%s686 + $0x588] sm:$0xff]
        %v2736 = vld [vmem:[%s686 + $0x590] sm:$0xff]
        %v2737 = vld [vmem:[%s686 + $0x598] sm:$0xff]
        %v2738 = vld [vmem:[%s686 + $0x5a0] sm:$0xff]
        %v2739 = vld [vmem:[%s686 + $0x5a8] sm:$0xff]
        %v2740 = vld [vmem:[%s686 + $0x5b0] sm:$0xff]
        %v2741 = vld [vmem:[%s686 + $0x5b8] sm:$0xff]
        %v2742 = vld [vmem:[%s686 + $0x5c0] sm:$0xff]
        %v2743 = vld [vmem:[%s686 + $0x5c8] sm:$0xff]
        %v2744 = vld [vmem:[%s686 + $0x5d0] sm:$0xff]
        %v2745 = vld [vmem:[%s686 + $0x5d8] sm:$0xff]
        %v2746 = vld [vmem:[%s686 + $0x5e0] sm:$0xff]
        %v2747 = vld [vmem:[%s686 + $0x5e8] sm:$0xff]
        %v2748 = vld [vmem:[%s686 + $0x5f0] sm:$0xff]
        %v2749 = vld [vmem:[%s686 + $0x5f8] sm:$0xff]
        %v2750 = vld [vmem:[%s686 + $0x600] sm:$0xff]
        %v2751 = vld [vmem:[%s686 + $0x608] sm:$0xff]
        %v2752 = vld [vmem:[%s686 + $0x610] sm:$0xff]
        %v2753 = vld [vmem:[%s686 + $0x618] sm:$0xff]
        %v2754 = vld [vmem:[%s686 + $0x620] sm:$0xff]
        %v2755 = vld [vmem:[%s686 + $0x628] sm:$0xff]
        %v2756 = vld [vmem:[%s686 + $0x630] sm:$0xff]
        %v2757 = vld [vmem:[%s686 + $0x638] sm:$0xff]
        %v2758 = vld [vmem:[%s686 + $0x640] sm:$0xff]
        %v2759 = vld [vmem:[%s686 + $0x648] sm:$0xff]
        %v2760 = vld [vmem:[%s686 + $0x650] sm:$0xff]
        %v2761 = vld [vmem:[%s686 + $0x658] sm:$0xff]
        %v2762 = vld [vmem:[%s686 + $0x660] sm:$0xff]
        %v2763 = vld [vmem:[%s686 + $0x668] sm:$0xff]
        %v2764 = vld [vmem:[%s686 + $0x670] sm:$0xff]
        %v2765 = vld [vmem:[%s686 + $0x678] sm:$0xff]
        %v2766 = vld [vmem:[%s686 + $0x680] sm:$0xff]
        %v2767 = vld [vmem:[%s686 + $0x688] sm:$0xff]
        %v2768 = vld [vmem:[%s686 + $0x690] sm:$0xff]
        %v2769 = vld [vmem:[%s686 + $0x698] sm:$0xff]
        %v2770 = vld [vmem:[%s686 + $0x6a0] sm:$0xff]
        %v2771 = vld [vmem:[%s686 + $0x6a8] sm:$0xff]
        %v2772 = vld [vmem:[%s686 + $0x6b0] sm:$0xff]
        %v2773 = vld [vmem:[%s686 + $0x6b8] sm:$0xff]
        %v2774 = vld [vmem:[%s686 + $0x6c0] sm:$0xff]
        %v2775 = vld [vmem:[%s686 + $0x6c8] sm:$0xff]
        %v2776 = vld [vmem:[%s686 + $0x6d0] sm:$0xff]
        %v2777 = vld [vmem:[%s686 + $0x6d8] sm:$0xff]
        %v2778 = vld [vmem:[%s686 + $0x6e0] sm:$0xff]
        %v2779 = vld [vmem:[%s686 + $0x6e8] sm:$0xff]
        %v2780 = vld [vmem:[%s686 + $0x6f0] sm:$0xff]
        %v2781 = vld [vmem:[%s686 + $0x6f8] sm:$0xff]
        %v2782 = vld [vmem:[%s686 + $0x700] sm:$0xff]
        %v2783 = vld [vmem:[%s686 + $0x708] sm:$0xff]
        %v2784 = vld [vmem:[%s686 + $0x710] sm:$0xff]
        %v2785 = vld [vmem:[%s686 + $0x718] sm:$0xff]
        %v2786 = vld [vmem:[%s686 + $0x720] sm:$0xff]
        %v2787 = vld [vmem:[%s686 + $0x728] sm:$0xff]
        %v2788 = vld [vmem:[%s686 + $0x730] sm:$0xff]
        %v2789 = vld [vmem:[%s686 + $0x738] sm:$0xff]
        %v2790 = vld [vmem:[%s686 + $0x740] sm:$0xff]
        %v2791 = vld [vmem:[%s686 + $0x748] sm:$0xff]
        %v2792 = vld [vmem:[%s686 + $0x750] sm:$0xff]
        %v2793 = vld [vmem:[%s686 + $0x758] sm:$0xff]
        %v2794 = vld [vmem:[%s686 + $0x760] sm:$0xff]
        %v2795 = vld [vmem:[%s686 + $0x768] sm:$0xff]
        %v2796 = vld [vmem:[%s686 + $0x770] sm:$0xff]
        %v2797 = vld [vmem:[%s686 + $0x778] sm:$0xff]
        %v2798 = vld [vmem:[%s686 + $0x780] sm:$0xff]
        %v2799 = vld [vmem:[%s686 + $0x788] sm:$0xff]
        %v2800 = vld [vmem:[%s686 + $0x790] sm:$0xff]
        %v2801 = vld [vmem:[%s686 + $0x798] sm:$0xff]
        %v2802 = vld [vmem:[%s686 + $0x7a0] sm:$0xff]
        %v2803 = vld [vmem:[%s686 + $0x7a8] sm:$0xff]
        %v2804 = vld [vmem:[%s686 + $0x7b0] sm:$0xff]
        %v2805 = vld [vmem:[%s686 + $0x7b8] sm:$0xff]
        %v2806 = vld [vmem:[%s686 + $0x7c0] sm:$0xff]
        %v2807 = vld [vmem:[%s686 + $0x7c8] sm:$0xff]
        %v2808 = vld [vmem:[%s686 + $0x7d0] sm:$0xff]
        %v2809 = vld [vmem:[%s686 + $0x7d8] sm:$0xff]
        %v2810 = vld [vmem:[%s686 + $0x7e0] sm:$0xff]
        %v2811 = vld [vmem:[%s686 + $0x7e8] sm:$0xff]
        %v2812 = vld [vmem:[%s686 + $0x7f0] sm:$0xff]
        %v2813 = vld [vmem:[%s686 + $0x7f8] sm:$0xff]
        %v2814 = vunpack.c.l.s8.bf16 %v2558
        %v2815 = vunpack.c.l.s8.bf16 %v2559
        %v2816 = vunpack.c.l.s8.bf16 %v2560
        %v2817 = vunpack.c.l.s8.bf16 %v2561
        %v2818 = vunpack.c.l.s8.bf16 %v2562
        %v2819 = vunpack.c.l.s8.bf16 %v2563
        %v2820 = vunpack.c.l.s8.bf16 %v2564
        %v2821 = vunpack.c.l.s8.bf16 %v2565
        %v2822 = vunpack.c.h.s8.bf16 %v2558
        %v2823 = vunpack.c.h.s8.bf16 %v2559
        %v2824 = vunpack.c.h.s8.bf16 %v2560
        %v2825 = vunpack.c.h.s8.bf16 %v2561
        %v2826 = vunpack.c.h.s8.bf16 %v2562
        %v2827 = vunpack.c.h.s8.bf16 %v2563
        %v2828 = vunpack.c.h.s8.bf16 %v2564
        %v2829 = vunpack.c.h.s8.bf16 %v2565
        %v2830 = vunpack.c.l.s8.bf16 %v2566
        %v2831 = vunpack.c.l.s8.bf16 %v2567
        %v2832 = vunpack.c.l.s8.bf16 %v2568
        %v2833 = vunpack.c.l.s8.bf16 %v2569
        %v2834 = vunpack.c.l.s8.bf16 %v2570
        %v2835 = vunpack.c.l.s8.bf16 %v2571
        %v2836 = vunpack.c.l.s8.bf16 %v2572
        %v2837 = vunpack.c.l.s8.bf16 %v2573
        %v2838 = vunpack.c.h.s8.bf16 %v2566
        %v2839 = vunpack.c.h.s8.bf16 %v2567
        %v2840 = vunpack.c.h.s8.bf16 %v2568
        %v2841 = vunpack.c.h.s8.bf16 %v2569
        %v2842 = vunpack.c.h.s8.bf16 %v2570
        %v2843 = vunpack.c.h.s8.bf16 %v2571
        %v2844 = vunpack.c.h.s8.bf16 %v2572
        %v2845 = vunpack.c.h.s8.bf16 %v2573
        %v2846 = vunpack.c.l.s8.bf16 %v2574
        %v2847 = vunpack.c.l.s8.bf16 %v2575
        %v2848 = vunpack.c.l.s8.bf16 %v2576
        %v2849 = vunpack.c.l.s8.bf16 %v2577
        %v2850 = vunpack.c.l.s8.bf16 %v2578
        %v2851 = vunpack.c.l.s8.bf16 %v2579
        %v2852 = vunpack.c.l.s8.bf16 %v2580
        %v2853 = vunpack.c.l.s8.bf16 %v2581
        %v2854 = vunpack.c.h.s8.bf16 %v2574
        %v2855 = vunpack.c.h.s8.bf16 %v2575
        %v2856 = vunpack.c.h.s8.bf16 %v2576
        %v2857 = vunpack.c.h.s8.bf16 %v2577
        %v2858 = vunpack.c.h.s8.bf16 %v2578
        %v2859 = vunpack.c.h.s8.bf16 %v2579
        %v2860 = vunpack.c.h.s8.bf16 %v2580
        %v2861 = vunpack.c.h.s8.bf16 %v2581
        %v2862 = vunpack.c.l.s8.bf16 %v2582
        %v2863 = vunpack.c.l.s8.bf16 %v2583
        %v2864 = vunpack.c.l.s8.bf16 %v2584
        %v2865 = vunpack.c.l.s8.bf16 %v2585
        %v2866 = vunpack.c.l.s8.bf16 %v2586
        %v2867 = vunpack.c.l.s8.bf16 %v2587
        %v2868 = vunpack.c.l.s8.bf16 %v2588
        %v2869 = vunpack.c.l.s8.bf16 %v2589
        %v2870 = vunpack.c.h.s8.bf16 %v2582
        %v2871 = vunpack.c.h.s8.bf16 %v2583
        %v2872 = vunpack.c.h.s8.bf16 %v2584
        %v2873 = vunpack.c.h.s8.bf16 %v2585
        %v2874 = vunpack.c.h.s8.bf16 %v2586
        %v2875 = vunpack.c.h.s8.bf16 %v2587
        %v2876 = vunpack.c.h.s8.bf16 %v2588
        %v2877 = vunpack.c.h.s8.bf16 %v2589
        %v2878 = vunpack.c.l.s8.bf16 %v2590
        %v2879 = vunpack.c.l.s8.bf16 %v2591
        %v2880 = vunpack.c.l.s8.bf16 %v2592
        %v2881 = vunpack.c.l.s8.bf16 %v2593
        %v2882 = vunpack.c.l.s8.bf16 %v2594
        %v2883 = vunpack.c.l.s8.bf16 %v2595
        %v2884 = vunpack.c.l.s8.bf16 %v2596
        %v2885 = vunpack.c.l.s8.bf16 %v2597
        %v2886 = vunpack.c.h.s8.bf16 %v2590
        %v2887 = vunpack.c.h.s8.bf16 %v2591
        %v2888 = vunpack.c.h.s8.bf16 %v2592
        %v2889 = vunpack.c.h.s8.bf16 %v2593
        %v2890 = vunpack.c.h.s8.bf16 %v2594
        %v2891 = vunpack.c.h.s8.bf16 %v2595
        %v2892 = vunpack.c.h.s8.bf16 %v2596
        %v2893 = vunpack.c.h.s8.bf16 %v2597
        %v2894 = vunpack.c.l.s8.bf16 %v2598
        %v2895 = vunpack.c.l.s8.bf16 %v2599
        %v2896 = vunpack.c.l.s8.bf16 %v2600
        %v2897 = vunpack.c.l.s8.bf16 %v2601
        %v2898 = vunpack.c.l.s8.bf16 %v2602
        %v2899 = vunpack.c.l.s8.bf16 %v2603
        %v2900 = vunpack.c.l.s8.bf16 %v2604
        %v2901 = vunpack.c.l.s8.bf16 %v2605
        %v2902 = vunpack.c.h.s8.bf16 %v2598
        %v2903 = vunpack.c.h.s8.bf16 %v2599
        %v2904 = vunpack.c.h.s8.bf16 %v2600
        %v2905 = vunpack.c.h.s8.bf16 %v2601
        %v2906 = vunpack.c.h.s8.bf16 %v2602
        %v2907 = vunpack.c.h.s8.bf16 %v2603
        %v2908 = vunpack.c.h.s8.bf16 %v2604
        %v2909 = vunpack.c.h.s8.bf16 %v2605
        %v2910 = vunpack.c.l.s8.bf16 %v2606
        %v2911 = vunpack.c.l.s8.bf16 %v2607
        %v2912 = vunpack.c.l.s8.bf16 %v2608
        %v2913 = vunpack.c.l.s8.bf16 %v2609
        %v2914 = vunpack.c.l.s8.bf16 %v2610
        %v2915 = vunpack.c.l.s8.bf16 %v2611
        %v2916 = vunpack.c.l.s8.bf16 %v2612
        %v2917 = vunpack.c.l.s8.bf16 %v2613
        %v2918 = vunpack.c.h.s8.bf16 %v2606
        %v2919 = vunpack.c.h.s8.bf16 %v2607
        %v2920 = vunpack.c.h.s8.bf16 %v2608
        %v2921 = vunpack.c.h.s8.bf16 %v2609
        %v2922 = vunpack.c.h.s8.bf16 %v2610
        %v2923 = vunpack.c.h.s8.bf16 %v2611
        %v2924 = vunpack.c.h.s8.bf16 %v2612
        %v2925 = vunpack.c.h.s8.bf16 %v2613
        %v2926 = vunpack.c.l.s8.bf16 %v2614
        %v2927 = vunpack.c.l.s8.bf16 %v2615
        %v2928 = vunpack.c.l.s8.bf16 %v2616
        %v2929 = vunpack.c.l.s8.bf16 %v2617
        %v2930 = vunpack.c.l.s8.bf16 %v2618
        %v2931 = vunpack.c.l.s8.bf16 %v2619
        %v2932 = vunpack.c.l.s8.bf16 %v2620
        %v2933 = vunpack.c.l.s8.bf16 %v2621
        %v2934 = vunpack.c.h.s8.bf16 %v2614
        %v2935 = vunpack.c.h.s8.bf16 %v2615
        %v2936 = vunpack.c.h.s8.bf16 %v2616
        %v2937 = vunpack.c.h.s8.bf16 %v2617
        %v2938 = vunpack.c.h.s8.bf16 %v2618
        %v2939 = vunpack.c.h.s8.bf16 %v2619
        %v2940 = vunpack.c.h.s8.bf16 %v2620
        %v2941 = vunpack.c.h.s8.bf16 %v2621
        %v2942 = vunpack.c.l.s8.bf16 %v2622
        %v2943 = vunpack.c.l.s8.bf16 %v2623
        %v2944 = vunpack.c.l.s8.bf16 %v2624
        %v2945 = vunpack.c.l.s8.bf16 %v2625
        %v2946 = vunpack.c.l.s8.bf16 %v2626
        %v2947 = vunpack.c.l.s8.bf16 %v2627
        %v2948 = vunpack.c.l.s8.bf16 %v2628
        %v2949 = vunpack.c.l.s8.bf16 %v2629
        %v2950 = vunpack.c.h.s8.bf16 %v2622
        %v2951 = vunpack.c.h.s8.bf16 %v2623
        %v2952 = vunpack.c.h.s8.bf16 %v2624
        %v2953 = vunpack.c.h.s8.bf16 %v2625
        %v2954 = vunpack.c.h.s8.bf16 %v2626
        %v2955 = vunpack.c.h.s8.bf16 %v2627
        %v2956 = vunpack.c.h.s8.bf16 %v2628
        %v2957 = vunpack.c.h.s8.bf16 %v2629
        %v2958 = vunpack.c.l.s8.bf16 %v2630
        %v2959 = vunpack.c.l.s8.bf16 %v2631
        %v2960 = vunpack.c.l.s8.bf16 %v2632
        %v2961 = vunpack.c.l.s8.bf16 %v2633
        %v2962 = vunpack.c.l.s8.bf16 %v2634
        %v2963 = vunpack.c.l.s8.bf16 %v2635
        %v2964 = vunpack.c.l.s8.bf16 %v2636
        %v2965 = vunpack.c.l.s8.bf16 %v2637
        %v2966 = vunpack.c.h.s8.bf16 %v2630
        %v2967 = vunpack.c.h.s8.bf16 %v2631
        %v2968 = vunpack.c.h.s8.bf16 %v2632
        %v2969 = vunpack.c.h.s8.bf16 %v2633
        %v2970 = vunpack.c.h.s8.bf16 %v2634
        %v2971 = vunpack.c.h.s8.bf16 %v2635
        %v2972 = vunpack.c.h.s8.bf16 %v2636
        %v2973 = vunpack.c.h.s8.bf16 %v2637
        %v2974 = vunpack.c.l.s8.bf16 %v2638
        %v2975 = vunpack.c.l.s8.bf16 %v2639
        %v2976 = vunpack.c.l.s8.bf16 %v2640
        %v2977 = vunpack.c.l.s8.bf16 %v2641
        %v2978 = vunpack.c.l.s8.bf16 %v2642
        %v2979 = vunpack.c.l.s8.bf16 %v2643
        %v2980 = vunpack.c.l.s8.bf16 %v2644
        %v2981 = vunpack.c.l.s8.bf16 %v2645
        %v2982 = vunpack.c.h.s8.bf16 %v2638
        %v2983 = vunpack.c.h.s8.bf16 %v2639
        %v2984 = vunpack.c.h.s8.bf16 %v2640
        %v2985 = vunpack.c.h.s8.bf16 %v2641
        %v2986 = vunpack.c.h.s8.bf16 %v2642
        %v2987 = vunpack.c.h.s8.bf16 %v2643
        %v2988 = vunpack.c.h.s8.bf16 %v2644
        %v2989 = vunpack.c.h.s8.bf16 %v2645
        %v2990 = vunpack.c.l.s8.bf16 %v2646
        %v2991 = vunpack.c.l.s8.bf16 %v2647
        %v2992 = vunpack.c.l.s8.bf16 %v2648
        %v2993 = vunpack.c.l.s8.bf16 %v2649
        %v2994 = vunpack.c.l.s8.bf16 %v2650
        %v2995 = vunpack.c.l.s8.bf16 %v2651
        %v2996 = vunpack.c.l.s8.bf16 %v2652
        %v2997 = vunpack.c.l.s8.bf16 %v2653
        %v2998 = vunpack.c.h.s8.bf16 %v2646
        %v2999 = vunpack.c.h.s8.bf16 %v2647
        %v3000 = vunpack.c.h.s8.bf16 %v2648
        %v3001 = vunpack.c.h.s8.bf16 %v2649
        %v3002 = vunpack.c.h.s8.bf16 %v2650
        %v3003 = vunpack.c.h.s8.bf16 %v2651
        %v3004 = vunpack.c.h.s8.bf16 %v2652
        %v3005 = vunpack.c.h.s8.bf16 %v2653
        %v3006 = vunpack.c.l.s8.bf16 %v2654
        %v3007 = vunpack.c.l.s8.bf16 %v2655
        %v3008 = vunpack.c.l.s8.bf16 %v2656
        %v3009 = vunpack.c.l.s8.bf16 %v2657
        %v3010 = vunpack.c.l.s8.bf16 %v2658
        %v3011 = vunpack.c.l.s8.bf16 %v2659
        %v3012 = vunpack.c.l.s8.bf16 %v2660
        %v3013 = vunpack.c.l.s8.bf16 %v2661
        %v3014 = vunpack.c.h.s8.bf16 %v2654
        %v3015 = vunpack.c.h.s8.bf16 %v2655
        %v3016 = vunpack.c.h.s8.bf16 %v2656
        %v3017 = vunpack.c.h.s8.bf16 %v2657
        %v3018 = vunpack.c.h.s8.bf16 %v2658
        %v3019 = vunpack.c.h.s8.bf16 %v2659
        %v3020 = vunpack.c.h.s8.bf16 %v2660
        %v3021 = vunpack.c.h.s8.bf16 %v2661
        %v3022 = vunpack.c.l.s8.bf16 %v2662
        %v3023 = vunpack.c.l.s8.bf16 %v2663
        %v3024 = vunpack.c.l.s8.bf16 %v2664
        %v3025 = vunpack.c.l.s8.bf16 %v2665
        %v3026 = vunpack.c.l.s8.bf16 %v2666
        %v3027 = vunpack.c.l.s8.bf16 %v2667
        %v3028 = vunpack.c.l.s8.bf16 %v2668
        %v3029 = vunpack.c.l.s8.bf16 %v2669
        %v3030 = vunpack.c.h.s8.bf16 %v2662
        %v3031 = vunpack.c.h.s8.bf16 %v2663
        %v3032 = vunpack.c.h.s8.bf16 %v2664
        %v3033 = vunpack.c.h.s8.bf16 %v2665
        %v3034 = vunpack.c.h.s8.bf16 %v2666
        %v3035 = vunpack.c.h.s8.bf16 %v2667
        %v3036 = vunpack.c.h.s8.bf16 %v2668
        %v3037 = vunpack.c.h.s8.bf16 %v2669
        %v3038 = vunpack.c.l.s8.bf16 %v2670
        %v3039 = vunpack.c.l.s8.bf16 %v2671
        %v3040 = vunpack.c.l.s8.bf16 %v2672
        %v3041 = vunpack.c.l.s8.bf16 %v2673
        %v3042 = vunpack.c.l.s8.bf16 %v2674
        %v3043 = vunpack.c.l.s8.bf16 %v2675
        %v3044 = vunpack.c.l.s8.bf16 %v2676
        %v3045 = vunpack.c.l.s8.bf16 %v2677
        %v3046 = vunpack.c.h.s8.bf16 %v2670
        %v3047 = vunpack.c.h.s8.bf16 %v2671
        %v3048 = vunpack.c.h.s8.bf16 %v2672
        %v3049 = vunpack.c.h.s8.bf16 %v2673
        %v3050 = vunpack.c.h.s8.bf16 %v2674
        %v3051 = vunpack.c.h.s8.bf16 %v2675
        %v3052 = vunpack.c.h.s8.bf16 %v2676
        %v3053 = vunpack.c.h.s8.bf16 %v2677
        %v3054 = vunpack.c.l.s8.bf16 %v2678
        %v3055 = vunpack.c.l.s8.bf16 %v2679
        %v3056 = vunpack.c.l.s8.bf16 %v2680
        %v3057 = vunpack.c.l.s8.bf16 %v2681
        %v3058 = vunpack.c.l.s8.bf16 %v2682
        %v3059 = vunpack.c.l.s8.bf16 %v2683
        %v3060 = vunpack.c.l.s8.bf16 %v2684
        %v3061 = vunpack.c.l.s8.bf16 %v2685
        %v3062 = vunpack.c.h.s8.bf16 %v2678
        %v3063 = vunpack.c.h.s8.bf16 %v2679
        %v3064 = vunpack.c.h.s8.bf16 %v2680
        %v3065 = vunpack.c.h.s8.bf16 %v2681
        %v3066 = vunpack.c.h.s8.bf16 %v2682
        %v3067 = vunpack.c.h.s8.bf16 %v2683
        %v3068 = vunpack.c.h.s8.bf16 %v2684
        %v3069 = vunpack.c.h.s8.bf16 %v2685
        %v3070 = vunpack.c.l.s8.bf16 %v2686
        %v3071 = vunpack.c.l.s8.bf16 %v2687
        %v3072 = vunpack.c.l.s8.bf16 %v2688
        %v3073 = vunpack.c.l.s8.bf16 %v2689
        %v3074 = vunpack.c.l.s8.bf16 %v2690
        %v3075 = vunpack.c.l.s8.bf16 %v2691
        %v3076 = vunpack.c.l.s8.bf16 %v2692
        %v3077 = vunpack.c.l.s8.bf16 %v2693
        %v3078 = vunpack.c.h.s8.bf16 %v2686
        %v3079 = vunpack.c.h.s8.bf16 %v2687
        %v3080 = vunpack.c.h.s8.bf16 %v2688
        %v3081 = vunpack.c.h.s8.bf16 %v2689
        %v3082 = vunpack.c.h.s8.bf16 %v2690
        %v3083 = vunpack.c.h.s8.bf16 %v2691
        %v3084 = vunpack.c.h.s8.bf16 %v2692
        %v3085 = vunpack.c.h.s8.bf16 %v2693
        %v3086 = vunpack.c.l.s8.bf16 %v2694
        %v3087 = vunpack.c.l.s8.bf16 %v2695
        %v3088 = vunpack.c.l.s8.bf16 %v2696
        %v3089 = vunpack.c.l.s8.bf16 %v2697
        %v3090 = vunpack.c.l.s8.bf16 %v2698
        %v3091 = vunpack.c.l.s8.bf16 %v2699
        %v3092 = vunpack.c.l.s8.bf16 %v2700
        %v3093 = vunpack.c.l.s8.bf16 %v2701
        %v3094 = vunpack.c.h.s8.bf16 %v2694
        %v3095 = vunpack.c.h.s8.bf16 %v2695
        %v3096 = vunpack.c.h.s8.bf16 %v2696
        %v3097 = vunpack.c.h.s8.bf16 %v2697
        %v3098 = vunpack.c.h.s8.bf16 %v2698
        %v3099 = vunpack.c.h.s8.bf16 %v2699
        %v3100 = vunpack.c.h.s8.bf16 %v2700
        %v3101 = vunpack.c.h.s8.bf16 %v2701
        %v3102 = vunpack.c.l.s8.bf16 %v2702
        %v3103 = vunpack.c.l.s8.bf16 %v2703
        %v3104 = vunpack.c.l.s8.bf16 %v2704
        %v3105 = vunpack.c.l.s8.bf16 %v2705
        %v3106 = vunpack.c.l.s8.bf16 %v2706
        %v3107 = vunpack.c.l.s8.bf16 %v2707
        %v3108 = vunpack.c.l.s8.bf16 %v2708
        %v3109 = vunpack.c.l.s8.bf16 %v2709
        %v3110 = vunpack.c.h.s8.bf16 %v2702
        %v3111 = vunpack.c.h.s8.bf16 %v2703
        %v3112 = vunpack.c.h.s8.bf16 %v2704
        %v3113 = vunpack.c.h.s8.bf16 %v2705
        %v3114 = vunpack.c.h.s8.bf16 %v2706
        %v3115 = vunpack.c.h.s8.bf16 %v2707
        %v3116 = vunpack.c.h.s8.bf16 %v2708
        %v3117 = vunpack.c.h.s8.bf16 %v2709
        %v3118 = vunpack.c.l.s8.bf16 %v2710
        %v3119 = vunpack.c.l.s8.bf16 %v2711
        %v3120 = vunpack.c.l.s8.bf16 %v2712
        %v3121 = vunpack.c.l.s8.bf16 %v2713
        %v3122 = vunpack.c.l.s8.bf16 %v2714
        %v3123 = vunpack.c.l.s8.bf16 %v2715
        %v3124 = vunpack.c.l.s8.bf16 %v2716
        %v3125 = vunpack.c.l.s8.bf16 %v2717
        %v3126 = vunpack.c.h.s8.bf16 %v2710
        %v3127 = vunpack.c.h.s8.bf16 %v2711
        %v3128 = vunpack.c.h.s8.bf16 %v2712
        %v3129 = vunpack.c.h.s8.bf16 %v2713
        %v3130 = vunpack.c.h.s8.bf16 %v2714
        %v3131 = vunpack.c.h.s8.bf16 %v2715
        %v3132 = vunpack.c.h.s8.bf16 %v2716
        %v3133 = vunpack.c.h.s8.bf16 %v2717
        %v3134 = vunpack.c.l.s8.bf16 %v2718
        %v3135 = vunpack.c.l.s8.bf16 %v2719
        %v3136 = vunpack.c.l.s8.bf16 %v2720
        %v3137 = vunpack.c.l.s8.bf16 %v2721
        %v3138 = vunpack.c.l.s8.bf16 %v2722
        %v3139 = vunpack.c.l.s8.bf16 %v2723
        %v3140 = vunpack.c.l.s8.bf16 %v2724
        %v3141 = vunpack.c.l.s8.bf16 %v2725
        %v3142 = vunpack.c.h.s8.bf16 %v2718
        %v3143 = vunpack.c.h.s8.bf16 %v2719
        %v3144 = vunpack.c.h.s8.bf16 %v2720
        %v3145 = vunpack.c.h.s8.bf16 %v2721
        %v3146 = vunpack.c.h.s8.bf16 %v2722
        %v3147 = vunpack.c.h.s8.bf16 %v2723
        %v3148 = vunpack.c.h.s8.bf16 %v2724
        %v3149 = vunpack.c.h.s8.bf16 %v2725
        %v3150 = vunpack.c.l.s8.bf16 %v2726
        %v3151 = vunpack.c.l.s8.bf16 %v2727
        %v3152 = vunpack.c.l.s8.bf16 %v2728
        %v3153 = vunpack.c.l.s8.bf16 %v2729
        %v3154 = vunpack.c.l.s8.bf16 %v2730
        %v3155 = vunpack.c.l.s8.bf16 %v2731
        %v3156 = vunpack.c.l.s8.bf16 %v2732
        %v3157 = vunpack.c.l.s8.bf16 %v2733
        %v3158 = vunpack.c.h.s8.bf16 %v2726
        %v3159 = vunpack.c.h.s8.bf16 %v2727
        %v3160 = vunpack.c.h.s8.bf16 %v2728
        %v3161 = vunpack.c.h.s8.bf16 %v2729
        %v3162 = vunpack.c.h.s8.bf16 %v2730
        %v3163 = vunpack.c.h.s8.bf16 %v2731
        %v3164 = vunpack.c.h.s8.bf16 %v2732
        %v3165 = vunpack.c.h.s8.bf16 %v2733
        %v3166 = vunpack.c.l.s8.bf16 %v2734
        %v3167 = vunpack.c.l.s8.bf16 %v2735
        %v3168 = vunpack.c.l.s8.bf16 %v2736
        %v3169 = vunpack.c.l.s8.bf16 %v2737
        %v3170 = vunpack.c.l.s8.bf16 %v2738
        %v3171 = vunpack.c.l.s8.bf16 %v2739
        %v3172 = vunpack.c.l.s8.bf16 %v2740
        %v3173 = vunpack.c.l.s8.bf16 %v2741
        %v3174 = vunpack.c.h.s8.bf16 %v2734
        %v3175 = vunpack.c.h.s8.bf16 %v2735
        %v3176 = vunpack.c.h.s8.bf16 %v2736
        %v3177 = vunpack.c.h.s8.bf16 %v2737
        %v3178 = vunpack.c.h.s8.bf16 %v2738
        %v3179 = vunpack.c.h.s8.bf16 %v2739
        %v3180 = vunpack.c.h.s8.bf16 %v2740
        %v3181 = vunpack.c.h.s8.bf16 %v2741
        %v3182 = vunpack.c.l.s8.bf16 %v2742
        %v3183 = vunpack.c.l.s8.bf16 %v2743
        %v3184 = vunpack.c.l.s8.bf16 %v2744
        %v3185 = vunpack.c.l.s8.bf16 %v2745
        %v3186 = vunpack.c.l.s8.bf16 %v2746
        %v3187 = vunpack.c.l.s8.bf16 %v2747
        %v3188 = vunpack.c.l.s8.bf16 %v2748
        %v3189 = vunpack.c.l.s8.bf16 %v2749
        %v3190 = vunpack.c.h.s8.bf16 %v2742
        %v3191 = vunpack.c.h.s8.bf16 %v2743
        %v3192 = vunpack.c.h.s8.bf16 %v2744
        %v3193 = vunpack.c.h.s8.bf16 %v2745
        %v3194 = vunpack.c.h.s8.bf16 %v2746
        %v3195 = vunpack.c.h.s8.bf16 %v2747
        %v3196 = vunpack.c.h.s8.bf16 %v2748
        %v3197 = vunpack.c.h.s8.bf16 %v2749
        %v3198 = vunpack.c.l.s8.bf16 %v2750
        %v3199 = vunpack.c.l.s8.bf16 %v2751
        %v3200 = vunpack.c.l.s8.bf16 %v2752
        %v3201 = vunpack.c.l.s8.bf16 %v2753
        %v3202 = vunpack.c.l.s8.bf16 %v2754
        %v3203 = vunpack.c.l.s8.bf16 %v2755
        %v3204 = vunpack.c.l.s8.bf16 %v2756
        %v3205 = vunpack.c.l.s8.bf16 %v2757
        %v3206 = vunpack.c.h.s8.bf16 %v2750
        %v3207 = vunpack.c.h.s8.bf16 %v2751
        %v3208 = vunpack.c.h.s8.bf16 %v2752
        %v3209 = vunpack.c.h.s8.bf16 %v2753
        %v3210 = vunpack.c.h.s8.bf16 %v2754
        %v3211 = vunpack.c.h.s8.bf16 %v2755
        %v3212 = vunpack.c.h.s8.bf16 %v2756
        %v3213 = vunpack.c.h.s8.bf16 %v2757
        %v3214 = vunpack.c.l.s8.bf16 %v2758
        %v3215 = vunpack.c.l.s8.bf16 %v2759
        %v3216 = vunpack.c.l.s8.bf16 %v2760
        %v3217 = vunpack.c.l.s8.bf16 %v2761
        %v3218 = vunpack.c.l.s8.bf16 %v2762
        %v3219 = vunpack.c.l.s8.bf16 %v2763
        %v3220 = vunpack.c.l.s8.bf16 %v2764
        %v3221 = vunpack.c.l.s8.bf16 %v2765
        %v3222 = vunpack.c.h.s8.bf16 %v2758
        %v3223 = vunpack.c.h.s8.bf16 %v2759
        %v3224 = vunpack.c.h.s8.bf16 %v2760
        %v3225 = vunpack.c.h.s8.bf16 %v2761
        %v3226 = vunpack.c.h.s8.bf16 %v2762
        %v3227 = vunpack.c.h.s8.bf16 %v2763
        %v3228 = vunpack.c.h.s8.bf16 %v2764
        %v3229 = vunpack.c.h.s8.bf16 %v2765
        %v3230 = vunpack.c.l.s8.bf16 %v2766
        %v3231 = vunpack.c.l.s8.bf16 %v2767
        %v3232 = vunpack.c.l.s8.bf16 %v2768
        %v3233 = vunpack.c.l.s8.bf16 %v2769
        %v3234 = vunpack.c.l.s8.bf16 %v2770
        %v3235 = vunpack.c.l.s8.bf16 %v2771
        %v3236 = vunpack.c.l.s8.bf16 %v2772
        %v3237 = vunpack.c.l.s8.bf16 %v2773
        %v3238 = vunpack.c.h.s8.bf16 %v2766
        %v3239 = vunpack.c.h.s8.bf16 %v2767
        %v3240 = vunpack.c.h.s8.bf16 %v2768
        %v3241 = vunpack.c.h.s8.bf16 %v2769
        %v3242 = vunpack.c.h.s8.bf16 %v2770
        %v3243 = vunpack.c.h.s8.bf16 %v2771
        %v3244 = vunpack.c.h.s8.bf16 %v2772
        %v3245 = vunpack.c.h.s8.bf16 %v2773
        %v3246 = vunpack.c.l.s8.bf16 %v2774
        %v3247 = vunpack.c.l.s8.bf16 %v2775
        %v3248 = vunpack.c.l.s8.bf16 %v2776
        %v3249 = vunpack.c.l.s8.bf16 %v2777
        %v3250 = vunpack.c.l.s8.bf16 %v2778
        %v3251 = vunpack.c.l.s8.bf16 %v2779
        %v3252 = vunpack.c.l.s8.bf16 %v2780
        %v3253 = vunpack.c.l.s8.bf16 %v2781
        %v3254 = vunpack.c.h.s8.bf16 %v2774
        %v3255 = vunpack.c.h.s8.bf16 %v2775
        %v3256 = vunpack.c.h.s8.bf16 %v2776
        %v3257 = vunpack.c.h.s8.bf16 %v2777
        %v3258 = vunpack.c.h.s8.bf16 %v2778
        %v3259 = vunpack.c.h.s8.bf16 %v2779
        %v3260 = vunpack.c.h.s8.bf16 %v2780
        %v3261 = vunpack.c.h.s8.bf16 %v2781
        %v3262 = vunpack.c.l.s8.bf16 %v2782
        %v3263 = vunpack.c.l.s8.bf16 %v2783
        %v3264 = vunpack.c.l.s8.bf16 %v2784
        %v3265 = vunpack.c.l.s8.bf16 %v2785
        %v3266 = vunpack.c.l.s8.bf16 %v2786
        %v3267 = vunpack.c.l.s8.bf16 %v2787
        %v3268 = vunpack.c.l.s8.bf16 %v2788
        %v3269 = vunpack.c.l.s8.bf16 %v2789
        %v3270 = vunpack.c.h.s8.bf16 %v2782
        %v3271 = vunpack.c.h.s8.bf16 %v2783
        %v3272 = vunpack.c.h.s8.bf16 %v2784
        %v3273 = vunpack.c.h.s8.bf16 %v2785
        %v3274 = vunpack.c.h.s8.bf16 %v2786
        %v3275 = vunpack.c.h.s8.bf16 %v2787
        %v3276 = vunpack.c.h.s8.bf16 %v2788
        %v3277 = vunpack.c.h.s8.bf16 %v2789
        %v3278 = vunpack.c.l.s8.bf16 %v2790
        %v3279 = vunpack.c.l.s8.bf16 %v2791
        %v3280 = vunpack.c.l.s8.bf16 %v2792
        %v3281 = vunpack.c.l.s8.bf16 %v2793
        %v3282 = vunpack.c.l.s8.bf16 %v2794
        %v3283 = vunpack.c.l.s8.bf16 %v2795
        %v3284 = vunpack.c.l.s8.bf16 %v2796
        %v3285 = vunpack.c.l.s8.bf16 %v2797
        %v3286 = vunpack.c.h.s8.bf16 %v2790
        %v3287 = vunpack.c.h.s8.bf16 %v2791
        %v3288 = vunpack.c.h.s8.bf16 %v2792
        %v3289 = vunpack.c.h.s8.bf16 %v2793
        %v3290 = vunpack.c.h.s8.bf16 %v2794
        %v3291 = vunpack.c.h.s8.bf16 %v2795
        %v3292 = vunpack.c.h.s8.bf16 %v2796
        %v3293 = vunpack.c.h.s8.bf16 %v2797
        %v3294 = vunpack.c.l.s8.bf16 %v2798
        %v3295 = vunpack.c.l.s8.bf16 %v2799
        %v3296 = vunpack.c.l.s8.bf16 %v2800
        %v3297 = vunpack.c.l.s8.bf16 %v2801
        %v3298 = vunpack.c.l.s8.bf16 %v2802
        %v3299 = vunpack.c.l.s8.bf16 %v2803
        %v3300 = vunpack.c.l.s8.bf16 %v2804
        %v3301 = vunpack.c.l.s8.bf16 %v2805
        %v3302 = vunpack.c.h.s8.bf16 %v2798
        %v3303 = vunpack.c.h.s8.bf16 %v2799
        %v3304 = vunpack.c.h.s8.bf16 %v2800
        %v3305 = vunpack.c.h.s8.bf16 %v2801
        %v3306 = vunpack.c.h.s8.bf16 %v2802
        %v3307 = vunpack.c.h.s8.bf16 %v2803
        %v3308 = vunpack.c.h.s8.bf16 %v2804
        %v3309 = vunpack.c.h.s8.bf16 %v2805
        %v3310 = vunpack.c.l.s8.bf16 %v2806
        %v3311 = vunpack.c.l.s8.bf16 %v2807
        %v3312 = vunpack.c.l.s8.bf16 %v2808
        %v3313 = vunpack.c.l.s8.bf16 %v2809
        %v3314 = vunpack.c.l.s8.bf16 %v2810
        %v3315 = vunpack.c.l.s8.bf16 %v2811
        %v3316 = vunpack.c.l.s8.bf16 %v2812
        %v3317 = vunpack.c.l.s8.bf16 %v2813
        %v3318 = vunpack.c.h.s8.bf16 %v2806
        %v3319 = vunpack.c.h.s8.bf16 %v2807
        %v3320 = vunpack.c.h.s8.bf16 %v2808
        %v3321 = vunpack.c.h.s8.bf16 %v2809
        %v3322 = vunpack.c.h.s8.bf16 %v2810
        %v3323 = vunpack.c.h.s8.bf16 %v2811
        %v3324 = vunpack.c.h.s8.bf16 %v2812
        %v3325 = vunpack.c.h.s8.bf16 %v2813
        %v3326 = vpack.c.bf16 %v2550, %v2550
        %v3327 = vpack.c.bf16 %v2551, %v2551
        %v3328 = vpack.c.bf16 %v2552, %v2552
        %v3329 = vpack.c.bf16 %v2553, %v2553
        %v3330 = vpack.c.bf16 %v2554, %v2554
        %v3331 = vpack.c.bf16 %v2555, %v2555
        %v3332 = vpack.c.bf16 %v2556, %v2556
        %v3333 = vpack.c.bf16 %v2557, %v2557
        %3334 = vmatprep.subr.bf16.mxu0 %v2815
        %3335 = vmatpush1.bf16.msra.mxu0 %v2814
        %3336 = vmatprep.subr.bf16.mxu0 %v2823
        %3337 = vmatpush1.bf16.msra.mxu0 %v2822
        %3338 = vmatprep.subr.bf16.mxu0 %v2831
        %3339 = vmatpush1.bf16.msra.mxu0 %v2830
        %3340 = vmatprep.subr.bf16.mxu0 %v2839
        %3341 = vmatpush1.bf16.msra.mxu0 %v2838
        %3342 = vmatprep.subr.bf16.mxu0 %v2847
        %3343 = vmatpush1.bf16.msra.mxu0 %v2846
        %3344 = vmatprep.subr.bf16.mxu0 %v2855
        %3345 = vmatpush1.bf16.msra.mxu0 %v2854
        %3346 = vmatprep.subr.bf16.mxu0 %v2863
        %3347 = vmatpush1.bf16.msra.mxu0 %v2862
        %3348 = vmatprep.subr.bf16.mxu0 %v2871
        %3349 = vmatpush1.bf16.msra.mxu0 %v2870
        %3350 = vmatprep.subr.bf16.mxu0 %v2879
        %3351 = vmatpush1.bf16.msra.mxu0 %v2878
        %3352 = vmatprep.subr.bf16.mxu0 %v2887
        %3353 = vmatpush1.bf16.msra.mxu0 %v2886
        %3354 = vmatprep.subr.bf16.mxu0 %v2895
        %3355 = vmatpush1.bf16.msra.mxu0 %v2894
        %3356 = vmatprep.subr.bf16.mxu0 %v2903
        %3357 = vmatpush1.bf16.msra.mxu0 %v2902
        %3358 = vmatprep.subr.bf16.mxu0 %v2911
        %3359 = vmatpush1.bf16.msra.mxu0 %v2910
        %3360 = vmatprep.subr.bf16.mxu0 %v2919
        %3361 = vmatpush1.bf16.msra.mxu0 %v2918
        %3362 = vmatprep.subr.bf16.mxu0 %v2927
        %3363 = vmatpush1.bf16.msra.mxu0 %v2926
        %3364 = vmatprep.subr.bf16.mxu0 %v2935
        %3365 = vmatpush1.bf16.msra.mxu0 %v2934
        %3366 = vmatprep.mubr.bf16.mxu0 %v3327
        %3367 = vmatmul.mubr.bf16.gmra.mrb[0].mxu0 %v3326
        %v3368 = vpop.f32.mrb[0].mxu0
        %v3369 = vadd.f32 0.0, %v3368
        %v3370 = vpop.f32.mrb[0].mxu0
        %v3371 = vadd.f32 0.0, %v3370
        %v3372 = vpop.f32.mrb[0].mxu0
        %v3373 = vpop.f32.mrb[0].mxu0
        %3374 = vdwg.mxu0
        %3375 = vmatprep.subr.bf16.mxu0 %v2943
        %3376 = vmatpush1.bf16.msra.mxu0 %v2942
        %3377 = vmatprep.subr.bf16.mxu0 %v2951
        %3378 = vmatpush1.bf16.msra.mxu0 %v2950
        %3379 = vmatprep.subr.bf16.mxu0 %v2959
        %3380 = vmatpush1.bf16.msra.mxu0 %v2958
        %3381 = vmatprep.subr.bf16.mxu0 %v2967
        %3382 = vmatpush1.bf16.msra.mxu0 %v2966
        %3383 = vmatprep.subr.bf16.mxu0 %v2975
        %3384 = vmatpush1.bf16.msra.mxu0 %v2974
        %3385 = vmatprep.subr.bf16.mxu0 %v2983
        %3386 = vmatpush1.bf16.msra.mxu0 %v2982
        %3387 = vmatprep.subr.bf16.mxu0 %v2991
        %3388 = vmatpush1.bf16.msra.mxu0 %v2990
        %3389 = vmatprep.subr.bf16.mxu0 %v2999
        %3390 = vmatpush1.bf16.msra.mxu0 %v2998
        %3391 = vmatprep.subr.bf16.mxu0 %v3007
        %3392 = vmatpush1.bf16.msra.mxu0 %v3006
        %3393 = vmatprep.subr.bf16.mxu0 %v3015
        %3394 = vmatpush1.bf16.msra.mxu0 %v3014
        %3395 = vmatprep.subr.bf16.mxu0 %v3023
        %3396 = vmatpush1.bf16.msra.mxu0 %v3022
        %3397 = vmatprep.subr.bf16.mxu0 %v3031
        %3398 = vmatpush1.bf16.msra.mxu0 %v3030
        %3399 = vmatprep.subr.bf16.mxu0 %v3039
        %3400 = vmatpush1.bf16.msra.mxu0 %v3038
        %3401 = vmatprep.subr.bf16.mxu0 %v3047
        %3402 = vmatpush1.bf16.msra.mxu0 %v3046
        %3403 = vmatprep.subr.bf16.mxu0 %v3055
        %3404 = vmatpush1.bf16.msra.mxu0 %v3054
        %3405 = vmatprep.subr.bf16.mxu0 %v3063
        %3406 = vmatpush1.bf16.msra.mxu0 %v3062
        %3407 = vmatprep.mubr.bf16.mxu0 %v3329
        %3408 = vmatmul.mubr.bf16.gmra.mrb[0].mxu0 %v3328
        %v3409 = vpop.f32.mrb[0].mxu0
        %v3410 = vadd.f32 %v3369, %v3409
        %v3411 = vpop.f32.mrb[0].mxu0
        %v3412 = vadd.f32 %v3371, %v3411
        %v3413 = vpop.f32.mrb[0].mxu0
        %v3414 = vpop.f32.mrb[0].mxu0
        %3415 = vdwg.mxu0
        %3416 = vmatprep.subr.bf16.mxu0 %v3071
        %3417 = vmatpush1.bf16.msra.mxu0 %v3070
        %3418 = vmatprep.subr.bf16.mxu0 %v3079
        %3419 = vmatpush1.bf16.msra.mxu0 %v3078
        %3420 = vmatprep.subr.bf16.mxu0 %v3087
        %3421 = vmatpush1.bf16.msra.mxu0 %v3086
        %3422 = vmatprep.subr.bf16.mxu0 %v3095
        %3423 = vmatpush1.bf16.msra.mxu0 %v3094
        %3424 = vmatprep.subr.bf16.mxu0 %v3103
        %3425 = vmatpush1.bf16.msra.mxu0 %v3102
        %3426 = vmatprep.subr.bf16.mxu0 %v3111
        %3427 = vmatpush1.bf16.msra.mxu0 %v3110
        %3428 = vmatprep.subr.bf16.mxu0 %v3119
        %3429 = vmatpush1.bf16.msra.mxu0 %v3118
        %3430 = vmatprep.subr.bf16.mxu0 %v3127
        %3431 = vmatpush1.bf16.msra.mxu0 %v3126
        %3432 = vmatprep.subr.bf16.mxu0 %v3135
        %3433 = vmatpush1.bf16.msra.mxu0 %v3134
        %3434 = vmatprep.subr.bf16.mxu0 %v3143
        %3435 = vmatpush1.bf16.msra.mxu0 %v3142
        %3436 = vmatprep.subr.bf16.mxu0 %v3151
        %3437 = vmatpush1.bf16.msra.mxu0 %v3150
        %3438 = vmatprep.subr.bf16.mxu0 %v3159
        %3439 = vmatpush1.bf16.msra.mxu0 %v3158
        %3440 = vmatprep.subr.bf16.mxu0 %v3167
        %3441 = vmatpush1.bf16.msra.mxu0 %v3166
        %3442 = vmatprep.subr.bf16.mxu0 %v3175
        %3443 = vmatpush1.bf16.msra.mxu0 %v3174
        %3444 = vmatprep.subr.bf16.mxu0 %v3183
        %3445 = vmatpush1.bf16.msra.mxu0 %v3182
        %3446 = vmatprep.subr.bf16.mxu0 %v3191
        %3447 = vmatpush1.bf16.msra.mxu0 %v3190
        %3448 = vmatprep.mubr.bf16.mxu0 %v3331
        %3449 = vmatmul.mubr.bf16.gmra.mrb[0].mxu0 %v3330
        %v3450 = vpop.f32.mrb[0].mxu0
        %v3451 = vadd.f32 %v3410, %v3450
        %v3452 = vpop.f32.mrb[0].mxu0
        %v3453 = vadd.f32 %v3412, %v3452
        %v3454 = vpop.f32.mrb[0].mxu0
        %v3455 = vpop.f32.mrb[0].mxu0
        %3456 = vdwg.mxu0
        %3457 = vmatprep.subr.bf16.mxu0 %v3199
        %3458 = vmatpush1.bf16.msra.mxu0 %v3198
        %3459 = vmatprep.subr.bf16.mxu0 %v3207
        %3460 = vmatpush1.bf16.msra.mxu0 %v3206
        %3461 = vmatprep.subr.bf16.mxu0 %v3215
        %3462 = vmatpush1.bf16.msra.mxu0 %v3214
        %3463 = vmatprep.subr.bf16.mxu0 %v3223
        %3464 = vmatpush1.bf16.msra.mxu0 %v3222
        %3465 = vmatprep.subr.bf16.mxu0 %v3231
        %3466 = vmatpush1.bf16.msra.mxu0 %v3230
        %3467 = vmatprep.subr.bf16.mxu0 %v3239
        %3468 = vmatpush1.bf16.msra.mxu0 %v3238
        %3469 = vmatprep.subr.bf16.mxu0 %v3247
        %3470 = vmatpush1.bf16.msra.mxu0 %v3246
        %3471 = vmatprep.subr.bf16.mxu0 %v3255
        %3472 = vmatpush1.bf16.msra.mxu0 %v3254
        %3473 = vmatprep.subr.bf16.mxu0 %v3263
        %3474 = vmatpush1.bf16.msra.mxu0 %v3262
        %3475 = vmatprep.subr.bf16.mxu0 %v3271
        %3476 = vmatpush1.bf16.msra.mxu0 %v3270
        %3477 = vmatprep.subr.bf16.mxu0 %v3279
        %3478 = vmatpush1.bf16.msra.mxu0 %v3278
        %3479 = vmatprep.subr.bf16.mxu0 %v3287
        %3480 = vmatpush1.bf16.msra.mxu0 %v3286
        %3481 = vmatprep.subr.bf16.mxu0 %v3295
        %3482 = vmatpush1.bf16.msra.mxu0 %v3294
        %3483 = vmatprep.subr.bf16.mxu0 %v3303
        %3484 = vmatpush1.bf16.msra.mxu0 %v3302
        %3485 = vmatprep.subr.bf16.mxu0 %v3311
        %3486 = vmatpush1.bf16.msra.mxu0 %v3310
        %3487 = vmatprep.subr.bf16.mxu0 %v3319
        %3488 = vmatpush1.bf16.msra.mxu0 %v3318
        %3489 = vmatprep.mubr.bf16.mxu0 %v3333
        %3490 = vmatmul.mubr.bf16.gmra.mrb[0].mxu0 %v3332
        %v3491 = vpop.f32.mrb[0].mxu0
        %v3492 = vadd.f32 %v3451, %v3491
        %v3493 = vpop.f32.mrb[0].mxu0
        %v3494 = vadd.f32 %v3453, %v3493
        %v3495 = vpop.f32.mrb[0].mxu0
        %v3496 = vpop.f32.mrb[0].mxu0
        %3497 = vdwg.mxu0
        %3498 = vmatprep.subr.bf16.mxu0 %v2817
        %3499 = vmatpush1.bf16.msra.mxu0 %v2816
        %3500 = vmatprep.subr.bf16.mxu0 %v2825
        %3501 = vmatpush1.bf16.msra.mxu0 %v2824
        %3502 = vmatprep.subr.bf16.mxu0 %v2833
        %3503 = vmatpush1.bf16.msra.mxu0 %v2832
        %3504 = vmatprep.subr.bf16.mxu0 %v2841
        %3505 = vmatpush1.bf16.msra.mxu0 %v2840
        %3506 = vmatprep.subr.bf16.mxu0 %v2849
        %3507 = vmatpush1.bf16.msra.mxu0 %v2848
        %3508 = vmatprep.subr.bf16.mxu0 %v2857
        %3509 = vmatpush1.bf16.msra.mxu0 %v2856
        %3510 = vmatprep.subr.bf16.mxu0 %v2865
        %3511 = vmatpush1.bf16.msra.mxu0 %v2864
        %3512 = vmatprep.subr.bf16.mxu0 %v2873
        %3513 = vmatpush1.bf16.msra.mxu0 %v2872
        %3514 = vmatprep.subr.bf16.mxu0 %v2881
        %3515 = vmatpush1.bf16.msra.mxu0 %v2880
        %3516 = vmatprep.subr.bf16.mxu0 %v2889
        %3517 = vmatpush1.bf16.msra.mxu0 %v2888
        %3518 = vmatprep.subr.bf16.mxu0 %v2897
        %3519 = vmatpush1.bf16.msra.mxu0 %v2896
        %3520 = vmatprep.subr.bf16.mxu0 %v2905
        %3521 = vmatpush1.bf16.msra.mxu0 %v2904
        %3522 = vmatprep.subr.bf16.mxu0 %v2913
        %3523 = vmatpush1.bf16.msra.mxu0 %v2912
        %3524 = vmatprep.subr.bf16.mxu0 %v2921
        %3525 = vmatpush1.bf16.msra.mxu0 %v2920
        %3526 = vmatprep.subr.bf16.mxu0 %v2929
        %3527 = vmatpush1.bf16.msra.mxu0 %v2928
        %3528 = vmatprep.subr.bf16.mxu0 %v2937
        %3529 = vmatpush1.bf16.msra.mxu0 %v2936
        %3530 = vmatprep.mubr.bf16.mxu0 %v3327
        %3531 = vmatmul.mubr.bf16.gmra.mrb[0].mxu0 %v3326
        %v3532 = vpop.f32.mrb[0].mxu0
        %v3533 = vadd.f32 0.0, %v3532
        %v3534 = vpop.f32.mrb[0].mxu0
        %v3535 = vadd.f32 0.0, %v3534
        %v3536 = vpop.f32.mrb[0].mxu0
        %v3537 = vpop.f32.mrb[0].mxu0
        %3538 = vdwg.mxu0
        %3539 = vmatprep.subr.bf16.mxu0 %v2945
        %3540 = vmatpush1.bf16.msra.mxu0 %v2944
        %3541 = vmatprep.subr.bf16.mxu0 %v2953
        %3542 = vmatpush1.bf16.msra.mxu0 %v2952
        %3543 = vmatprep.subr.bf16.mxu0 %v2961
        %3544 = vmatpush1.bf16.msra.mxu0 %v2960
        %3545 = vmatprep.subr.bf16.mxu0 %v2969
        %3546 = vmatpush1.bf16.msra.mxu0 %v2968
        %3547 = vmatprep.subr.bf16.mxu0 %v2977
        %3548 = vmatpush1.bf16.msra.mxu0 %v2976
        %3549 = vmatprep.subr.bf16.mxu0 %v2985
        %3550 = vmatpush1.bf16.msra.mxu0 %v2984
        %3551 = vmatprep.subr.bf16.mxu0 %v2993
        %3552 = vmatpush1.bf16.msra.mxu0 %v2992
        %3553 = vmatprep.subr.bf16.mxu0 %v3001
        %3554 = vmatpush1.bf16.msra.mxu0 %v3000
        %3555 = vmatprep.subr.bf16.mxu0 %v3009
        %3556 = vmatpush1.bf16.msra.mxu0 %v3008
        %3557 = vmatprep.subr.bf16.mxu0 %v3017
        %3558 = vmatpush1.bf16.msra.mxu0 %v3016
        %3559 = vmatprep.subr.bf16.mxu0 %v3025
        %3560 = vmatpush1.bf16.msra.mxu0 %v3024
        %3561 = vmatprep.subr.bf16.mxu0 %v3033
        %3562 = vmatpush1.bf16.msra.mxu0 %v3032
        %3563 = vmatprep.subr.bf16.mxu0 %v3041
        %3564 = vmatpush1.bf16.msra.mxu0 %v3040
        %3565 = vmatprep.subr.bf16.mxu0 %v3049
        %3566 = vmatpush1.bf16.msra.mxu0 %v3048
        %3567 = vmatprep.subr.bf16.mxu0 %v3057
        %3568 = vmatpush1.bf16.msra.mxu0 %v3056
        %3569 = vmatprep.subr.bf16.mxu0 %v3065
        %3570 = vmatpush1.bf16.msra.mxu0 %v3064
        %3571 = vmatprep.mubr.bf16.mxu0 %v3329
        %3572 = vmatmul.mubr.bf16.gmra.mrb[0].mxu0 %v3328
        %v3573 = vpop.f32.mrb[0].mxu0
        %v3574 = vadd.f32 %v3533, %v3573
        %v3575 = vpop.f32.mrb[0].mxu0
        %v3576 = vadd.f32 %v3535, %v3575
        %v3577 = vpop.f32.mrb[0].mxu0
        %v3578 = vpop.f32.mrb[0].mxu0
        %3579 = vdwg.mxu0
        %3580 = vmatprep.subr.bf16.mxu0 %v3073
        %3581 = vmatpush1.bf16.msra.mxu0 %v3072
        %3582 = vmatprep.subr.bf16.mxu0 %v3081
        %3583 = vmatpush1.bf16.msra.mxu0 %v3080
        %3584 = vmatprep.subr.bf16.mxu0 %v3089
        %3585 = vmatpush1.bf16.msra.mxu0 %v3088
        %3586 = vmatprep.subr.bf16.mxu0 %v3097
        %3587 = vmatpush1.bf16.msra.mxu0 %v3096
        %3588 = vmatprep.subr.bf16.mxu0 %v3105
        %3589 = vmatpush1.bf16.msra.mxu0 %v3104
        %3590 = vmatprep.subr.bf16.mxu0 %v3113
        %3591 = vmatpush1.bf16.msra.mxu0 %v3112
        %3592 = vmatprep.subr.bf16.mxu0 %v3121
        %3593 = vmatpush1.bf16.msra.mxu0 %v3120
        %3594 = vmatprep.subr.bf16.mxu0 %v3129
        %3595 = vmatpush1.bf16.msra.mxu0 %v3128
        %3596 = vmatprep.subr.bf16.mxu0 %v3137
        %3597 = vmatpush1.bf16.msra.mxu0 %v3136
        %3598 = vmatprep.subr.bf16.mxu0 %v3145
        %3599 = vmatpush1.bf16.msra.mxu0 %v3144
        %3600 = vmatprep.subr.bf16.mxu0 %v3153
        %3601 = vmatpush1.bf16.msra.mxu0 %v3152
        %3602 = vmatprep.subr.bf16.mxu0 %v3161
        %3603 = vmatpush1.bf16.msra.mxu0 %v3160
        %3604 = vmatprep.subr.bf16.mxu0 %v3169
        %3605 = vmatpush1.bf16.msra.mxu0 %v3168
        %3606 = vmatprep.subr.bf16.mxu0 %v3177
        %3607 = vmatpush1.bf16.msra.mxu0 %v3176
        %3608 = vmatprep.subr.bf16.mxu0 %v3185
        %3609 = vmatpush1.bf16.msra.mxu0 %v3184
        %3610 = vmatprep.subr.bf16.mxu0 %v3193
        %3611 = vmatpush1.bf16.msra.mxu0 %v3192
        %3612 = vmatprep.mubr.bf16.mxu0 %v3331
        %3613 = vmatmul.mubr.bf16.gmra.mrb[0].mxu0 %v3330
        %v3614 = vpop.f32.mrb[0].mxu0
        %v3615 = vadd.f32 %v3574, %v3614
        %v3616 = vpop.f32.mrb[0].mxu0
        %v3617 = vadd.f32 %v3576, %v3616
        %v3618 = vpop.f32.mrb[0].mxu0
        %v3619 = vpop.f32.mrb[0].mxu0
        %3620 = vdwg.mxu0
        %3621 = vmatprep.subr.bf16.mxu0 %v3201
        %3622 = vmatpush1.bf16.msra.mxu0 %v3200
        %3623 = vmatprep.subr.bf16.mxu0 %v3209
        %3624 = vmatpush1.bf16.msra.mxu0 %v3208
        %3625 = vmatprep.subr.bf16.mxu0 %v3217
        %3626 = vmatpush1.bf16.msra.mxu0 %v3216
        %3627 = vmatprep.subr.bf16.mxu0 %v3225
        %3628 = vmatpush1.bf16.msra.mxu0 %v3224
        %3629 = vmatprep.subr.bf16.mxu0 %v3233
        %3630 = vmatpush1.bf16.msra.mxu0 %v3232
        %3631 = vmatprep.subr.bf16.mxu0 %v3241
        %3632 = vmatpush1.bf16.msra.mxu0 %v3240
        %3633 = vmatprep.subr.bf16.mxu0 %v3249
        %3634 = vmatpush1.bf16.msra.mxu0 %v3248
        %3635 = vmatprep.subr.bf16.mxu0 %v3257
        %3636 = vmatpush1.bf16.msra.mxu0 %v3256
        %3637 = vmatprep.subr.bf16.mxu0 %v3265
        %3638 = vmatpush1.bf16.msra.mxu0 %v3264
        %3639 = vmatprep.subr.bf16.mxu0 %v3273
        %3640 = vmatpush1.bf16.msra.mxu0 %v3272
        %3641 = vmatprep.subr.bf16.mxu0 %v3281
        %3642 = vmatpush1.bf16.msra.mxu0 %v3280
        %3643 = vmatprep.subr.bf16.mxu0 %v3289
        %3644 = vmatpush1.bf16.msra.mxu0 %v3288
        %3645 = vmatprep.subr.bf16.mxu0 %v3297
        %3646 = vmatpush1.bf16.msra.mxu0 %v3296
        %3647 = vmatprep.subr.bf16.mxu0 %v3305
        %3648 = vmatpush1.bf16.msra.mxu0 %v3304
        %3649 = vmatprep.subr.bf16.mxu0 %v3313
        %3650 = vmatpush1.bf16.msra.mxu0 %v3312
        %3651 = vmatprep.subr.bf16.mxu0 %v3321
        %3652 = vmatpush1.bf16.msra.mxu0 %v3320
        %3653 = vmatprep.mubr.bf16.mxu0 %v3333
        %3654 = vmatmul.mubr.bf16.gmra.mrb[0].mxu0 %v3332
        %v3655 = vpop.f32.mrb[0].mxu0
        %v3656 = vadd.f32 %v3615, %v3655
        %v3657 = vpop.f32.mrb[0].mxu0
        %v3658 = vadd.f32 %v3617, %v3657
        %v3659 = vpop.f32.mrb[0].mxu0
        %v3660 = vpop.f32.mrb[0].mxu0
        %3661 = vdwg.mxu0
        %3662 = vmatprep.subr.bf16.mxu0 %v2819
        %3663 = vmatpush1.bf16.msra.mxu0 %v2818
        %3664 = vmatprep.subr.bf16.mxu0 %v2827
        %3665 = vmatpush1.bf16.msra.mxu0 %v2826
        %3666 = vmatprep.subr.bf16.mxu0 %v2835
        %3667 = vmatpush1.bf16.msra.mxu0 %v2834
        %3668 = vmatprep.subr.bf16.mxu0 %v2843
        %3669 = vmatpush1.bf16.msra.mxu0 %v2842
        %3670 = vmatprep.subr.bf16.mxu0 %v2851
        %3671 = vmatpush1.bf16.msra.mxu0 %v2850
        %3672 = vmatprep.subr.bf16.mxu0 %v2859
        %3673 = vmatpush1.bf16.msra.mxu0 %v2858
        %3674 = vmatprep.subr.bf16.mxu0 %v2867
        %3675 = vmatpush1.bf16.msra.mxu0 %v2866
        %3676 = vmatprep.subr.bf16.mxu0 %v2875
        %3677 = vmatpush1.bf16.msra.mxu0 %v2874
        %3678 = vmatprep.subr.bf16.mxu0 %v2883
        %3679 = vmatpush1.bf16.msra.mxu0 %v2882
        %3680 = vmatprep.subr.bf16.mxu0 %v2891
        %3681 = vmatpush1.bf16.msra.mxu0 %v2890
        %3682 = vmatprep.subr.bf16.mxu0 %v2899
        %3683 = vmatpush1.bf16.msra.mxu0 %v2898
        %3684 = vmatprep.subr.bf16.mxu0 %v2907
        %3685 = vmatpush1.bf16.msra.mxu0 %v2906
        %3686 = vmatprep.subr.bf16.mxu0 %v2915
        %3687 = vmatpush1.bf16.msra.mxu0 %v2914
        %3688 = vmatprep.subr.bf16.mxu0 %v2923
        %3689 = vmatpush1.bf16.msra.mxu0 %v2922
        %3690 = vmatprep.subr.bf16.mxu0 %v2931
        %3691 = vmatpush1.bf16.msra.mxu0 %v2930
        %3692 = vmatprep.subr.bf16.mxu0 %v2939
        %3693 = vmatpush1.bf16.msra.mxu0 %v2938
        %3694 = vmatprep.mubr.bf16.mxu0 %v3327
        %3695 = vmatmul.mubr.bf16.gmra.mrb[0].mxu0 %v3326
        %v3696 = vpop.f32.mrb[0].mxu0
        %v3697 = vadd.f32 0.0, %v3696
        %v3698 = vpop.f32.mrb[0].mxu0
        %v3699 = vadd.f32 0.0, %v3698
        %v3700 = vpop.f32.mrb[0].mxu0
        %v3701 = vpop.f32.mrb[0].mxu0
        %3702 = vdwg.mxu0
        %3703 = vmatprep.subr.bf16.mxu0 %v2947
        %3704 = vmatpush1.bf16.msra.mxu0 %v2946
        %3705 = vmatprep.subr.bf16.mxu0 %v2955
        %3706 = vmatpush1.bf16.msra.mxu0 %v2954
        %3707 = vmatprep.subr.bf16.mxu0 %v2963
        %3708 = vmatpush1.bf16.msra.mxu0 %v2962
        %3709 = vmatprep.subr.bf16.mxu0 %v2971
        %3710 = vmatpush1.bf16.msra.mxu0 %v2970
        %3711 = vmatprep.subr.bf16.mxu0 %v2979
        %3712 = vmatpush1.bf16.msra.mxu0 %v2978
        %3713 = vmatprep.subr.bf16.mxu0 %v2987
        %3714 = vmatpush1.bf16.msra.mxu0 %v2986
        %3715 = vmatprep.subr.bf16.mxu0 %v2995
        %3716 = vmatpush1.bf16.msra.mxu0 %v2994
        %3717 = vmatprep.subr.bf16.mxu0 %v3003
        %3718 = vmatpush1.bf16.msra.mxu0 %v3002
        %3719 = vmatprep.subr.bf16.mxu0 %v3011
        %3720 = vmatpush1.bf16.msra.mxu0 %v3010
        %3721 = vmatprep.subr.bf16.mxu0 %v3019
        %3722 = vmatpush1.bf16.msra.mxu0 %v3018
        %3723 = vmatprep.subr.bf16.mxu0 %v3027
        %3724 = vmatpush1.bf16.msra.mxu0 %v3026
        %3725 = vmatprep.subr.bf16.mxu0 %v3035
        %3726 = vmatpush1.bf16.msra.mxu0 %v3034
        %3727 = vmatprep.subr.bf16.mxu0 %v3043
        %3728 = vmatpush1.bf16.msra.mxu0 %v3042
        %3729 = vmatprep.subr.bf16.mxu0 %v3051
        %3730 = vmatpush1.bf16.msra.mxu0 %v3050
        %3731 = vmatprep.subr.bf16.mxu0 %v3059
        %3732 = vmatpush1.bf16.msra.mxu0 %v3058
        %3733 = vmatprep.subr.bf16.mxu0 %v3067
        %3734 = vmatpush1.bf16.msra.mxu0 %v3066
        %3735 = vmatprep.mubr.bf16.mxu0 %v3329
        %3736 = vmatmul.mubr.bf16.gmra.mrb[0].mxu0 %v3328
        %v3737 = vpop.f32.mrb[0].mxu0
        %v3738 = vadd.f32 %v3697, %v3737
        %v3739 = vpop.f32.mrb[0].mxu0
        %v3740 = vadd.f32 %v3699, %v3739
        %v3741 = vpop.f32.mrb[0].mxu0
        %v3742 = vpop.f32.mrb[0].mxu0
        %3743 = vdwg.mxu0
        %3744 = vmatprep.subr.bf16.mxu0 %v3075
        %3745 = vmatpush1.bf16.msra.mxu0 %v3074
        %3746 = vmatprep.subr.bf16.mxu0 %v3083
        %3747 = vmatpush1.bf16.msra.mxu0 %v3082
        %3748 = vmatprep.subr.bf16.mxu0 %v3091
        %3749 = vmatpush1.bf16.msra.mxu0 %v3090
        %3750 = vmatprep.subr.bf16.mxu0 %v3099
        %3751 = vmatpush1.bf16.msra.mxu0 %v3098
        %3752 = vmatprep.subr.bf16.mxu0 %v3107
        %3753 = vmatpush1.bf16.msra.mxu0 %v3106
        %3754 = vmatprep.subr.bf16.mxu0 %v3115
        %3755 = vmatpush1.bf16.msra.mxu0 %v3114
        %3756 = vmatprep.subr.bf16.mxu0 %v3123
        %3757 = vmatpush1.bf16.msra.mxu0 %v3122
        %3758 = vmatprep.subr.bf16.mxu0 %v3131
        %3759 = vmatpush1.bf16.msra.mxu0 %v3130
        %3760 = vmatprep.subr.bf16.mxu0 %v3139
        %3761 = vmatpush1.bf16.msra.mxu0 %v3138
        %3762 = vmatprep.subr.bf16.mxu0 %v3147
        %3763 = vmatpush1.bf16.msra.mxu0 %v3146
        %3764 = vmatprep.subr.bf16.mxu0 %v3155
        %3765 = vmatpush1.bf16.msra.mxu0 %v3154
        %3766 = vmatprep.subr.bf16.mxu0 %v3163
        %3767 = vmatpush1.bf16.msra.mxu0 %v3162
        %3768 = vmatprep.subr.bf16.mxu0 %v3171
        %3769 = vmatpush1.bf16.msra.mxu0 %v3170
        %3770 = vmatprep.subr.bf16.mxu0 %v3179
        %3771 = vmatpush1.bf16.msra.mxu0 %v3178
        %3772 = vmatprep.subr.bf16.mxu0 %v3187
        %3773 = vmatpush1.bf16.msra.mxu0 %v3186
        %3774 = vmatprep.subr.bf16.mxu0 %v3195
        %3775 = vmatpush1.bf16.msra.mxu0 %v3194
        %3776 = vmatprep.mubr.bf16.mxu0 %v3331
        %3777 = vmatmul.mubr.bf16.gmra.mrb[0].mxu0 %v3330
        %v3778 = vpop.f32.mrb[0].mxu0
        %v3779 = vadd.f32 %v3738, %v3778
        %v3780 = vpop.f32.mrb[0].mxu0
        %v3781 = vadd.f32 %v3740, %v3780
        %v3782 = vpop.f32.mrb[0].mxu0
        %v3783 = vpop.f32.mrb[0].mxu0
        %3784 = vdwg.mxu0
        %3785 = vmatprep.subr.bf16.mxu0 %v3203
        %3786 = vmatpush1.bf16.msra.mxu0 %v3202
        %3787 = vmatprep.subr.bf16.mxu0 %v3211
        %3788 = vmatpush1.bf16.msra.mxu0 %v3210
        %3789 = vmatprep.subr.bf16.mxu0 %v3219
        %3790 = vmatpush1.bf16.msra.mxu0 %v3218
        %3791 = vmatprep.subr.bf16.mxu0 %v3227
        %3792 = vmatpush1.bf16.msra.mxu0 %v3226
        %3793 = vmatprep.subr.bf16.mxu0 %v3235
        %3794 = vmatpush1.bf16.msra.mxu0 %v3234
        %3795 = vmatprep.subr.bf16.mxu0 %v3243
        %3796 = vmatpush1.bf16.msra.mxu0 %v3242
        %3797 = vmatprep.subr.bf16.mxu0 %v3251
        %3798 = vmatpush1.bf16.msra.mxu0 %v3250
        %3799 = vmatprep.subr.bf16.mxu0 %v3259
        %3800 = vmatpush1.bf16.msra.mxu0 %v3258
        %3801 = vmatprep.subr.bf16.mxu0 %v3267
        %3802 = vmatpush1.bf16.msra.mxu0 %v3266
        %3803 = vmatprep.subr.bf16.mxu0 %v3275
        %3804 = vmatpush1.bf16.msra.mxu0 %v3274
        %3805 = vmatprep.subr.bf16.mxu0 %v3283
        %3806 = vmatpush1.bf16.msra.mxu0 %v3282
        %3807 = vmatprep.subr.bf16.mxu0 %v3291
        %3808 = vmatpush1.bf16.msra.mxu0 %v3290
        %3809 = vmatprep.subr.bf16.mxu0 %v3299
        %3810 = vmatpush1.bf16.msra.mxu0 %v3298
        %3811 = vmatprep.subr.bf16.mxu0 %v3307
        %3812 = vmatpush1.bf16.msra.mxu0 %v3306
        %3813 = vmatprep.subr.bf16.mxu0 %v3315
        %3814 = vmatpush1.bf16.msra.mxu0 %v3314
        %3815 = vmatprep.subr.bf16.mxu0 %v3323
        %3816 = vmatpush1.bf16.msra.mxu0 %v3322
        %3817 = vmatprep.mubr.bf16.mxu0 %v3333
        %3818 = vmatmul.mubr.bf16.gmra.mrb[0].mxu0 %v3332
        %v3819 = vpop.f32.mrb[0].mxu0
        %v3820 = vadd.f32 %v3779, %v3819
        %v3821 = vpop.f32.mrb[0].mxu0
        %v3822 = vadd.f32 %v3781, %v3821
        %v3823 = vpop.f32.mrb[0].mxu0
        %v3824 = vpop.f32.mrb[0].mxu0
        %3825 = vdwg.mxu0
        %3826 = vmatprep.subr.bf16.mxu0 %v2821
        %3827 = vmatpush1.bf16.msra.mxu0 %v2820
        %3828 = vmatprep.subr.bf16.mxu0 %v2829
        %3829 = vmatpush1.bf16.msra.mxu0 %v2828
        %3830 = vmatprep.subr.bf16.mxu0 %v2837
        %3831 = vmatpush1.bf16.msra.mxu0 %v2836
        %3832 = vmatprep.subr.bf16.mxu0 %v2845
        %3833 = vmatpush1.bf16.msra.mxu0 %v2844
        %3834 = vmatprep.subr.bf16.mxu0 %v2853
        %3835 = vmatpush1.bf16.msra.mxu0 %v2852
        %3836 = vmatprep.subr.bf16.mxu0 %v2861
        %3837 = vmatpush1.bf16.msra.mxu0 %v2860
        %3838 = vmatprep.subr.bf16.mxu0 %v2869
        %3839 = vmatpush1.bf16.msra.mxu0 %v2868
        %3840 = vmatprep.subr.bf16.mxu0 %v2877
        %3841 = vmatpush1.bf16.msra.mxu0 %v2876
        %3842 = vmatprep.subr.bf16.mxu0 %v2885
        %3843 = vmatpush1.bf16.msra.mxu0 %v2884
        %3844 = vmatprep.subr.bf16.mxu0 %v2893
        %3845 = vmatpush1.bf16.msra.mxu0 %v2892
        %3846 = vmatprep.subr.bf16.mxu0 %v2901
        %3847 = vmatpush1.bf16.msra.mxu0 %v2900
        %3848 = vmatprep.subr.bf16.mxu0 %v2909
        %3849 = vmatpush1.bf16.msra.mxu0 %v2908
        %3850 = vmatprep.subr.bf16.mxu0 %v2917
        %3851 = vmatpush1.bf16.msra.mxu0 %v2916
        %3852 = vmatprep.subr.bf16.mxu0 %v2925
        %3853 = vmatpush1.bf16.msra.mxu0 %v2924
        %3854 = vmatprep.subr.bf16.mxu0 %v2933
        %3855 = vmatpush1.bf16.msra.mxu0 %v2932
        %3856 = vmatprep.subr.bf16.mxu0 %v2941
        %3857 = vmatpush1.bf16.msra.mxu0 %v2940
        %3858 = vmatprep.mubr.bf16.mxu0 %v3327
        %3859 = vmatmul.mubr.bf16.gmra.mrb[0].mxu0 %v3326
        %v3860 = vpop.f32.mrb[0].mxu0
        %v3861 = vadd.f32 0.0, %v3860
        %v3862 = vpop.f32.mrb[0].mxu0
        %v3863 = vadd.f32 0.0, %v3862
        %v3864 = vpop.f32.mrb[0].mxu0
        %v3865 = vpop.f32.mrb[0].mxu0
        %3866 = vdwg.mxu0
        %3867 = vmatprep.subr.bf16.mxu0 %v2949
        %3868 = vmatpush1.bf16.msra.mxu0 %v2948
        %3869 = vmatprep.subr.bf16.mxu0 %v2957
        %3870 = vmatpush1.bf16.msra.mxu0 %v2956
        %3871 = vmatprep.subr.bf16.mxu0 %v2965
        %3872 = vmatpush1.bf16.msra.mxu0 %v2964
        %3873 = vmatprep.subr.bf16.mxu0 %v2973
        %3874 = vmatpush1.bf16.msra.mxu0 %v2972
        %3875 = vmatprep.subr.bf16.mxu0 %v2981
        %3876 = vmatpush1.bf16.msra.mxu0 %v2980
        %3877 = vmatprep.subr.bf16.mxu0 %v2989
        %3878 = vmatpush1.bf16.msra.mxu0 %v2988
        %3879 = vmatprep.subr.bf16.mxu0 %v2997
        %3880 = vmatpush1.bf16.msra.mxu0 %v2996
        %3881 = vmatprep.subr.bf16.mxu0 %v3005
        %3882 = vmatpush1.bf16.msra.mxu0 %v3004
        %3883 = vmatprep.subr.bf16.mxu0 %v3013
        %3884 = vmatpush1.bf16.msra.mxu0 %v3012
        %3885 = vmatprep.subr.bf16.mxu0 %v3021
        %3886 = vmatpush1.bf16.msra.mxu0 %v3020
        %3887 = vmatprep.subr.bf16.mxu0 %v3029
        %3888 = vmatpush1.bf16.msra.mxu0 %v3028
        %3889 = vmatprep.subr.bf16.mxu0 %v3037
        %3890 = vmatpush1.bf16.msra.mxu0 %v3036
        %3891 = vmatprep.subr.bf16.mxu0 %v3045
        %3892 = vmatpush1.bf16.msra.mxu0 %v3044
        %3893 = vmatprep.subr.bf16.mxu0 %v3053
        %3894 = vmatpush1.bf16.msra.mxu0 %v3052
        %3895 = vmatprep.subr.bf16.mxu0 %v3061
        %3896 = vmatpush1.bf16.msra.mxu0 %v3060
        %3897 = vmatprep.subr.bf16.mxu0 %v3069
        %3898 = vmatpush1.bf16.msra.mxu0 %v3068
        %3899 = vmatprep.mubr.bf16.mxu0 %v3329
        %3900 = vmatmul.mubr.bf16.gmra.mrb[0].mxu0 %v3328
        %v3901 = vpop.f32.mrb[0].mxu0
        %v3902 = vadd.f32 %v3861, %v3901
        %v3903 = vpop.f32.mrb[0].mxu0
        %v3904 = vadd.f32 %v3863, %v3903
        %v3905 = vpop.f32.mrb[0].mxu0
        %v3906 = vpop.f32.mrb[0].mxu0
        %3907 = vdwg.mxu0
        %3908 = vmatprep.subr.bf16.mxu0 %v3077
        %3909 = vmatpush1.bf16.msra.mxu0 %v3076
        %3910 = vmatprep.subr.bf16.mxu0 %v3085
        %3911 = vmatpush1.bf16.msra.mxu0 %v3084
        %3912 = vmatprep.subr.bf16.mxu0 %v3093
        %3913 = vmatpush1.bf16.msra.mxu0 %v3092
        %3914 = vmatprep.subr.bf16.mxu0 %v3101
        %3915 = vmatpush1.bf16.msra.mxu0 %v3100
        %3916 = vmatprep.subr.bf16.mxu0 %v3109
        %3917 = vmatpush1.bf16.msra.mxu0 %v3108
        %3918 = vmatprep.subr.bf16.mxu0 %v3117
        %3919 = vmatpush1.bf16.msra.mxu0 %v3116
        %3920 = vmatprep.subr.bf16.mxu0 %v3125
        %3921 = vmatpush1.bf16.msra.mxu0 %v3124
        %3922 = vmatprep.subr.bf16.mxu0 %v3133
        %3923 = vmatpush1.bf16.msra.mxu0 %v3132
        %3924 = vmatprep.subr.bf16.mxu0 %v3141
        %3925 = vmatpush1.bf16.msra.mxu0 %v3140
        %3926 = vmatprep.subr.bf16.mxu0 %v3149
        %3927 = vmatpush1.bf16.msra.mxu0 %v3148
        %3928 = vmatprep.subr.bf16.mxu0 %v3157
        %3929 = vmatpush1.bf16.msra.mxu0 %v3156
        %3930 = vmatprep.subr.bf16.mxu0 %v3165
        %3931 = vmatpush1.bf16.msra.mxu0 %v3164
        %3932 = vmatprep.subr.bf16.mxu0 %v3173
        %3933 = vmatpush1.bf16.msra.mxu0 %v3172
        %3934 = vmatprep.subr.bf16.mxu0 %v3181
        %3935 = vmatpush1.bf16.msra.mxu0 %v3180
        %3936 = vmatprep.subr.bf16.mxu0 %v3189
        %3937 = vmatpush1.bf16.msra.mxu0 %v3188
        %3938 = vmatprep.subr.bf16.mxu0 %v3197
        %3939 = vmatpush1.bf16.msra.mxu0 %v3196
        %3940 = vmatprep.mubr.bf16.mxu0 %v3331
        %3941 = vmatmul.mubr.bf16.gmra.mrb[0].mxu0 %v3330
        %v3942 = vpop.f32.mrb[0].mxu0
        %v3943 = vadd.f32 %v3902, %v3942
        %v3944 = vpop.f32.mrb[0].mxu0
        %v3945 = vadd.f32 %v3904, %v3944
        %v3946 = vpop.f32.mrb[0].mxu0
        %v3947 = vpop.f32.mrb[0].mxu0
        %3948 = vdwg.mxu0
        %3949 = vmatprep.subr.bf16.mxu0 %v3205
        %3950 = vmatpush1.bf16.msra.mxu0 %v3204
        %3951 = vmatprep.subr.bf16.mxu0 %v3213
        %3952 = vmatpush1.bf16.msra.mxu0 %v3212
        %3953 = vmatprep.subr.bf16.mxu0 %v3221
        %3954 = vmatpush1.bf16.msra.mxu0 %v3220
        %3955 = vmatprep.subr.bf16.mxu0 %v3229
        %3956 = vmatpush1.bf16.msra.mxu0 %v3228
        %3957 = vmatprep.subr.bf16.mxu0 %v3237
        %3958 = vmatpush1.bf16.msra.mxu0 %v3236
        %3959 = vmatprep.subr.bf16.mxu0 %v3245
        %3960 = vmatpush1.bf16.msra.mxu0 %v3244
        %3961 = vmatprep.subr.bf16.mxu0 %v3253
        %3962 = vmatpush1.bf16.msra.mxu0 %v3252
        %3963 = vmatprep.subr.bf16.mxu0 %v3261
        %3964 = vmatpush1.bf16.msra.mxu0 %v3260
        %3965 = vmatprep.subr.bf16.mxu0 %v3269
        %3966 = vmatpush1.bf16.msra.mxu0 %v3268
        %3967 = vmatprep.subr.bf16.mxu0 %v3277
        %3968 = vmatpush1.bf16.msra.mxu0 %v3276
        %3969 = vmatprep.subr.bf16.mxu0 %v3285
        %3970 = vmatpush1.bf16.msra.mxu0 %v3284
        %3971 = vmatprep.subr.bf16.mxu0 %v3293
        %3972 = vmatpush1.bf16.msra.mxu0 %v3292
        %3973 = vmatprep.subr.bf16.mxu0 %v3301
        %3974 = vmatpush1.bf16.msra.mxu0 %v3300
        %3975 = vmatprep.subr.bf16.mxu0 %v3309
        %3976 = vmatpush1.bf16.msra.mxu0 %v3308
        %3977 = vmatprep.subr.bf16.mxu0 %v3317
        %3978 = vmatpush1.bf16.msra.mxu0 %v3316
        %3979 = vmatprep.subr.bf16.mxu0 %v3325
        %3980 = vmatpush1.bf16.msra.mxu0 %v3324
        %3981 = vmatprep.mubr.bf16.mxu0 %v3333
        %3982 = vmatmul.mubr.bf16.gmra.mrb[0].mxu0 %v3332
        %v3983 = vpop.f32.mrb[0].mxu0
        %v3984 = vadd.f32 %v3943, %v3983
        %v3985 = vpop.f32.mrb[0].mxu0
        %v3986 = vadd.f32 %v3945, %v3985
        %v3987 = vpop.f32.mrb[0].mxu0
        %v3988 = vpop.f32.mrb[0].mxu0
        %3989 = vdwg.mxu0
        %v3990 = vld [vmem:[%s695] sm:$0xff]
        %v3992 = vlaneseq
        %v3993 = vshrl.u32 %v3992, 7
        %v3994 = vsub.s32 0, %v3993
        %v3995 = vrot.slane %v3990, %v3994
        %v3996 = vlaneseq
        %v3997 = vshrl.u32 %v3996, 7
        %v3998 = vsub.s32 1, %v3997
        %v3999 = vrot.slane %v3990, %v3998
        %v4000 = vlaneseq
        %v4001 = vshrl.u32 %v4000, 7
        %v4002 = vsub.s32 2, %v4001
        %v4003 = vrot.slane %v3990, %v4002
        %v4004 = vlaneseq
        %v4005 = vshrl.u32 %v4004, 7
        %v4006 = vsub.s32 3, %v4005
        %v4007 = vrot.slane %v3990, %v4006
        %v4008 = vlaneseq
        %v4009 = vshrl.u32 %v4008, 7
        %v4010 = vsub.s32 4, %v4009
        %v4011 = vrot.slane %v3990, %v4010
        %v4012 = vlaneseq
        %v4013 = vshrl.u32 %v4012, 7
        %v4014 = vsub.s32 5, %v4013
        %v4015 = vrot.slane %v3990, %v4014
        %v4016 = vlaneseq
        %v4017 = vshrl.u32 %v4016, 7
        %v4018 = vsub.s32 6, %v4017
        %v4019 = vrot.slane %v3990, %v4018
        %v4020 = vlaneseq
        %v4021 = vshrl.u32 %v4020, 7
        %v4022 = vsub.s32 7, %v4021
        %v4023 = vrot.slane %v3990, %v4022
        %v4032 = vmul.f32 %v3492, %v3995
        %v4033 = vmul.f32 %v3494, %v3999
        %v4034 = vmul.f32 %v3656, %v4003
        %v4035 = vmul.f32 %v3658, %v4007
        %v4036 = vmul.f32 %v3820, %v4011
        %v4037 = vmul.f32 %v3822, %v4015
        %v4038 = vmul.f32 %v3984, %v4019
        %v4039 = vmul.f32 %v3986, %v4023
        %v4040 = vld [vmem:[%s704] sm:$0xff]
        %v4042 = vlaneseq
        %v4043 = vshrl.u32 %v4042, 7
        %v4044 = vsub.s32 0, %v4043
        %v4045 = vrot.slane %v4040, %v4044
        %v4046 = vlaneseq
        %v4047 = vshrl.u32 %v4046, 7
        %v4048 = vsub.s32 1, %v4047
        %v4049 = vrot.slane %v4040, %v4048
        %v4050 = vlaneseq
        %v4051 = vshrl.u32 %v4050, 7
        %v4052 = vsub.s32 2, %v4051
        %v4053 = vrot.slane %v4040, %v4052
        %v4054 = vlaneseq
        %v4055 = vshrl.u32 %v4054, 7
        %v4056 = vsub.s32 3, %v4055
        %v4057 = vrot.slane %v4040, %v4056
        %v4058 = vlaneseq
        %v4059 = vshrl.u32 %v4058, 7
        %v4060 = vsub.s32 4, %v4059
        %v4061 = vrot.slane %v4040, %v4060
        %v4062 = vlaneseq
        %v4063 = vshrl.u32 %v4062, 7
        %v4064 = vsub.s32 5, %v4063
        %v4065 = vrot.slane %v4040, %v4064
        %v4066 = vlaneseq
        %v4067 = vshrl.u32 %v4066, 7
        %v4068 = vsub.s32 6, %v4067
        %v4069 = vrot.slane %v4040, %v4068
        %v4070 = vlaneseq
        %v4071 = vshrl.u32 %v4070, 7
        %v4072 = vsub.s32 7, %v4071
        %v4073 = vrot.slane %v4040, %v4072
        %v4082 = vadd.f32 %v4032, %v4045
        %v4083 = vadd.f32 %v4033, %v4049
        %v4084 = vadd.f32 %v4034, %v4053
        %v4085 = vadd.f32 %v4035, %v4057
        %v4086 = vadd.f32 %v4036, %v4061
        %v4087 = vadd.f32 %v4037, %v4065
        %v4088 = vadd.f32 %v4038, %v4069
        %v4089 = vadd.f32 %v4039, %v4073
        %v4090 = vmax.f32 %v4082, 0.0
        %v4091 = vmax.f32 %v4083, 0.0
        %v4092 = vmax.f32 %v4084, 0.0
        %v4093 = vmax.f32 %v4085, 0.0
        %v4094 = vmax.f32 %v4086, 0.0
        %v4095 = vmax.f32 %v4087, 0.0
        %v4096 = vmax.f32 %v4088, 0.0
        %v4097 = vmax.f32 %v4089, 0.0
        %v4098 = vld [vmem:[%s713] sm:$0xff]
        %v4100 = vlaneseq
        %v4101 = vshrl.u32 %v4100, 7
        %v4102 = vsub.s32 0, %v4101
        %v4103 = vrot.slane %v4098, %v4102
        %v4104 = vlaneseq
        %v4105 = vshrl.u32 %v4104, 7
        %v4106 = vsub.s32 1, %v4105
        %v4107 = vrot.slane %v4098, %v4106
        %v4108 = vlaneseq
        %v4109 = vshrl.u32 %v4108, 7
        %v4110 = vsub.s32 2, %v4109
        %v4111 = vrot.slane %v4098, %v4110
        %v4112 = vlaneseq
        %v4113 = vshrl.u32 %v4112, 7
        %v4114 = vsub.s32 3, %v4113
        %v4115 = vrot.slane %v4098, %v4114
        %v4116 = vlaneseq
        %v4117 = vshrl.u32 %v4116, 7
        %v4118 = vsub.s32 4, %v4117
        %v4119 = vrot.slane %v4098, %v4118
        %v4120 = vlaneseq
        %v4121 = vshrl.u32 %v4120, 7
        %v4122 = vsub.s32 5, %v4121
        %v4123 = vrot.slane %v4098, %v4122
        %v4124 = vlaneseq
        %v4125 = vshrl.u32 %v4124, 7
        %v4126 = vsub.s32 6, %v4125
        %v4127 = vrot.slane %v4098, %v4126
        %v4128 = vlaneseq
        %v4129 = vshrl.u32 %v4128, 7
        %v4130 = vsub.s32 7, %v4129
        %v4131 = vrot.slane %v4098, %v4130
        %v4140 = vmul.f32 %v4090, %v4103
        %v4141 = vmul.f32 %v4091, %v4107
        %v4142 = vmul.f32 %v4092, %v4111
        %v4143 = vmul.f32 %v4093, %v4115
        %v4144 = vmul.f32 %v4094, %v4119
        %v4145 = vmul.f32 %v4095, %v4123
        %v4146 = vmul.f32 %v4096, %v4127
        %v4147 = vmul.f32 %v4097, %v4131
        %v4148 = vsel %vm2288, %v4140, 0.0
        %v4149 = vsel %vm2288, %v4141, 0.0
        %v4150 = vadd.f32 %v4148, %v4149
        %v4151 = vsel %vm2288, %v4142, 0.0
        %v4152 = vadd.f32 %v4150, %v4151
        %v4153 = vsel %vm2288, %v4143, 0.0
        %v4154 = vadd.f32 %v4152, %v4153
        %v4155 = vsel %vm2288, %v4144, 0.0
        %v4156 = vadd.f32 %v4154, %v4155
        %v4157 = vsel %vm2288, %v4145, 0.0
        %v4158 = vadd.f32 %v4156, %v4157
        %v4159 = vsel %vm2288, %v4146, 0.0
        %v4160 = vadd.f32 %v4158, %v4159
        %v4161 = vsel %vm2288, %v4147, 0.0
        %v4162 = vadd.f32 %v4160, %v4161
        %4163 = vadd.xlane.f32.xlu0 %v4162
        %v4164 = vpop.xlane.xlu0 %4163
        %v4165 = vld [vmem:[%s802] sm:$0x1]
        %v4167 = vlaneseq
        %v4168 = vshrl.u32 %v4167, 7
        %v4169 = vsub.s32 0, %v4168
        %v4170 = vrot.slane %v4165, %v4169
        %v4172 = vadd.f32 %v4164, %v4170
        %vm4173 = vcmask 1024
        %4174 = vst.msk [vmem:[%s806] sm:$0x3] %vm4173, %v4172
        %p4175 = scmp.lt.s32.totalorder %s41, 1
        %s4176 = scalar_select %p4175, %s41, 1
        %s4177 = smul.addr %s4176, 2
        %s4178 = scalar_lea.vmem %s14, %s4177
        // Predicated region
        $region117: #{ae_critic_forward.1} parent=75 // pred_check
          %p4179 = pneg %p403
        $region118: #{ae_critic_forward.1} parent=75 // pred_check_branch
          %4181 = sbr.rel (%p4179) target = $region120
        $region119: #{ae_critic_forward.1} parent=75 // pred_region
          _
        $region120: #{ae_critic_forward.1} parent=75 // pred_fallthru
          _
      $region76: #{ae_critic_forward.1} parent=5 // pred_fallthru
        _
      %p4182 = scmp.le.s32.totalorder 2, %s36
      // Predicated region
      $region121: #{ae_critic_forward.1} parent=5 // pred_check
        %p4183 = pneg %p4182
      $region122: #{ae_critic_forward.1} parent=5 // pred_check_branch
        %4185 = sbr.rel (%p4183) target = $region124
      $region123: #{ae_critic_forward.1} parent=5 // pred_region
        %s4186 = ssub.s32 %s36, 2
        // Predicated region
        $region125: #{ae_critic_forward.1} parent=123 // pred_check
          %p4187 = pneg %p409
        $region126: #{ae_critic_forward.1} parent=123 // pred_check_branch
          %4189 = sbr.rel (%p4187) target = $region128
        $region127: #{ae_critic_forward.1} parent=123 // pred_region
          %p4190 = scmp.lt.s32.totalorder %s42, 1
          %s4191 = scalar_select %p4190, %s42, 1
          %s4192 = smul.addr %s4191, 2
          %s4193 = scalar_lea.vmem %s14, %s4192
        $region128: #{ae_critic_forward.1} parent=123 // pred_fallthru
          _
      $region124: #{ae_critic_forward.1} parent=5 // pred_fallthru
        _
    $region6: #{ae_critic_forward.1} parent=1 // loop_footer
      %s40 = sadd.s32 1, %s36
    $region7: #{ae_critic_forward.1} parent=1 // loop_footer_branch
      %35 = sbr.rel target = $region3
    $region8: #{ae_critic_forward.1} parent=1 // loop_exit
      _
    %4194 = vsyncpa [#allocation3], 1
    %s4195 = scalar_lea.sflag [#allocation3], 1
    %4196 = vsyncpa %s4195, 1
    %4197 = vsyncpa [#allocation5], 1
    %s4198 = scalar_lea.sflag [#allocation5], 1
    %4199 = vsyncpa %s4198, 1
    %4200 = vsyncpa [#allocation8], 1
    %s4201 = scalar_lea.sflag [#allocation8], 1
    %4202 = vsyncpa %s4201, 1
    %4203 = vsyncpa [#allocation11], 1
    %s4204 = scalar_lea.sflag [#allocation11], 1
    %4205 = vsyncpa %s4204, 1
    %4206 = vsyncpa [#allocation14], 1
    %s4207 = scalar_lea.sflag [#allocation14], 1
    %4208 = vsyncpa %s4207, 1
    %4209 = vsyncpa [#allocation17], 1
    %s4210 = scalar_lea.sflag [#allocation17], 1
    %4211 = vsyncpa %s4210, 1

</llo_original>
